<compile_context>
chip_gen: v7x
topology: tpu7x:2x2x1
jax: 0.10.0
libtpu: 0.0.40
codegen_flags: <defaults>
</compile_context>

<pallas_src>
import functools

import jax
import jax.numpy as jnp
from jax.experimental import pallas as pl
from jax.experimental.pallas import tpu as pltpu


def _round_up(x, m):
    return ((x + m - 1) // m) * m


# ----------------------------------------------------------------------------
# Pallas kernel: fused ACEHead (all 1x1 convs) on a (c_in, tile_pixels) tile.
# All matmuls are W(c_out, c_in) @ h(c_in, tile) in bf16 with f32 accumulation;
# bias / ReLU / residual math stays in f32 vregs; each activation is cast to
# bf16 exactly once before feeding the next matmul.
# ----------------------------------------------------------------------------
def _ace_head_kernel(
    x_ref,
    # fused block1.conv1 (ReLU branch) + downsample (residual branch)
    w_in, b_in,
    # block1 conv2/conv3
    w_b1c2, b_b1c2, w_b1c3, b_b1c3,
    # block2
    w_b2c1, b_b2c1, w_b2c2, b_b2c2, w_b2c3, b_b2c3,
    # fc1..fc3
    w_fc1, b_fc1, w_fc2, b_fc2, w_fc3, b_fc3,
    o_ref,
    *,
    c_head,
):
    def mm(w_ref, h_bf16, b_ref):
        return jnp.dot(w_ref[...], h_bf16,
                       preferred_element_type=jnp.float32) + b_ref[...]

    def relu(v):
        return jnp.maximum(v, 0.0)

    x = x_ref[...]                                   # (c_in, tile) bf16

    # One fused matmul reads the wide (C_in) activation once for both
    # block1.conv1 and downsample.  Split is sublane-aligned (c_head % 128 == 0).
    y = mm(w_in, x, b_in)                            # (2*c_head, tile) f32
    r = relu(y[:c_head, :]).astype(jnp.bfloat16)     # block1.conv1 -> ReLU
    ds = y[c_head:, :]                               # downsample(x), f32 carry

    # block1: conv2 -> relu -> conv3 -> relu
    r = relu(mm(w_b1c2, r, b_b1c2)).astype(jnp.bfloat16)
    r = relu(mm(w_b1c3, r, b_b1c3))                  # f32

    # x = downsample(x) + res
    h = ds + r                                       # f32 residual carry
    hb = h.astype(jnp.bfloat16)                      # cast once for block2

    # block2 + residual
    r = relu(mm(w_b2c1, hb, b_b2c1)).astype(jnp.bfloat16)
    r = relu(mm(w_b2c2, r, b_b2c2)).astype(jnp.bfloat16)
    r = relu(mm(w_b2c3, r, b_b2c3))                  # f32
    h = h + r
    hb = h.astype(jnp.bfloat16)                      # cast once for fc stack

    # fc1 -> relu -> fc2 -> relu -> fc3 (no relu)
    r = relu(mm(w_fc1, hb, b_fc1)).astype(jnp.bfloat16)
    r = relu(mm(w_fc2, r, b_fc2)).astype(jnp.bfloat16)
    o_ref[...] = mm(w_fc3, r, b_fc3).astype(o_ref.dtype)


# ----------------------------------------------------------------------------
# Parameter prep: fuse b1c1+downsample along the output-channel axis, pad the
# fc3 output channels to a multiple of 128, cast weights to bf16 (biases f32).
# Weights are stored Conv2d-style as (c_out, c_in); biases as (c_out, 1).
# ----------------------------------------------------------------------------
def _prepare_kernel_params(params, n_land_pad):
    wdt = jnp.bfloat16
    kp = {}
    kp["w_in"] = jnp.concatenate(
        [params["w_b1c1"], params["w_ds"]], axis=0).astype(wdt)
    kp["b_in"] = jnp.concatenate(
        [params["b_b1c1"], params["b_ds"]], axis=0).astype(jnp.float32)
    for name in ("b1c2", "b1c3", "b2c1", "b2c2", "b2c3", "fc1", "fc2"):
        kp[f"w_{name}"] = params[f"w_{name}"].astype(wdt)
        kp[f"b_{name}"] = params[f"b_{name}"].astype(jnp.float32)
    n_land = params["w_fc3"].shape[0]
    pad = n_land_pad - n_land
    kp["w_fc3"] = jnp.pad(params["w_fc3"], ((0, pad), (0, 0))).astype(wdt)
    kp["b_fc3"] = jnp.pad(params["b_fc3"], ((0, pad), (0, 0))).astype(jnp.float32)
    return kp


def _choose_tile_pixels(hw, n_batch, tile_pixels):
    """Pick a pixel-tile width (multiple of 128) that (a) does not blow the
    spatial padding up beyond one 128-lane step and (b) keeps at least 4 grid
    steps so v7x's two TensorCores both get work under megacore sharding."""
    def halve(t):
        return max(128, (t // 2) // 128 * 128)

    tile = max(128, _round_up(tile_pixels, 128))
    while tile > 128 and tile > _round_up(hw, 128):
        tile = halve(tile)
    while tile > 128 and n_batch * (_round_up(hw, tile) // tile) < 4:
        tile = halve(tile)
    return tile


def ace_head_pallas(x_nchw, params, *, tile_pixels=512):
    """Run the fused ACEHead kernel on an NCHW feature map.

    x_nchw: (N, C_in, H, W) float32
    params: dict of (C_out, C_in) weights and (C_out, 1) biases (f32)
    returns: (N, num_landmarks, H, W) float32   (matches PyTorch NCHW output)
    """
    n, c_in, h, w = x_nchw.shape
    c_head = params["w_b1c1"].shape[0]
    n_land = params["w_fc3"].shape[0]
    assert c_head % 128 == 0, (
        "c_head must be a multiple of 128 so the fused conv1/downsample split "
        "is tile-aligned (production head_channels=512 satisfies this)")
    n_land_pad = _round_up(n_land, 128)   # full MXU N / aligned output block

    hw = h * w
    tile = _choose_tile_pixels(hw, n, tile_pixels)
    hw_pad = _round_up(hw, tile)

    kp = _prepare_kernel_params(params, n_land_pad)

    # NCHW stays NCHW: (N, C, H, W) -> (N, C, H*W) is a free reshape; only the
    # bf16 cast and the (small) pixel padding touch the data.  No transposes.
    x3d = x_nchw.reshape(n, c_in, hw).astype(jnp.bfloat16)
    if hw_pad != hw:
        x3d = jnp.pad(x3d, ((0, 0), (0, 0), (0, hw_pad - hw)))

    grid = (n, hw_pad // tile)

    weight_order = [
        "w_in", "b_in",
        "w_b1c2", "b_b1c2", "w_b1c3", "b_b1c3",
        "w_b2c1", "b_b2c1", "w_b2c2", "b_b2c2", "w_b2c3", "b_b2c3",
        "w_fc1", "b_fc1", "w_fc2", "b_fc2", "w_fc3", "b_fc3",
    ]
    weight_args = [kp[k] for k in weight_order]

    def resident_spec(arr):
        # Constant block index across the whole grid: Pallas skips the re-DMA
        # when the block index is unchanged, so weights are fetched once and
        # stay resident in VMEM for the whole grid.
        nd = arr.ndim
        return pl.BlockSpec(arr.shape, lambda *_: (0,) * nd)

    in_specs = [pl.BlockSpec((None, c_in, tile), lambda b, t: (b, 0, t))]
    in_specs += [resident_spec(a) for a in weight_args]
    out_spec = pl.BlockSpec((None, n_land_pad, tile), lambda b, t: (b, 0, t))

    # Scoped-VMEM budget: resident weights + double-buffered input/output tiles
    # + live intermediates, with headroom; capped below v7x's 64 MiB physical.
    w_bytes = sum(int(a.size) * a.dtype.itemsize for a in weight_args)
    act_bytes = (
        2 * c_in * tile * 2                          # bf16 input tiles (x2 buf)
        + 2 * n_land_pad * tile * 4                  # f32 output tiles (x2 buf)
        + 8 * max(2 * c_head, c_in) * tile * 4       # live f32/bf16 intermediates
    )
    vmem_limit = int(1.5 * (w_bytes + act_bytes)) + (8 << 20)
    vmem_limit = max(vmem_limit, 32 << 20)
    vmem_limit = min(vmem_limit, 56 << 20)

    flops = 2 * n * hw_pad * (
        c_in * (2 * c_head) + 7 * c_head * c_head + c_head * n_land_pad)
    bytes_accessed = (n * c_in * hw_pad * 2
                      + n * n_land_pad * hw_pad * 4
                      + w_bytes)
    cost = pl.CostEstimate(flops=flops, transcendentals=0,
                           bytes_accessed=bytes_accessed)

    out = pl.pallas_call(
        functools.partial(_ace_head_kernel, c_head=c_head),
        out_shape=jax.ShapeDtypeStruct((n, n_land_pad, hw_pad), jnp.float32),
        grid_spec=pltpu.PrefetchScalarGridSpec(
            num_scalar_prefetch=0,
            grid=grid,
            in_specs=in_specs,
            out_specs=out_spec,
        ),
        compiler_params=pltpu.CompilerParams(
            dimension_semantics=("parallel", "parallel"),
            vmem_limit_bytes=vmem_limit,
        ),
        cost_estimate=cost,
    )(x3d, *weight_args)

    # Strip landmark / pixel padding; (N, L, H*W) -> (N, L, H, W) is free.
    return out[:, :n_land, :hw].reshape(n, n_land, h, w)


# ----------------------------------------------------------------------------
# Parameter construction (deterministic, in-script).
# Conv2d(kin, kout, 1) weight (kout, kin, 1, 1) is stored here as (kout, kin)
# so the kernel computes W @ x_channels_first + b.
# ----------------------------------------------------------------------------
def make_ace_head_params(key, c_in, c_head, n_land, dtype=jnp.float32):
    names_shapes = [
        ("b1c1", c_in, c_head), ("b1c2", c_head, c_head), ("b1c3", c_head, c_head),
        ("ds", c_in, c_head),
        ("b2c1", c_head, c_head), ("b2c2", c_head, c_head), ("b2c3", c_head, c_head),
        ("fc1", c_head, c_head), ("fc2", c_head, c_head), ("fc3", c_head, n_land),
    ]
    params = {}
    for name, kin, kout in names_shapes:
        key, kw, kb = jax.random.split(key, 3)
        scale = 1.0 / jnp.sqrt(jnp.float32(kin))
        params[f"w_{name}"] = (jax.random.uniform(kw, (kout, kin), dtype,
                                                  minval=-1.0, maxval=1.0) * scale)
        params[f"b_{name}"] = (jax.random.uniform(kb, (kout, 1), dtype,
                                                  minval=-1.0, maxval=1.0) * scale)
    return params


# ----------------------------------------------------------------------------
# Pure-JAX reference matching the kernel's numerics (bf16 matmuls, f32 rest).
# ----------------------------------------------------------------------------
def ace_head_ref(x_nchw, params):
    n, c_in, h, w = x_nchw.shape
    x = x_nchw.reshape(n, c_in, h * w).astype(jnp.bfloat16)

    def conv(hh, name, relu=True):
        wq = params[f"w_{name}"].astype(jnp.bfloat16)
        y = jnp.einsum("oc,ncp->nop", wq, hh.astype(jnp.bfloat16),
                       preferred_element_type=jnp.float32)
        y = y + params[f"b_{name}"][None].astype(jnp.float32)
        return jnp.maximum(y, 0.0) if relu else y

    r = conv(x, "b1c1"); r = conv(r, "b1c2"); r = conv(r, "b1c3")
    hcur = conv(x, "ds", relu=False) + r
    r = conv(hcur, "b2c1"); r = conv(r, "b2c2"); r = conv(r, "b2c3")
    hcur = hcur + r
    r = conv(hcur, "fc1"); r = conv(r, "fc2")
    out = conv(r, "fc3", relu=False)
    n_land = params["w_fc3"].shape[0]
    return out.reshape(n, n_land, h, w)


# ----------------------------------------------------------------------------
# FrozenBackBoneModel.forward equivalent.
# ----------------------------------------------------------------------------
def frozen_backbone_model_forward(x_features_nchw, params):
    # Backbone is frozen (torch.no_grad) and not definable from the given
    # source; features are taken as the model input (see TODO at top of file).
    features = jax.lax.stop_gradient(x_features_nchw)
    return ace_head_pallas(features, params)


if __name__ == "__main__":
    # Small shapes consistent with the module structure
    # (real model: C_in=2048, head=512, landmarks=200 — scaled down here;
    #  C_HEAD kept at 128 so the fused conv1/downsample split stays aligned).
    N, C_IN, H, W = 2, 32, 16, 16
    C_HEAD, N_LAND = 128, 16

    key = jax.random.PRNGKey(0)
    key, kx = jax.random.split(key)
    x = jax.random.normal(kx, (N, C_IN, H, W), dtype=jnp.float32)

    params = make_ace_head_params(key, C_IN, C_HEAD, N_LAND)

    out = frozen_backbone_model_forward(x, params)
    out = jax.block_until_ready(out)

    ref = ace_head_ref(x, params)
    assert out.shape == (N, N_LAND, H, W)
    assert jnp.allclose(out, ref, atol=5e-2, rtol=5e-2), \
        float(jnp.max(jnp.abs(out - ref)))

    print("KERNEL_OK")
</pallas_src>

<mosaic_0001>
module attributes {stable_mosaic.version = 11 : i64} {
  func.func @_ace_head_kernel(%arg0: i32, %arg1: i32, %arg2: memref<1x32x128xbf16, #tpu.memory_space<vmem>>, %arg3: memref<256x32xbf16, #tpu.memory_space<vmem>>, %arg4: memref<256x1xf32, #tpu.memory_space<vmem>>, %arg5: memref<128x128xbf16, #tpu.memory_space<vmem>>, %arg6: memref<128x1xf32, #tpu.memory_space<vmem>>, %arg7: memref<128x128xbf16, #tpu.memory_space<vmem>>, %arg8: memref<128x1xf32, #tpu.memory_space<vmem>>, %arg9: memref<128x128xbf16, #tpu.memory_space<vmem>>, %arg10: memref<128x1xf32, #tpu.memory_space<vmem>>, %arg11: memref<128x128xbf16, #tpu.memory_space<vmem>>, %arg12: memref<128x1xf32, #tpu.memory_space<vmem>>, %arg13: memref<128x128xbf16, #tpu.memory_space<vmem>>, %arg14: memref<128x1xf32, #tpu.memory_space<vmem>>, %arg15: memref<128x128xbf16, #tpu.memory_space<vmem>>, %arg16: memref<128x1xf32, #tpu.memory_space<vmem>>, %arg17: memref<128x128xbf16, #tpu.memory_space<vmem>>, %arg18: memref<128x1xf32, #tpu.memory_space<vmem>>, %arg19: memref<128x128xbf16, #tpu.memory_space<vmem>>, %arg20: memref<128x1xf32, #tpu.memory_space<vmem>>, %arg21: memref<1x128x128xf32, #tpu.memory_space<vmem>>) attributes {dimension_semantics = [#tpu.dimension_semantics<parallel>, #tpu.dimension_semantics<parallel>], iteration_bounds = array<i64: 2, 2>, scalar_prefetch = 0 : i64, scratch_operands = 0 : i64, tpu.core_type = #tpu.core_type<tc>, window_params = [{transform_indices = @transform_0, window_bounds = array<i64: 1, 32, 128>}, {pipeline_mode = #tpu.pipeline_mode<synchronous>, transform_indices = @transform_1, window_bounds = array<i64: 256, 32>}, {pipeline_mode = #tpu.pipeline_mode<synchronous>, transform_indices = @transform_2, window_bounds = array<i64: 256, 1>}, {pipeline_mode = #tpu.pipeline_mode<synchronous>, transform_indices = @transform_3, window_bounds = array<i64: 128, 128>}, {pipeline_mode = #tpu.pipeline_mode<synchronous>, transform_indices = @transform_4, window_bounds = array<i64: 128, 1>}, {pipeline_mode = #tpu.pipeline_mode<synchronous>, transform_indices = @transform_5, window_bounds = array<i64: 128, 128>}, {pipeline_mode = #tpu.pipeline_mode<synchronous>, transform_indices = @transform_6, window_bounds = array<i64: 128, 1>}, {pipeline_mode = #tpu.pipeline_mode<synchronous>, transform_indices = @transform_7, window_bounds = array<i64: 128, 128>}, {pipeline_mode = #tpu.pipeline_mode<synchronous>, transform_indices = @transform_8, window_bounds = array<i64: 128, 1>}, {pipeline_mode = #tpu.pipeline_mode<synchronous>, transform_indices = @transform_9, window_bounds = array<i64: 128, 128>}, {pipeline_mode = #tpu.pipeline_mode<synchronous>, transform_indices = @transform_10, window_bounds = array<i64: 128, 1>}, {pipeline_mode = #tpu.pipeline_mode<synchronous>, transform_indices = @transform_11, window_bounds = array<i64: 128, 128>}, {pipeline_mode = #tpu.pipeline_mode<synchronous>, transform_indices = @transform_12, window_bounds = array<i64: 128, 1>}, {pipeline_mode = #tpu.pipeline_mode<synchronous>, transform_indices = @transform_13, window_bounds = array<i64: 128, 128>}, {pipeline_mode = #tpu.pipeline_mode<synchronous>, transform_indices = @transform_14, window_bounds = array<i64: 128, 1>}, {pipeline_mode = #tpu.pipeline_mode<synchronous>, transform_indices = @transform_15, window_bounds = array<i64: 128, 128>}, {pipeline_mode = #tpu.pipeline_mode<synchronous>, transform_indices = @transform_16, window_bounds = array<i64: 128, 1>}, {pipeline_mode = #tpu.pipeline_mode<synchronous>, transform_indices = @transform_17, window_bounds = array<i64: 128, 128>}, {pipeline_mode = #tpu.pipeline_mode<synchronous>, transform_indices = @transform_18, window_bounds = array<i64: 128, 1>}, {transform_indices = @transform_19, window_bounds = array<i64: 1, 128, 128>}]} {
    %c0 = arith.constant 0 : index
    %c0_0 = arith.constant 0 : index
    %c0_1 = arith.constant 0 : index
    %0 = vector.load %arg2[%c0, %c0_0, %c0_1] : memref<1x32x128xbf16, #tpu.memory_space<vmem>>, vector<1x32x128xbf16>
    %1 = vector.shape_cast %0 : vector<1x32x128xbf16> to vector<32x128xbf16>
    %c0_2 = arith.constant 0 : index
    %c0_3 = arith.constant 0 : index
    %2 = vector.load %arg3[%c0_2, %c0_3] : memref<256x32xbf16, #tpu.memory_space<vmem>>, vector<256x32xbf16>
    %cst = arith.constant dense<0.000000e+00> : vector<256x128xf32>
    %3 = tpu.matmul %2, %1, %cst {dimension_numbers = #tpu.dot_dimension_numbers<[1], [0], [0], [1], [0, 0, 1, 1], [], []>} : vector<256x32xbf16>, vector<32x128xbf16>, vector<256x128xf32> -> vector<256x128xf32>
    %c0_4 = arith.constant 0 : index
    %c0_5 = arith.constant 0 : index
    %4 = vector.load %arg4[%c0_4, %c0_5] : memref<256x1xf32, #tpu.memory_space<vmem>>, vector<256x1xf32>
    %5 = vector.broadcast %4 : vector<256x1xf32> to vector<256x128xf32>
    %6 = arith.addf %3, %5 : vector<256x128xf32>
    %7 = vector.extract_strided_slice %6 {offsets = [0, 0], sizes = [128, 128], strides = [1, 1]} : vector<256x128xf32> to vector<128x128xf32>
    %cst_6 = arith.constant 0.000000e+00 : f32
    %8 = vector.broadcast %cst_6 : f32 to vector<128x128xf32>
    %9 = arith.maximumf %7, %8 : vector<128x128xf32>
    %10 = arith.truncf %9 : vector<128x128xf32> to vector<128x128xbf16>
    %11 = vector.extract_strided_slice %6 {offsets = [128, 0], sizes = [128, 128], strides = [1, 1]} : vector<256x128xf32> to vector<128x128xf32>
    %c0_7 = arith.constant 0 : index
    %c0_8 = arith.constant 0 : index
    %12 = vector.load %arg5[%c0_7, %c0_8] : memref<128x128xbf16, #tpu.memory_space<vmem>>, vector<128x128xbf16>
    %cst_9 = arith.constant dense<0.000000e+00> : vector<128x128xf32>
    %13 = tpu.matmul %12, %10, %cst_9 {dimension_numbers = #tpu.dot_dimension_numbers<[1], [0], [0], [1], [0, 0, 1, 1], [], []>} : vector<128x128xbf16>, vector<128x128xbf16>, vector<128x128xf32> -> vector<128x128xf32>
    %c0_10 = arith.constant 0 : index
    %c0_11 = arith.constant 0 : index
    %14 = vector.load %arg6[%c0_10, %c0_11] : memref<128x1xf32, #tpu.memory_space<vmem>>, vector<128x1xf32>
    %15 = vector.broadcast %14 : vector<128x1xf32> to vector<128x128xf32>
    %16 = arith.addf %13, %15 : vector<128x128xf32>
    %cst_12 = arith.constant 0.000000e+00 : f32
    %17 = vector.broadcast %cst_12 : f32 to vector<128x128xf32>
    %18 = arith.maximumf %16, %17 : vector<128x128xf32>
    %19 = arith.truncf %18 : vector<128x128xf32> to vector<128x128xbf16>
    %c0_13 = arith.constant 0 : index
    %c0_14 = arith.constant 0 : index
    %20 = vector.load %arg7[%c0_13, %c0_14] : memref<128x128xbf16, #tpu.memory_space<vmem>>, vector<128x128xbf16>
    %cst_15 = arith.constant dense<0.000000e+00> : vector<128x128xf32>
    %21 = tpu.matmul %20, %19, %cst_15 {dimension_numbers = #tpu.dot_dimension_numbers<[1], [0], [0], [1], [0, 0, 1, 1], [], []>} : vector<128x128xbf16>, vector<128x128xbf16>, vector<128x128xf32> -> vector<128x128xf32>
    %c0_16 = arith.constant 0 : index
    %c0_17 = arith.constant 0 : index
    %22 = vector.load %arg8[%c0_16, %c0_17] : memref<128x1xf32, #tpu.memory_space<vmem>>, vector<128x1xf32>
    %23 = vector.broadcast %22 : vector<128x1xf32> to vector<128x128xf32>
    %24 = arith.addf %21, %23 : vector<128x128xf32>
    %cst_18 = arith.constant 0.000000e+00 : f32
    %25 = vector.broadcast %cst_18 : f32 to vector<128x128xf32>
    %26 = arith.maximumf %24, %25 : vector<128x128xf32>
    %27 = arith.addf %11, %26 : vector<128x128xf32>
    %28 = arith.truncf %27 : vector<128x128xf32> to vector<128x128xbf16>
    %c0_19 = arith.constant 0 : index
    %c0_20 = arith.constant 0 : index
    %29 = vector.load %arg9[%c0_19, %c0_20] : memref<128x128xbf16, #tpu.memory_space<vmem>>, vector<128x128xbf16>
    %cst_21 = arith.constant dense<0.000000e+00> : vector<128x128xf32>
    %30 = tpu.matmul %29, %28, %cst_21 {dimension_numbers = #tpu.dot_dimension_numbers<[1], [0], [0], [1], [0, 0, 1, 1], [], []>} : vector<128x128xbf16>, vector<128x128xbf16>, vector<128x128xf32> -> vector<128x128xf32>
    %c0_22 = arith.constant 0 : index
    %c0_23 = arith.constant 0 : index
    %31 = vector.load %arg10[%c0_22, %c0_23] : memref<128x1xf32, #tpu.memory_space<vmem>>, vector<128x1xf32>
    %32 = vector.broadcast %31 : vector<128x1xf32> to vector<128x128xf32>
    %33 = arith.addf %30, %32 : vector<128x128xf32>
    %cst_24 = arith.constant 0.000000e+00 : f32
    %34 = vector.broadcast %cst_24 : f32 to vector<128x128xf32>
    %35 = arith.maximumf %33, %34 : vector<128x128xf32>
    %36 = arith.truncf %35 : vector<128x128xf32> to vector<128x128xbf16>
    %c0_25 = arith.constant 0 : index
    %c0_26 = arith.constant 0 : index
    %37 = vector.load %arg11[%c0_25, %c0_26] : memref<128x128xbf16, #tpu.memory_space<vmem>>, vector<128x128xbf16>
    %cst_27 = arith.constant dense<0.000000e+00> : vector<128x128xf32>
    %38 = tpu.matmul %37, %36, %cst_27 {dimension_numbers = #tpu.dot_dimension_numbers<[1], [0], [0], [1], [0, 0, 1, 1], [], []>} : vector<128x128xbf16>, vector<128x128xbf16>, vector<128x128xf32> -> vector<128x128xf32>
    %c0_28 = arith.constant 0 : index
    %c0_29 = arith.constant 0 : index
    %39 = vector.load %arg12[%c0_28, %c0_29] : memref<128x1xf32, #tpu.memory_space<vmem>>, vector<128x1xf32>
    %40 = vector.broadcast %39 : vector<128x1xf32> to vector<128x128xf32>
    %41 = arith.addf %38, %40 : vector<128x128xf32>
    %cst_30 = arith.constant 0.000000e+00 : f32
    %42 = vector.broadcast %cst_30 : f32 to vector<128x128xf32>
    %43 = arith.maximumf %41, %42 : vector<128x128xf32>
    %44 = arith.truncf %43 : vector<128x128xf32> to vector<128x128xbf16>
    %c0_31 = arith.constant 0 : index
    %c0_32 = arith.constant 0 : index
    %45 = vector.load %arg13[%c0_31, %c0_32] : memref<128x128xbf16, #tpu.memory_space<vmem>>, vector<128x128xbf16>
    %cst_33 = arith.constant dense<0.000000e+00> : vector<128x128xf32>
    %46 = tpu.matmul %45, %44, %cst_33 {dimension_numbers = #tpu.dot_dimension_numbers<[1], [0], [0], [1], [0, 0, 1, 1], [], []>} : vector<128x128xbf16>, vector<128x128xbf16>, vector<128x128xf32> -> vector<128x128xf32>
    %c0_34 = arith.constant 0 : index
    %c0_35 = arith.constant 0 : index
    %47 = vector.load %arg14[%c0_34, %c0_35] : memref<128x1xf32, #tpu.memory_space<vmem>>, vector<128x1xf32>
    %48 = vector.broadcast %47 : vector<128x1xf32> to vector<128x128xf32>
    %49 = arith.addf %46, %48 : vector<128x128xf32>
    %cst_36 = arith.constant 0.000000e+00 : f32
    %50 = vector.broadcast %cst_36 : f32 to vector<128x128xf32>
    %51 = arith.maximumf %49, %50 : vector<128x128xf32>
    %52 = arith.addf %27, %51 : vector<128x128xf32>
    %53 = arith.truncf %52 : vector<128x128xf32> to vector<128x128xbf16>
    %c0_37 = arith.constant 0 : index
    %c0_38 = arith.constant 0 : index
    %54 = vector.load %arg15[%c0_37, %c0_38] : memref<128x128xbf16, #tpu.memory_space<vmem>>, vector<128x128xbf16>
    %cst_39 = arith.constant dense<0.000000e+00> : vector<128x128xf32>
    %55 = tpu.matmul %54, %53, %cst_39 {dimension_numbers = #tpu.dot_dimension_numbers<[1], [0], [0], [1], [0, 0, 1, 1], [], []>} : vector<128x128xbf16>, vector<128x128xbf16>, vector<128x128xf32> -> vector<128x128xf32>
    %c0_40 = arith.constant 0 : index
    %c0_41 = arith.constant 0 : index
    %56 = vector.load %arg16[%c0_40, %c0_41] : memref<128x1xf32, #tpu.memory_space<vmem>>, vector<128x1xf32>
    %57 = vector.broadcast %56 : vector<128x1xf32> to vector<128x128xf32>
    %58 = arith.addf %55, %57 : vector<128x128xf32>
    %cst_42 = arith.constant 0.000000e+00 : f32
    %59 = vector.broadcast %cst_42 : f32 to vector<128x128xf32>
    %60 = arith.maximumf %58, %59 : vector<128x128xf32>
    %61 = arith.truncf %60 : vector<128x128xf32> to vector<128x128xbf16>
    %c0_43 = arith.constant 0 : index
    %c0_44 = arith.constant 0 : index
    %62 = vector.load %arg17[%c0_43, %c0_44] : memref<128x128xbf16, #tpu.memory_space<vmem>>, vector<128x128xbf16>
    %cst_45 = arith.constant dense<0.000000e+00> : vector<128x128xf32>
    %63 = tpu.matmul %62, %61, %cst_45 {dimension_numbers = #tpu.dot_dimension_numbers<[1], [0], [0], [1], [0, 0, 1, 1], [], []>} : vector<128x128xbf16>, vector<128x128xbf16>, vector<128x128xf32> -> vector<128x128xf32>
    %c0_46 = arith.constant 0 : index
    %c0_47 = arith.constant 0 : index
    %64 = vector.load %arg18[%c0_46, %c0_47] : memref<128x1xf32, #tpu.memory_space<vmem>>, vector<128x1xf32>
    %65 = vector.broadcast %64 : vector<128x1xf32> to vector<128x128xf32>
    %66 = arith.addf %63, %65 : vector<128x128xf32>
    %cst_48 = arith.constant 0.000000e+00 : f32
    %67 = vector.broadcast %cst_48 : f32 to vector<128x128xf32>
    %68 = arith.maximumf %66, %67 : vector<128x128xf32>
    %69 = arith.truncf %68 : vector<128x128xf32> to vector<128x128xbf16>
    %c0_49 = arith.constant 0 : index
    %c0_50 = arith.constant 0 : index
    %70 = vector.load %arg19[%c0_49, %c0_50] : memref<128x128xbf16, #tpu.memory_space<vmem>>, vector<128x128xbf16>
    %cst_51 = arith.constant dense<0.000000e+00> : vector<128x128xf32>
    %71 = tpu.matmul %70, %69, %cst_51 {dimension_numbers = #tpu.dot_dimension_numbers<[1], [0], [0], [1], [0, 0, 1, 1], [], []>} : vector<128x128xbf16>, vector<128x128xbf16>, vector<128x128xf32> -> vector<128x128xf32>
    %c0_52 = arith.constant 0 : index
    %c0_53 = arith.constant 0 : index
    %72 = vector.load %arg20[%c0_52, %c0_53] : memref<128x1xf32, #tpu.memory_space<vmem>>, vector<128x1xf32>
    %73 = vector.broadcast %72 : vector<128x1xf32> to vector<128x128xf32>
    %74 = arith.addf %71, %73 : vector<128x128xf32>
    %c0_54 = arith.constant 0 : index
    %c0_55 = arith.constant 0 : index
    %c0_56 = arith.constant 0 : index
    %75 = vector.load %arg21[%c0_54, %c0_55, %c0_56] : memref<1x128x128xf32, #tpu.memory_space<vmem>>, vector<1x128x128xf32>
    %76 = vector.shape_cast %75 : vector<1x128x128xf32> to vector<128x128xf32>
    %77 = vector.shape_cast %74 : vector<128x128xf32> to vector<1x128x128xf32>
    tpu.vector_store %arg21[%c0_54, %c0_55, %c0_56], %77 {strides = array<i32>} : memref<1x128x128xf32, #tpu.memory_space<vmem>>, vector<1x128x128xf32>,
    return
  }
  func.func @transform_0(%arg0: i32, %arg1: i32) -> (i32, i32, i32) {
    %c0_i32 = arith.constant 0 : i32
    %c0_i32_0 = arith.constant 0 : i32
    return %arg0, %c0_i32, %arg1 : i32, i32, i32
  }
  func.func @transform_1(%arg0: i32, %arg1: i32) -> (i32, i32) {
    %c0_i32 = arith.constant 0 : i32
    %c0_i32_0 = arith.constant 0 : i32
    %c0_i32_1 = arith.constant 0 : i32
    return %c0_i32, %c0_i32_0 : i32, i32
  }
  func.func @transform_2(%arg0: i32, %arg1: i32) -> (i32, i32) {
    %c0_i32 = arith.constant 0 : i32
    %c0_i32_0 = arith.constant 0 : i32
    %c0_i32_1 = arith.constant 0 : i32
    return %c0_i32, %c0_i32_0 : i32, i32
  }
  func.func @transform_3(%arg0: i32, %arg1: i32) -> (i32, i32) {
    %c0_i32 = arith.constant 0 : i32
    %c0_i32_0 = arith.constant 0 : i32
    %c0_i32_1 = arith.constant 0 : i32
    return %c0_i32, %c0_i32_0 : i32, i32
  }
  func.func @transform_4(%arg0: i32, %arg1: i32) -> (i32, i32) {
    %c0_i32 = arith.constant 0 : i32
    %c0_i32_0 = arith.constant 0 : i32
    %c0_i32_1 = arith.constant 0 : i32
    return %c0_i32, %c0_i32_0 : i32, i32
  }
  func.func @transform_5(%arg0: i32, %arg1: i32) -> (i32, i32) {
    %c0_i32 = arith.constant 0 : i32
    %c0_i32_0 = arith.constant 0 : i32
    %c0_i32_1 = arith.constant 0 : i32
    return %c0_i32, %c0_i32_0 : i32, i32
  }
  func.func @transform_6(%arg0: i32, %arg1: i32) -> (i32, i32) {
    %c0_i32 = arith.constant 0 : i32
    %c0_i32_0 = arith.constant 0 : i32
    %c0_i32_1 = arith.constant 0 : i32
    return %c0_i32, %c0_i32_0 : i32, i32
  }
  func.func @transform_7(%arg0: i32, %arg1: i32) -> (i32, i32) {
    %c0_i32 = arith.constant 0 : i32
    %c0_i32_0 = arith.constant 0 : i32
    %c0_i32_1 = arith.constant 0 : i32
    return %c0_i32, %c0_i32_0 : i32, i32
  }
  func.func @transform_8(%arg0: i32, %arg1: i32) -> (i32, i32) {
    %c0_i32 = arith.constant 0 : i32
    %c0_i32_0 = arith.constant 0 : i32
    %c0_i32_1 = arith.constant 0 : i32
    return %c0_i32, %c0_i32_0 : i32, i32
  }
  func.func @transform_9(%arg0: i32, %arg1: i32) -> (i32, i32) {
    %c0_i32 = arith.constant 0 : i32
    %c0_i32_0 = arith.constant 0 : i32
    %c0_i32_1 = arith.constant 0 : i32
    return %c0_i32, %c0_i32_0 : i32, i32
  }
  func.func @transform_10(%arg0: i32, %arg1: i32) -> (i32, i32) {
    %c0_i32 = arith.constant 0 : i32
    %c0_i32_0 = arith.constant 0 : i32
    %c0_i32_1 = arith.constant 0 : i32
    return %c0_i32, %c0_i32_0 : i32, i32
  }
  func.func @transform_11(%arg0: i32, %arg1: i32) -> (i32, i32) {
    %c0_i32 = arith.constant 0 : i32
    %c0_i32_0 = arith.constant 0 : i32
    %c0_i32_1 = arith.constant 0 : i32
    return %c0_i32, %c0_i32_0 : i32, i32
  }
  func.func @transform_12(%arg0: i32, %arg1: i32) -> (i32, i32) {
    %c0_i32 = arith.constant 0 : i32
    %c0_i32_0 = arith.constant 0 : i32
    %c0_i32_1 = arith.constant 0 : i32
    return %c0_i32, %c0_i32_0 : i32, i32
  }
  func.func @transform_13(%arg0: i32, %arg1: i32) -> (i32, i32) {
    %c0_i32 = arith.constant 0 : i32
    %c0_i32_0 = arith.constant 0 : i32
    %c0_i32_1 = arith.constant 0 : i32
    return %c0_i32, %c0_i32_0 : i32, i32
  }
  func.func @transform_14(%arg0: i32, %arg1: i32) -> (i32, i32) {
    %c0_i32 = arith.constant 0 : i32
    %c0_i32_0 = arith.constant 0 : i32
    %c0_i32_1 = arith.constant 0 : i32
    return %c0_i32, %c0_i32_0 : i32, i32
  }
  func.func @transform_15(%arg0: i32, %arg1: i32) -> (i32, i32) {
    %c0_i32 = arith.constant 0 : i32
    %c0_i32_0 = arith.constant 0 : i32
    %c0_i32_1 = arith.constant 0 : i32
    return %c0_i32, %c0_i32_0 : i32, i32
  }
  func.func @transform_16(%arg0: i32, %arg1: i32) -> (i32, i32) {
    %c0_i32 = arith.constant 0 : i32
    %c0_i32_0 = arith.constant 0 : i32
    %c0_i32_1 = arith.constant 0 : i32
    return %c0_i32, %c0_i32_0 : i32, i32
  }
  func.func @transform_17(%arg0: i32, %arg1: i32) -> (i32, i32) {
    %c0_i32 = arith.constant 0 : i32
    %c0_i32_0 = arith.constant 0 : i32
    %c0_i32_1 = arith.constant 0 : i32
    return %c0_i32, %c0_i32_0 : i32, i32
  }
  func.func @transform_18(%arg0: i32, %arg1: i32) -> (i32, i32) {
    %c0_i32 = arith.constant 0 : i32
    %c0_i32_0 = arith.constant 0 : i32
    %c0_i32_1 = arith.constant 0 : i32
    return %c0_i32, %c0_i32_0 : i32, i32
  }
  func.func @transform_19(%arg0: i32, %arg1: i32) -> (i32, i32, i32) {
    %c0_i32 = arith.constant 0 : i32
    %c0_i32_0 = arith.constant 0 : i32
    return %arg0, %c0_i32, %arg1 : i32, i32, i32
  }
}

</mosaic_0001>

<llo_original>
// kernel: tpu_custom_call.1
$region0: #{tpu_custom_call.1}
  #allocation0 [shape = 'u32[]', space=smem, size = 0x4, offset = 0x4, fixed_abs, tag = 'smem constant byte address 0x4 - core index']
  #allocation1 [shape = 'u32[144,128]{1,0:T(1,128)}', space=vmem, size = 0x12000, scoped, tag = 'internal scratch']
  %s0 = inlined_call_operand.vmem [shape: bf16[2,32,256], index: 0, kind: input, shape index: {}]
  %s1 = inlined_call_operand.vmem [shape: bf16[256,32], index: 1, kind: input, shape index: {}]
  %s2 = inlined_call_operand.vmem [shape: f32[256,1], index: 2, kind: input, shape index: {}]
  %s3 = inlined_call_operand.vmem [shape: bf16[128,128], index: 3, kind: input, shape index: {}]
  %s4 = inlined_call_operand.vmem [shape: f32[128,1], index: 4, kind: input, shape index: {}]
  %s5 = inlined_call_operand.vmem [shape: bf16[128,128], index: 5, kind: input, shape index: {}]
  %s6 = inlined_call_operand.vmem [shape: f32[128,1], index: 6, kind: input, shape index: {}]
  %s7 = inlined_call_operand.vmem [shape: bf16[128,128], index: 7, kind: input, shape index: {}]
  %s8 = inlined_call_operand.vmem [shape: f32[128,1], index: 8, kind: input, shape index: {}]
  %s9 = inlined_call_operand.vmem [shape: bf16[128,128], index: 9, kind: input, shape index: {}]
  %s10 = inlined_call_operand.vmem [shape: f32[128,1], index: 10, kind: input, shape index: {}]
  %s11 = inlined_call_operand.vmem [shape: bf16[128,128], index: 11, kind: input, shape index: {}]
  %s12 = inlined_call_operand.vmem [shape: f32[128,1], index: 12, kind: input, shape index: {}]
  %s13 = inlined_call_operand.vmem [shape: bf16[128,128], index: 13, kind: input, shape index: {}]
  %s14 = inlined_call_operand.vmem [shape: f32[128,1], index: 14, kind: input, shape index: {}]
  %s15 = inlined_call_operand.vmem [shape: bf16[128,128], index: 15, kind: input, shape index: {}]
  %s16 = inlined_call_operand.vmem [shape: f32[128,1], index: 16, kind: input, shape index: {}]
  %s17 = inlined_call_operand.vmem [shape: bf16[128,128], index: 17, kind: input, shape index: {}]
  %s18 = inlined_call_operand.vmem [shape: f32[128,1], index: 18, kind: input, shape index: {}]
  %s19 = inlined_call_operand.hbm [shape: f32[2,128,256], index: 19, kind: output, shape index: {}]
  %s20 = sld [smem:[#allocation0]]
  $region150: #{tpu_custom_call.1} parent=0
    _
  %s22 = ssub.s32 1, %s20
  %s23 = scalar_select 0, %s22, %s20
  $region1: #{tpu_custom_call.1} parent=0
    #allocation2 [shape = 'u8[16384]{0}', space=vmem, size = 0x4000, scoped, tag = 'input window, operand 0']
    #allocation3 [shape = 'u8[131072]{0}', space=vmem, size = 0x20000, scoped, tag = 'output window, operand 0']
    #allocation4 [shape = 's32[2]{0}', space=sflag, size = 0x8, scoped, tag = 'scoped memory for tpu_custom_call.1']
    %24 = vsyncpa [#allocation4], 0
    %s25 = scalar_lea.sflag [#allocation4], 1
    %26 = vsyncpa %s25, 0
    loop: start=0, step=1, limit=6
    $region2: #{tpu_custom_call.1} parent=1 // loop_pre_header
      _
    $region3: #{tpu_custom_call.1} parent=1 // loop_header
      %s28 = sphi 0, %s32
      %p29 = scmp.ge.s32.totalorder %s28, 6
      %s35 = sphi 0, %s47
      %s36 = sphi 0, %s43
      %s37 = sphi 0, %s35
      %s38 = sphi 0, %s36
      %s39 = sphi 0, %s37
      %s40 = sphi 0, %s38
      %s52 = sphi 0, %s54
      %s55 = sphi 0, %s52
      %s56 = sphi 0, %s55
      %s72 = sphi 0, %s56
      %s76 = sphi 0, %s76
      %s78 = sphi 0, %s76
      %s79 = sphi 0, %s78
      %s93 = sphi 0, %s79
      %s97 = sphi 0, %s97
      %s99 = sphi 0, %s97
      %s100 = sphi 0, %s99
      %s114 = sphi 0, %s100
      %s118 = sphi 0, %s118
      %s120 = sphi 0, %s118
      %s121 = sphi 0, %s120
      %s135 = sphi 0, %s121
      %s139 = sphi 0, %s139
      %s141 = sphi 0, %s139
      %s142 = sphi 0, %s141
      %s156 = sphi 0, %s142
      %s160 = sphi 0, %s160
      %s162 = sphi 0, %s160
      %s163 = sphi 0, %s162
      %s177 = sphi 0, %s163
      %s181 = sphi 0, %s181
      %s183 = sphi 0, %s181
      %s184 = sphi 0, %s183
      %s198 = sphi 0, %s184
      %s202 = sphi 0, %s202
      %s204 = sphi 0, %s202
      %s205 = sphi 0, %s204
      %s219 = sphi 0, %s205
      %s223 = sphi 0, %s223
      %s225 = sphi 0, %s223
      %s226 = sphi 0, %s225
      %s240 = sphi 0, %s226
      %s244 = sphi 0, %s244
      %s246 = sphi 0, %s244
      %s247 = sphi 0, %s246
      %s261 = sphi 0, %s247
      %s265 = sphi 0, %s265
      %s267 = sphi 0, %s265
      %s268 = sphi 0, %s267
      %s282 = sphi 0, %s268
      %s286 = sphi 0, %s286
      %s288 = sphi 0, %s286
      %s289 = sphi 0, %s288
      %s303 = sphi 0, %s289
      %s307 = sphi 0, %s307
      %s309 = sphi 0, %s307
      %s310 = sphi 0, %s309
      %s324 = sphi 0, %s310
      %s328 = sphi 0, %s328
      %s330 = sphi 0, %s328
      %s331 = sphi 0, %s330
      %s345 = sphi 0, %s331
      %s349 = sphi 0, %s349
      %s351 = sphi 0, %s349
      %s352 = sphi 0, %s351
      %s366 = sphi 0, %s352
      %s370 = sphi 0, %s370
      %s372 = sphi 0, %s370
      %s373 = sphi 0, %s372
      %s387 = sphi 0, %s373
      %s391 = sphi 0, %s391
      %s393 = sphi 0, %s391
      %s394 = sphi 0, %s393
      %s408 = sphi 0, %s394
      %s412 = sphi 0, %s412
      %s414 = sphi 0, %s412
      %s415 = sphi 0, %s414
      %s429 = sphi 0, %s415
      %s433 = sphi 0, %s433
      %s435 = sphi 0, %s433
      %s436 = sphi 0, %s435
      %s450 = sphi 0, %s436
      %s458 = sphi 0, %s460
      %s461 = sphi 0, %s458
      %s462 = sphi 0, %s461
      %s478 = sphi 0, %s462
    $region4: #{tpu_custom_call.1} parent=1 // loop_header_branch
      %31 = sbr.rel (%p29) target = $region8
    $region5: #{tpu_custom_call.1} parent=1 // loop_body
      %s33 = ssub.s32 %s28, 1
      %s34 = ssub.s32 %s28, 2
      %s41 = sadd.s32 1, %s36
      %p42 = scmp.ge.s32.totalorder %s41, 2
      %s43 = scalar_select %p42, 0, %s41
      %s44 = sadd.s32 1, %s35
      %s45 = scalar_select %p42, %s44, %s35
      %p46 = scmp.ge.s32.totalorder %s45, 2
      %s47 = scalar_select %p46, 0, %s45
      %s48 = ssub.s32 %s35, %s47
      %s49 = ssub.s32 %s36, %s43
      %s50 = sor.u32 %s48, %s49
      %p51 = scmp.eq.s32.totalorder %s50, 0
      %s53 = sadd.s32 %s52, 1
      %s54 = scalar_select %p51, %s52, %s53
      %p57 = pneg %p51
      %p58 = scmp.eq.s32.totalorder %s28, 3
      %p59 = por %p57, %p58
      %p60 = scmp.ne.s32.totalorder %s52, %s55
      %p61 = scmp.eq.s32.totalorder %s28, 0
      %p62 = por %p60, %p61
      %p63 = scmp.ne.s32.totalorder %s52, %s55
      %p64 = scmp.eq.s32.totalorder %s33, 3
      %p65 = por %p63, %p64
      %p66 = scmp.ne.s32.totalorder %s55, %s56
      %p67 = scmp.eq.s32.totalorder %s33, 0
      %p68 = por %p66, %p67
      %p69 = scmp.ne.s32.totalorder %s55, %s56
      %p70 = scmp.eq.s32.totalorder %s34, 3
      %p71 = por %p69, %p70
      %p73 = scmp.ne.s32.totalorder %s56, %s72
      %p74 = scmp.eq.s32.totalorder %s34, 0
      %p75 = por %p73, %p74
      %s77 = sadd.s32 %s76, 1
      %p80 = scmp.eq.s32.totalorder %s28, 3
      %p81 = scmp.ne.s32.totalorder %s76, %s78
      %p82 = scmp.eq.s32.totalorder %s28, 0
      %p83 = por %p81, %p82
      %p84 = scmp.ne.s32.totalorder %s76, %s78
      %p85 = scmp.eq.s32.totalorder %s33, 3
      %p86 = por %p84, %p85
      %p87 = scmp.ne.s32.totalorder %s78, %s79
      %p88 = scmp.eq.s32.totalorder %s33, 0
      %p89 = por %p87, %p88
      %p90 = scmp.ne.s32.totalorder %s78, %s79
      %p91 = scmp.eq.s32.totalorder %s34, 3
      %p92 = por %p90, %p91
      %p94 = scmp.ne.s32.totalorder %s79, %s93
      %p95 = scmp.eq.s32.totalorder %s34, 0
      %p96 = por %p94, %p95
      %s98 = sadd.s32 %s97, 1
      %p101 = scmp.eq.s32.totalorder %s28, 3
      %p102 = scmp.ne.s32.totalorder %s97, %s99
      %p103 = scmp.eq.s32.totalorder %s28, 0
      %p104 = por %p102, %p103
      %p105 = scmp.ne.s32.totalorder %s97, %s99
      %p106 = scmp.eq.s32.totalorder %s33, 3
      %p107 = por %p105, %p106
      %p108 = scmp.ne.s32.totalorder %s99, %s100
      %p109 = scmp.eq.s32.totalorder %s33, 0
      %p110 = por %p108, %p109
      %p111 = scmp.ne.s32.totalorder %s99, %s100
      %p112 = scmp.eq.s32.totalorder %s34, 3
      %p113 = por %p111, %p112
      %p115 = scmp.ne.s32.totalorder %s100, %s114
      %p116 = scmp.eq.s32.totalorder %s34, 0
      %p117 = por %p115, %p116
      %s119 = sadd.s32 %s118, 1
      %p122 = scmp.eq.s32.totalorder %s28, 3
      %p123 = scmp.ne.s32.totalorder %s118, %s120
      %p124 = scmp.eq.s32.totalorder %s28, 0
      %p125 = por %p123, %p124
      %p126 = scmp.ne.s32.totalorder %s118, %s120
      %p127 = scmp.eq.s32.totalorder %s33, 3
      %p128 = por %p126, %p127
      %p129 = scmp.ne.s32.totalorder %s120, %s121
      %p130 = scmp.eq.s32.totalorder %s33, 0
      %p131 = por %p129, %p130
      %p132 = scmp.ne.s32.totalorder %s120, %s121
      %p133 = scmp.eq.s32.totalorder %s34, 3
      %p134 = por %p132, %p133
      %p136 = scmp.ne.s32.totalorder %s121, %s135
      %p137 = scmp.eq.s32.totalorder %s34, 0
      %p138 = por %p136, %p137
      %s140 = sadd.s32 %s139, 1
      %p143 = scmp.eq.s32.totalorder %s28, 3
      %p144 = scmp.ne.s32.totalorder %s139, %s141
      %p145 = scmp.eq.s32.totalorder %s28, 0
      %p146 = por %p144, %p145
      %p147 = scmp.ne.s32.totalorder %s139, %s141
      %p148 = scmp.eq.s32.totalorder %s33, 3
      %p149 = por %p147, %p148
      %p150 = scmp.ne.s32.totalorder %s141, %s142
      %p151 = scmp.eq.s32.totalorder %s33, 0
      %p152 = por %p150, %p151
      %p153 = scmp.ne.s32.totalorder %s141, %s142
      %p154 = scmp.eq.s32.totalorder %s34, 3
      %p155 = por %p153, %p154
      %p157 = scmp.ne.s32.totalorder %s142, %s156
      %p158 = scmp.eq.s32.totalorder %s34, 0
      %p159 = por %p157, %p158
      %s161 = sadd.s32 %s160, 1
      %p164 = scmp.eq.s32.totalorder %s28, 3
      %p165 = scmp.ne.s32.totalorder %s160, %s162
      %p166 = scmp.eq.s32.totalorder %s28, 0
      %p167 = por %p165, %p166
      %p168 = scmp.ne.s32.totalorder %s160, %s162
      %p169 = scmp.eq.s32.totalorder %s33, 3
      %p170 = por %p168, %p169
      %p171 = scmp.ne.s32.totalorder %s162, %s163
      %p172 = scmp.eq.s32.totalorder %s33, 0
      %p173 = por %p171, %p172
      %p174 = scmp.ne.s32.totalorder %s162, %s163
      %p175 = scmp.eq.s32.totalorder %s34, 3
      %p176 = por %p174, %p175
      %p178 = scmp.ne.s32.totalorder %s163, %s177
      %p179 = scmp.eq.s32.totalorder %s34, 0
      %p180 = por %p178, %p179
      %s182 = sadd.s32 %s181, 1
      %p185 = scmp.eq.s32.totalorder %s28, 3
      %p186 = scmp.ne.s32.totalorder %s181, %s183
      %p187 = scmp.eq.s32.totalorder %s28, 0
      %p188 = por %p186, %p187
      %p189 = scmp.ne.s32.totalorder %s181, %s183
      %p190 = scmp.eq.s32.totalorder %s33, 3
      %p191 = por %p189, %p190
      %p192 = scmp.ne.s32.totalorder %s183, %s184
      %p193 = scmp.eq.s32.totalorder %s33, 0
      %p194 = por %p192, %p193
      %p195 = scmp.ne.s32.totalorder %s183, %s184
      %p196 = scmp.eq.s32.totalorder %s34, 3
      %p197 = por %p195, %p196
      %p199 = scmp.ne.s32.totalorder %s184, %s198
      %p200 = scmp.eq.s32.totalorder %s34, 0
      %p201 = por %p199, %p200
      %s203 = sadd.s32 %s202, 1
      %p206 = scmp.eq.s32.totalorder %s28, 3
      %p207 = scmp.ne.s32.totalorder %s202, %s204
      %p208 = scmp.eq.s32.totalorder %s28, 0
      %p209 = por %p207, %p208
      %p210 = scmp.ne.s32.totalorder %s202, %s204
      %p211 = scmp.eq.s32.totalorder %s33, 3
      %p212 = por %p210, %p211
      %p213 = scmp.ne.s32.totalorder %s204, %s205
      %p214 = scmp.eq.s32.totalorder %s33, 0
      %p215 = por %p213, %p214
      %p216 = scmp.ne.s32.totalorder %s204, %s205
      %p217 = scmp.eq.s32.totalorder %s34, 3
      %p218 = por %p216, %p217
      %p220 = scmp.ne.s32.totalorder %s205, %s219
      %p221 = scmp.eq.s32.totalorder %s34, 0
      %p222 = por %p220, %p221
      %s224 = sadd.s32 %s223, 1
      %p227 = scmp.eq.s32.totalorder %s28, 3
      %p228 = scmp.ne.s32.totalorder %s223, %s225
      %p229 = scmp.eq.s32.totalorder %s28, 0
      %p230 = por %p228, %p229
      %p231 = scmp.ne.s32.totalorder %s223, %s225
      %p232 = scmp.eq.s32.totalorder %s33, 3
      %p233 = por %p231, %p232
      %p234 = scmp.ne.s32.totalorder %s225, %s226
      %p235 = scmp.eq.s32.totalorder %s33, 0
      %p236 = por %p234, %p235
      %p237 = scmp.ne.s32.totalorder %s225, %s226
      %p238 = scmp.eq.s32.totalorder %s34, 3
      %p239 = por %p237, %p238
      %p241 = scmp.ne.s32.totalorder %s226, %s240
      %p242 = scmp.eq.s32.totalorder %s34, 0
      %p243 = por %p241, %p242
      %s245 = sadd.s32 %s244, 1
      %p248 = scmp.eq.s32.totalorder %s28, 3
      %p249 = scmp.ne.s32.totalorder %s244, %s246
      %p250 = scmp.eq.s32.totalorder %s28, 0
      %p251 = por %p249, %p250
      %p252 = scmp.ne.s32.totalorder %s244, %s246
      %p253 = scmp.eq.s32.totalorder %s33, 3
      %p254 = por %p252, %p253
      %p255 = scmp.ne.s32.totalorder %s246, %s247
      %p256 = scmp.eq.s32.totalorder %s33, 0
      %p257 = por %p255, %p256
      %p258 = scmp.ne.s32.totalorder %s246, %s247
      %p259 = scmp.eq.s32.totalorder %s34, 3
      %p260 = por %p258, %p259
      %p262 = scmp.ne.s32.totalorder %s247, %s261
      %p263 = scmp.eq.s32.totalorder %s34, 0
      %p264 = por %p262, %p263
      %s266 = sadd.s32 %s265, 1
      %p269 = scmp.eq.s32.totalorder %s28, 3
      %p270 = scmp.ne.s32.totalorder %s265, %s267
      %p271 = scmp.eq.s32.totalorder %s28, 0
      %p272 = por %p270, %p271
      %p273 = scmp.ne.s32.totalorder %s265, %s267
      %p274 = scmp.eq.s32.totalorder %s33, 3
      %p275 = por %p273, %p274
      %p276 = scmp.ne.s32.totalorder %s267, %s268
      %p277 = scmp.eq.s32.totalorder %s33, 0
      %p278 = por %p276, %p277
      %p279 = scmp.ne.s32.totalorder %s267, %s268
      %p280 = scmp.eq.s32.totalorder %s34, 3
      %p281 = por %p279, %p280
      %p283 = scmp.ne.s32.totalorder %s268, %s282
      %p284 = scmp.eq.s32.totalorder %s34, 0
      %p285 = por %p283, %p284
      %s287 = sadd.s32 %s286, 1
      %p290 = scmp.eq.s32.totalorder %s28, 3
      %p291 = scmp.ne.s32.totalorder %s286, %s288
      %p292 = scmp.eq.s32.totalorder %s28, 0
      %p293 = por %p291, %p292
      %p294 = scmp.ne.s32.totalorder %s286, %s288
      %p295 = scmp.eq.s32.totalorder %s33, 3
      %p296 = por %p294, %p295
      %p297 = scmp.ne.s32.totalorder %s288, %s289
      %p298 = scmp.eq.s32.totalorder %s33, 0
      %p299 = por %p297, %p298
      %p300 = scmp.ne.s32.totalorder %s288, %s289
      %p301 = scmp.eq.s32.totalorder %s34, 3
      %p302 = por %p300, %p301
      %p304 = scmp.ne.s32.totalorder %s289, %s303
      %p305 = scmp.eq.s32.totalorder %s34, 0
      %p306 = por %p304, %p305
      %s308 = sadd.s32 %s307, 1
      %p311 = scmp.eq.s32.totalorder %s28, 3
      %p312 = scmp.ne.s32.totalorder %s307, %s309
      %p313 = scmp.eq.s32.totalorder %s28, 0
      %p314 = por %p312, %p313
      %p315 = scmp.ne.s32.totalorder %s307, %s309
      %p316 = scmp.eq.s32.totalorder %s33, 3
      %p317 = por %p315, %p316
      %p318 = scmp.ne.s32.totalorder %s309, %s310
      %p319 = scmp.eq.s32.totalorder %s33, 0
      %p320 = por %p318, %p319
      %p321 = scmp.ne.s32.totalorder %s309, %s310
      %p322 = scmp.eq.s32.totalorder %s34, 3
      %p323 = por %p321, %p322
      %p325 = scmp.ne.s32.totalorder %s310, %s324
      %p326 = scmp.eq.s32.totalorder %s34, 0
      %p327 = por %p325, %p326
      %s329 = sadd.s32 %s328, 1
      %p332 = scmp.eq.s32.totalorder %s28, 3
      %p333 = scmp.ne.s32.totalorder %s328, %s330
      %p334 = scmp.eq.s32.totalorder %s28, 0
      %p335 = por %p333, %p334
      %p336 = scmp.ne.s32.totalorder %s328, %s330
      %p337 = scmp.eq.s32.totalorder %s33, 3
      %p338 = por %p336, %p337
      %p339 = scmp.ne.s32.totalorder %s330, %s331
      %p340 = scmp.eq.s32.totalorder %s33, 0
      %p341 = por %p339, %p340
      %p342 = scmp.ne.s32.totalorder %s330, %s331
      %p343 = scmp.eq.s32.totalorder %s34, 3
      %p344 = por %p342, %p343
      %p346 = scmp.ne.s32.totalorder %s331, %s345
      %p347 = scmp.eq.s32.totalorder %s34, 0
      %p348 = por %p346, %p347
      %s350 = sadd.s32 %s349, 1
      %p353 = scmp.eq.s32.totalorder %s28, 3
      %p354 = scmp.ne.s32.totalorder %s349, %s351
      %p355 = scmp.eq.s32.totalorder %s28, 0
      %p356 = por %p354, %p355
      %p357 = scmp.ne.s32.totalorder %s349, %s351
      %p358 = scmp.eq.s32.totalorder %s33, 3
      %p359 = por %p357, %p358
      %p360 = scmp.ne.s32.totalorder %s351, %s352
      %p361 = scmp.eq.s32.totalorder %s33, 0
      %p362 = por %p360, %p361
      %p363 = scmp.ne.s32.totalorder %s351, %s352
      %p364 = scmp.eq.s32.totalorder %s34, 3
      %p365 = por %p363, %p364
      %p367 = scmp.ne.s32.totalorder %s352, %s366
      %p368 = scmp.eq.s32.totalorder %s34, 0
      %p369 = por %p367, %p368
      %s371 = sadd.s32 %s370, 1
      %p374 = scmp.eq.s32.totalorder %s28, 3
      %p375 = scmp.ne.s32.totalorder %s370, %s372
      %p376 = scmp.eq.s32.totalorder %s28, 0
      %p377 = por %p375, %p376
      %p378 = scmp.ne.s32.totalorder %s370, %s372
      %p379 = scmp.eq.s32.totalorder %s33, 3
      %p380 = por %p378, %p379
      %p381 = scmp.ne.s32.totalorder %s372, %s373
      %p382 = scmp.eq.s32.totalorder %s33, 0
      %p383 = por %p381, %p382
      %p384 = scmp.ne.s32.totalorder %s372, %s373
      %p385 = scmp.eq.s32.totalorder %s34, 3
      %p386 = por %p384, %p385
      %p388 = scmp.ne.s32.totalorder %s373, %s387
      %p389 = scmp.eq.s32.totalorder %s34, 0
      %p390 = por %p388, %p389
      %s392 = sadd.s32 %s391, 1
      %p395 = scmp.eq.s32.totalorder %s28, 3
      %p396 = scmp.ne.s32.totalorder %s391, %s393
      %p397 = scmp.eq.s32.totalorder %s28, 0
      %p398 = por %p396, %p397
      %p399 = scmp.ne.s32.totalorder %s391, %s393
      %p400 = scmp.eq.s32.totalorder %s33, 3
      %p401 = por %p399, %p400
      %p402 = scmp.ne.s32.totalorder %s393, %s394
      %p403 = scmp.eq.s32.totalorder %s33, 0
      %p404 = por %p402, %p403
      %p405 = scmp.ne.s32.totalorder %s393, %s394
      %p406 = scmp.eq.s32.totalorder %s34, 3
      %p407 = por %p405, %p406
      %p409 = scmp.ne.s32.totalorder %s394, %s408
      %p410 = scmp.eq.s32.totalorder %s34, 0
      %p411 = por %p409, %p410
      %s413 = sadd.s32 %s412, 1
      %p416 = scmp.eq.s32.totalorder %s28, 3
      %p417 = scmp.ne.s32.totalorder %s412, %s414
      %p418 = scmp.eq.s32.totalorder %s28, 0
      %p419 = por %p417, %p418
      %p420 = scmp.ne.s32.totalorder %s412, %s414
      %p421 = scmp.eq.s32.totalorder %s33, 3
      %p422 = por %p420, %p421
      %p423 = scmp.ne.s32.totalorder %s414, %s415
      %p424 = scmp.eq.s32.totalorder %s33, 0
      %p425 = por %p423, %p424
      %p426 = scmp.ne.s32.totalorder %s414, %s415
      %p427 = scmp.eq.s32.totalorder %s34, 3
      %p428 = por %p426, %p427
      %p430 = scmp.ne.s32.totalorder %s415, %s429
      %p431 = scmp.eq.s32.totalorder %s34, 0
      %p432 = por %p430, %p431
      %s434 = sadd.s32 %s433, 1
      %p437 = scmp.eq.s32.totalorder %s28, 3
      %p438 = scmp.ne.s32.totalorder %s433, %s435
      %p439 = scmp.eq.s32.totalorder %s28, 0
      %p440 = por %p438, %p439
      %p441 = scmp.ne.s32.totalorder %s433, %s435
      %p442 = scmp.eq.s32.totalorder %s33, 3
      %p443 = por %p441, %p442
      %p444 = scmp.ne.s32.totalorder %s435, %s436
      %p445 = scmp.eq.s32.totalorder %s33, 0
      %p446 = por %p444, %p445
      %p447 = scmp.ne.s32.totalorder %s435, %s436
      %p448 = scmp.eq.s32.totalorder %s34, 3
      %p449 = por %p447, %p448
      %p451 = scmp.ne.s32.totalorder %s436, %s450
      %p452 = scmp.eq.s32.totalorder %s34, 0
      %p453 = por %p451, %p452
      %s454 = ssub.s32 %s35, %s47
      %s455 = ssub.s32 %s36, %s43
      %s456 = sor.u32 %s454, %s455
      %p457 = scmp.eq.s32.totalorder %s456, 0
      %s459 = sadd.s32 %s458, 1
      %s460 = scalar_select %p457, %s458, %s459
      %p463 = pneg %p457
      %p464 = scmp.eq.s32.totalorder %s28, 3
      %p465 = por %p463, %p464
      %p466 = scmp.ne.s32.totalorder %s458, %s461
      %p467 = scmp.eq.s32.totalorder %s28, 0
      %p468 = por %p466, %p467
      %p469 = scmp.ne.s32.totalorder %s458, %s461
      %p470 = scmp.eq.s32.totalorder %s33, 3
      %p471 = por %p469, %p470
      %p472 = scmp.ne.s32.totalorder %s461, %s462
      %p473 = scmp.eq.s32.totalorder %s33, 0
      %p474 = por %p472, %p473
      %p475 = scmp.ne.s32.totalorder %s461, %s462
      %p476 = scmp.eq.s32.totalorder %s34, 3
      %p477 = por %p475, %p476
      %p479 = scmp.ne.s32.totalorder %s462, %s478
      %p480 = scmp.eq.s32.totalorder %s34, 0
      %p481 = por %p479, %p480
      %p482 = scmp.le.s32.totalorder 1, %s28
      %p483 = scmp.lt.s32.totalorder %s28, 5
      %p484 = pnand %p482, %p483
      %p485 = pneg %p484
      // Predicated region
      $region9: #{tpu_custom_call.1} parent=5 // pred_check
        _
      $region10: #{tpu_custom_call.1} parent=5 // pred_check_branch
        %487 = sbr.rel (%p484) target = $region12
      $region11: #{tpu_custom_call.1} parent=5 // pred_region
        %s488 = ssub.s32 %s28, 1
        // Predicated region
        $region13: #{tpu_custom_call.1} parent=11 // pred_check
          %p489 = pneg %p89
        $region14: #{tpu_custom_call.1} parent=11 // pred_check_branch
          %491 = sbr.rel (%p489) target = $region16
        $region15: #{tpu_custom_call.1} parent=11 // pred_region
          _
        $region16: #{tpu_custom_call.1} parent=11 // pred_fallthru
          _
        // Predicated region
        $region17: #{tpu_custom_call.1} parent=11 // pred_check
          %p492 = pneg %p110
        $region18: #{tpu_custom_call.1} parent=11 // pred_check_branch
          %494 = sbr.rel (%p492) target = $region20
        $region19: #{tpu_custom_call.1} parent=11 // pred_region
          _
        $region20: #{tpu_custom_call.1} parent=11 // pred_fallthru
          _
        // Predicated region
        $region21: #{tpu_custom_call.1} parent=11 // pred_check
          %p495 = pneg %p131
        $region22: #{tpu_custom_call.1} parent=11 // pred_check_branch
          %497 = sbr.rel (%p495) target = $region24
        $region23: #{tpu_custom_call.1} parent=11 // pred_region
          _
        $region24: #{tpu_custom_call.1} parent=11 // pred_fallthru
          _
        // Predicated region
        $region25: #{tpu_custom_call.1} parent=11 // pred_check
          %p498 = pneg %p152
        $region26: #{tpu_custom_call.1} parent=11 // pred_check_branch
          %500 = sbr.rel (%p498) target = $region28
        $region27: #{tpu_custom_call.1} parent=11 // pred_region
          _
        $region28: #{tpu_custom_call.1} parent=11 // pred_fallthru
          _
        // Predicated region
        $region29: #{tpu_custom_call.1} parent=11 // pred_check
          %p501 = pneg %p173
        $region30: #{tpu_custom_call.1} parent=11 // pred_check_branch
          %503 = sbr.rel (%p501) target = $region32
        $region31: #{tpu_custom_call.1} parent=11 // pred_region
          _
        $region32: #{tpu_custom_call.1} parent=11 // pred_fallthru
          _
        // Predicated region
        $region33: #{tpu_custom_call.1} parent=11 // pred_check
          %p504 = pneg %p194
        $region34: #{tpu_custom_call.1} parent=11 // pred_check_branch
          %506 = sbr.rel (%p504) target = $region36
        $region35: #{tpu_custom_call.1} parent=11 // pred_region
          _
        $region36: #{tpu_custom_call.1} parent=11 // pred_fallthru
          _
        // Predicated region
        $region37: #{tpu_custom_call.1} parent=11 // pred_check
          %p507 = pneg %p215
        $region38: #{tpu_custom_call.1} parent=11 // pred_check_branch
          %509 = sbr.rel (%p507) target = $region40
        $region39: #{tpu_custom_call.1} parent=11 // pred_region
          _
        $region40: #{tpu_custom_call.1} parent=11 // pred_fallthru
          _
        // Predicated region
        $region41: #{tpu_custom_call.1} parent=11 // pred_check
          %p510 = pneg %p236
        $region42: #{tpu_custom_call.1} parent=11 // pred_check_branch
          %512 = sbr.rel (%p510) target = $region44
        $region43: #{tpu_custom_call.1} parent=11 // pred_region
          _
        $region44: #{tpu_custom_call.1} parent=11 // pred_fallthru
          _
        // Predicated region
        $region45: #{tpu_custom_call.1} parent=11 // pred_check
          %p513 = pneg %p257
        $region46: #{tpu_custom_call.1} parent=11 // pred_check_branch
          %515 = sbr.rel (%p513) target = $region48
        $region47: #{tpu_custom_call.1} parent=11 // pred_region
          _
        $region48: #{tpu_custom_call.1} parent=11 // pred_fallthru
          _
        // Predicated region
        $region49: #{tpu_custom_call.1} parent=11 // pred_check
          %p516 = pneg %p278
        $region50: #{tpu_custom_call.1} parent=11 // pred_check_branch
          %518 = sbr.rel (%p516) target = $region52
        $region51: #{tpu_custom_call.1} parent=11 // pred_region
          _
        $region52: #{tpu_custom_call.1} parent=11 // pred_fallthru
          _
        // Predicated region
        $region53: #{tpu_custom_call.1} parent=11 // pred_check
          %p519 = pneg %p299
        $region54: #{tpu_custom_call.1} parent=11 // pred_check_branch
          %521 = sbr.rel (%p519) target = $region56
        $region55: #{tpu_custom_call.1} parent=11 // pred_region
          _
        $region56: #{tpu_custom_call.1} parent=11 // pred_fallthru
          _
        // Predicated region
        $region57: #{tpu_custom_call.1} parent=11 // pred_check
          %p522 = pneg %p320
        $region58: #{tpu_custom_call.1} parent=11 // pred_check_branch
          %524 = sbr.rel (%p522) target = $region60
        $region59: #{tpu_custom_call.1} parent=11 // pred_region
          _
        $region60: #{tpu_custom_call.1} parent=11 // pred_fallthru
          _
        // Predicated region
        $region61: #{tpu_custom_call.1} parent=11 // pred_check
          %p525 = pneg %p341
        $region62: #{tpu_custom_call.1} parent=11 // pred_check_branch
          %527 = sbr.rel (%p525) target = $region64
        $region63: #{tpu_custom_call.1} parent=11 // pred_region
          _
        $region64: #{tpu_custom_call.1} parent=11 // pred_fallthru
          _
        // Predicated region
        $region65: #{tpu_custom_call.1} parent=11 // pred_check
          %p528 = pneg %p362
        $region66: #{tpu_custom_call.1} parent=11 // pred_check_branch
          %530 = sbr.rel (%p528) target = $region68
        $region67: #{tpu_custom_call.1} parent=11 // pred_region
          _
        $region68: #{tpu_custom_call.1} parent=11 // pred_fallthru
          _
        // Predicated region
        $region69: #{tpu_custom_call.1} parent=11 // pred_check
          %p531 = pneg %p383
        $region70: #{tpu_custom_call.1} parent=11 // pred_check_branch
          %533 = sbr.rel (%p531) target = $region72
        $region71: #{tpu_custom_call.1} parent=11 // pred_region
          _
        $region72: #{tpu_custom_call.1} parent=11 // pred_fallthru
          _
        // Predicated region
        $region73: #{tpu_custom_call.1} parent=11 // pred_check
          %p534 = pneg %p404
        $region74: #{tpu_custom_call.1} parent=11 // pred_check_branch
          %536 = sbr.rel (%p534) target = $region76
        $region75: #{tpu_custom_call.1} parent=11 // pred_region
          _
        $region76: #{tpu_custom_call.1} parent=11 // pred_fallthru
          _
        // Predicated region
        $region77: #{tpu_custom_call.1} parent=11 // pred_check
          %p537 = pneg %p425
        $region78: #{tpu_custom_call.1} parent=11 // pred_check_branch
          %539 = sbr.rel (%p537) target = $region80
        $region79: #{tpu_custom_call.1} parent=11 // pred_region
          _
        $region80: #{tpu_custom_call.1} parent=11 // pred_fallthru
          _
        // Predicated region
        $region81: #{tpu_custom_call.1} parent=11 // pred_check
          %p540 = pneg %p446
        $region82: #{tpu_custom_call.1} parent=11 // pred_check_branch
          %542 = sbr.rel (%p540) target = $region84
        $region83: #{tpu_custom_call.1} parent=11 // pred_region
          _
        $region84: #{tpu_custom_call.1} parent=11 // pred_fallthru
          _
      $region12: #{tpu_custom_call.1} parent=5 // pred_fallthru
        _
      %p543 = scmp.lt.s32.totalorder %s28, 4
      // Predicated region
      $region85: #{tpu_custom_call.1} parent=5 // pred_check
        %p544 = pneg %p543
      $region86: #{tpu_custom_call.1} parent=5 // pred_check_branch
        %546 = sbr.rel (%p544) target = $region88
      $region87: #{tpu_custom_call.1} parent=5 // pred_region
        // Predicated region
        $region89: #{tpu_custom_call.1} parent=87 // pred_check
          %p547 = pneg %p62
        $region90: #{tpu_custom_call.1} parent=87 // pred_check_branch
          %549 = sbr.rel (%p547) target = $region92
        $region91: #{tpu_custom_call.1} parent=87 // pred_region
          %s550 = sand.u32 %s52, 1
          %s551 = sand.u32 %s52, 1
          %s552 = smul.addr %s551, 16
          %s553 = scalar_lea.vmem [#allocation2], %s552
          %s554 = smul.addr %s35, 8
          %s555 = sadd.s32 %s36, %s554
          %s556 = smul.addr %s555, 4
          %s557 = scalar_lea.vmem %s0, %s556
          // Predicated region
          $region93: #{tpu_custom_call.1} parent=91 // pred_check
            _
          $region94: #{tpu_custom_call.1} parent=91 // pred_check_branch
            %559 = sbr.rel (0) target = $region96
          $region95: #{tpu_custom_call.1} parent=91 // pred_region
            // Predicated region
            $region97: #{tpu_custom_call.1} parent=95 // pred_check
              _
            $region98: #{tpu_custom_call.1} parent=95 // pred_check_branch
              %561 = sbr.rel target = $region100
            $region99: #{tpu_custom_call.1} parent=95 // pred_region
              // Predicated region
              $region112: #{tpu_custom_call.1} parent=99 // pred_check
                _
              $region113: #{tpu_custom_call.1} parent=99 // pred_check_branch
                %582 = sbr.rel (0) target = $region115
              $region114: #{tpu_custom_call.1} parent=99 // pred_region
                loop: start=0, step=1, limit=1
                $region116: #{tpu_custom_call.1} parent=114 // loop_pre_header
                  _
                $region117: #{tpu_custom_call.1} parent=114 // loop_header
                  %s584 = sphi 0, %s588
                  %p585 = scmp.ge.s32.totalorder %s584, 1
                  %s589 = sphi %s557, %s557
                  %s590 = sphi %s553, %s553
                $region118: #{tpu_custom_call.1} parent=114 // loop_header_branch
                  %587 = sbr.rel (%p585) target = $region122
                $region119: #{tpu_custom_call.1} parent=114 // loop_body
                  _
                $region120: #{tpu_custom_call.1} parent=114 // loop_footer
                  %s588 = sadd.s32 1, %s584
                $region121: #{tpu_custom_call.1} parent=114 // loop_footer_branch
                  %583 = sbr.rel target = $region117
                $region122: #{tpu_custom_call.1} parent=114 // loop_exit
                  _
                loop: start=0, step=1, limit=1
                $region123: #{tpu_custom_call.1} parent=114 // loop_pre_header
                  _
                $region124: #{tpu_custom_call.1} parent=114 // loop_header
                  %s593 = sphi 0, %s597
                  %p594 = scmp.ge.s32.totalorder %s593, 1
                  %s598 = sphi %s557, %s557
                  %s599 = sphi %s553, %s553
                $region125: #{tpu_custom_call.1} parent=114 // loop_header_branch
                  %596 = sbr.rel (%p594) target = $region129
                $region126: #{tpu_custom_call.1} parent=114 // loop_body
                  %v600 = vld [vmem:[%s598] sm:$0xf]
                  %601 = vst [vmem:[%s599] sm:$0xf] %v600
                  %v602 = vld [vmem:[%s598 + $0x8] sm:$0xf]
                  %603 = vst [vmem:[%s599 + $0x4] sm:$0xf] %v602
                  %v604 = vld [vmem:[%s598 + $0x10] sm:$0xf]
                  %605 = vst [vmem:[%s599 + $0x8] sm:$0xf] %v604
                  %v606 = vld [vmem:[%s598 + $0x18] sm:$0xf]
                  %607 = vst [vmem:[%s599 + $0xc] sm:$0xf] %v606
                $region127: #{tpu_custom_call.1} parent=114 // loop_footer
                  %s597 = sadd.s32 1, %s593
                $region128: #{tpu_custom_call.1} parent=114 // loop_footer_branch
                  %592 = sbr.rel target = $region124
                $region129: #{tpu_custom_call.1} parent=114 // loop_exit
                  _
              $region115: #{tpu_custom_call.1} parent=99 // pred_fallthru
                _
            $region100: #{tpu_custom_call.1} parent=95 // pred_fallthru
              _
            // Predicated region
            $region101: #{tpu_custom_call.1} parent=95 // pred_check
              _
            $region102: #{tpu_custom_call.1} parent=95 // pred_check_branch
              %563 = sbr.rel (0) target = $region104
            $region103: #{tpu_custom_call.1} parent=95 // pred_region
              loop: start=0, step=1, limit=1
              $region105: #{tpu_custom_call.1} parent=103 // loop_pre_header
                _
              $region106: #{tpu_custom_call.1} parent=103 // loop_header
                %s566 = sphi 0, %s570
                %p567 = scmp.ge.s32.totalorder %s566, 1
                %s571 = sphi %s557, %s557
                %s572 = sphi %s553, %s553
              $region107: #{tpu_custom_call.1} parent=103 // loop_header_branch
                %569 = sbr.rel (%p567) target = $region111
              $region108: #{tpu_custom_call.1} parent=103 // loop_body
                %v573 = vld [vmem:[%s571] sm:$0xf]
                %574 = vst [vmem:[%s572] sm:$0xf] %v573
                %v575 = vld [vmem:[%s571 + $0x8] sm:$0xf]
                %576 = vst [vmem:[%s572 + $0x4] sm:$0xf] %v575
                %v577 = vld [vmem:[%s571 + $0x10] sm:$0xf]
                %578 = vst [vmem:[%s572 + $0x8] sm:$0xf] %v577
                %v579 = vld [vmem:[%s571 + $0x18] sm:$0xf]
                %580 = vst [vmem:[%s572 + $0xc] sm:$0xf] %v579
              $region109: #{tpu_custom_call.1} parent=103 // loop_footer
                %s570 = sadd.s32 1, %s566
              $region110: #{tpu_custom_call.1} parent=103 // loop_footer_branch
                %565 = sbr.rel target = $region106
              $region111: #{tpu_custom_call.1} parent=103 // loop_exit
                _
            $region104: #{tpu_custom_call.1} parent=95 // pred_fallthru
              _
          $region96: #{tpu_custom_call.1} parent=91 // pred_fallthru
            _
          %608 = vnop
        $region92: #{tpu_custom_call.1} parent=87 // pred_fallthru
          _
      $region88: #{tpu_custom_call.1} parent=5 // pred_fallthru
        _
      %p609 = scmp.le.s32.totalorder 1, %s28
      %p610 = scmp.lt.s32.totalorder %s28, 5
      %p611 = pnand %p609, %p610
      %p612 = pneg %p611
      // Predicated region
      $region130: #{tpu_custom_call.1} parent=5 // pred_check
        _
      $region131: #{tpu_custom_call.1} parent=5 // pred_check_branch
        %614 = sbr.rel (%p611) target = $region133
      $region132: #{tpu_custom_call.1} parent=5 // pred_region
        %s615 = ssub.s32 %s28, 1
        %s616 = sand.u32 %s55, 1
        %s617 = sand.u32 %s55, 1
        %s618 = smul.addr %s617, 16
        %s619 = scalar_lea.vmem [#allocation2], %s618
        // Predicated region
        $region134: #{tpu_custom_call.1} parent=132 // pred_check
          %p620 = pneg %p68
        $region135: #{tpu_custom_call.1} parent=132 // pred_check_branch
          %622 = sbr.rel (%p620) target = $region137
        $region136: #{tpu_custom_call.1} parent=132 // pred_region
          _
        $region137: #{tpu_custom_call.1} parent=132 // pred_fallthru
          _
        %s623 = sand.u32 %s55, 1
        %s624 = sand.u32 %s55, 1
        %s625 = smul.addr %s624, 16
        %s626 = scalar_lea.vmem [#allocation2], %s625
        %p627 = pneg %p68
        %p628 = pneg %p65
        %p629 = pneg %p89
        %p630 = pneg %p86
        %p631 = pneg %p110
        %p632 = pneg %p107
        %p633 = pneg %p131
        %p634 = pneg %p128
        %p635 = pneg %p152
        %p636 = pneg %p149
        %p637 = pneg %p173
        %p638 = pneg %p170
        %p639 = pneg %p194
        %p640 = pneg %p191
        %p641 = pneg %p215
        %p642 = pneg %p212
        %p643 = pneg %p236
        %p644 = pneg %p233
        %p645 = pneg %p257
        %p646 = pneg %p254
        %p647 = pneg %p278
        %p648 = pneg %p275
        %p649 = pneg %p299
        %p650 = pneg %p296
        %p651 = pneg %p320
        %p652 = pneg %p317
        %p653 = pneg %p341
        %p654 = pneg %p338
        %p655 = pneg %p362
        %p656 = pneg %p359
        %p657 = pneg %p383
        %p658 = pneg %p380
        %p659 = pneg %p404
        %p660 = pneg %p401
        %p661 = pneg %p425
        %p662 = pneg %p422
        %p663 = pneg %p446
        %p664 = pneg %p443
        %p665 = pneg %p474
        %p666 = pneg %p471
        %s667 = sand.u32 %s461, 1
        %s668 = scalar_lea.sflag [#allocation4], %s667
        %s669 = sand.u32 %s461, 1
        %s670 = smul.addr %s669, 128
        %s671 = scalar_lea.vmem [#allocation3], %s670
        %v673 = vld [vmem:[%s619] sm:$0xf]
        %v674 = vld [vmem:[%s619 + $0x4] sm:$0xf]
        %v675 = vld [vmem:[%s619 + $0x8] sm:$0xf]
        %v676 = vld [vmem:[%s619 + $0xc] sm:$0xf]
        %v677 = vld [vmem:[%s1] sm:$0xf]
        %v678 = vld [vmem:[%s1 + $0x4] sm:$0xf]
        %v679 = vld [vmem:[%s1 + $0x8] sm:$0xf]
        %v680 = vld [vmem:[%s1 + $0xc] sm:$0xf]
        %v681 = vld [vmem:[%s1 + $0x10] sm:$0xf]
        %v682 = vld [vmem:[%s1 + $0x14] sm:$0xf]
        %v683 = vld [vmem:[%s1 + $0x18] sm:$0xf]
        %v684 = vld [vmem:[%s1 + $0x1c] sm:$0xf]
        %v685 = vld [vmem:[%s1 + $0x20] sm:$0xf]
        %v686 = vld [vmem:[%s1 + $0x24] sm:$0xf]
        %v687 = vld [vmem:[%s1 + $0x28] sm:$0xf]
        %v688 = vld [vmem:[%s1 + $0x2c] sm:$0xf]
        %v689 = vld [vmem:[%s1 + $0x30] sm:$0xf]
        %v690 = vld [vmem:[%s1 + $0x34] sm:$0xf]
        %v691 = vld [vmem:[%s1 + $0x38] sm:$0xf]
        %v692 = vld [vmem:[%s1 + $0x3c] sm:$0xf]
        %v693 = vld [vmem:[%s1 + $0x40] sm:$0xf]
        %v694 = vld [vmem:[%s1 + $0x44] sm:$0xf]
        %v695 = vld [vmem:[%s1 + $0x48] sm:$0xf]
        %v696 = vld [vmem:[%s1 + $0x4c] sm:$0xf]
        %v697 = vld [vmem:[%s1 + $0x50] sm:$0xf]
        %v698 = vld [vmem:[%s1 + $0x54] sm:$0xf]
        %v699 = vld [vmem:[%s1 + $0x58] sm:$0xf]
        %v700 = vld [vmem:[%s1 + $0x5c] sm:$0xf]
        %v701 = vld [vmem:[%s1 + $0x60] sm:$0xf]
        %v702 = vld [vmem:[%s1 + $0x64] sm:$0xf]
        %v703 = vld [vmem:[%s1 + $0x68] sm:$0xf]
        %v704 = vld [vmem:[%s1 + $0x6c] sm:$0xf]
        %v705 = vld [vmem:[%s1 + $0x70] sm:$0xf]
        %v706 = vld [vmem:[%s1 + $0x74] sm:$0xf]
        %v707 = vld [vmem:[%s1 + $0x78] sm:$0xf]
        %v708 = vld [vmem:[%s1 + $0x7c] sm:$0xf]
        %v709 = vld [vmem:[%s2] sm:$0xff]
        %v710 = vld [vmem:[%s2 + $0x8] sm:$0xff]
        %v711 = vld [vmem:[%s2 + $0x10] sm:$0xff]
        %v712 = vld [vmem:[%s2 + $0x18] sm:$0xff]
        %v713 = vld [vmem:[%s2 + $0x20] sm:$0xff]
        %v714 = vld [vmem:[%s2 + $0x28] sm:$0xff]
        %v715 = vld [vmem:[%s2 + $0x30] sm:$0xff]
        %v716 = vld [vmem:[%s2 + $0x38] sm:$0xff]
        %v717 = vld [vmem:[%s2 + $0x40] sm:$0xff]
        %v718 = vld [vmem:[%s2 + $0x48] sm:$0xff]
        %v719 = vld [vmem:[%s2 + $0x50] sm:$0xff]
        %v720 = vld [vmem:[%s2 + $0x58] sm:$0xff]
        %v721 = vld [vmem:[%s2 + $0x60] sm:$0xff]
        %v722 = vld [vmem:[%s2 + $0x68] sm:$0xff]
        %v723 = vld [vmem:[%s2 + $0x70] sm:$0xff]
        %v724 = vld [vmem:[%s2 + $0x78] sm:$0xff]
        %v725 = vld [vmem:[%s2 + $0x80] sm:$0xff]
        %v726 = vld [vmem:[%s2 + $0x88] sm:$0xff]
        %v727 = vld [vmem:[%s2 + $0x90] sm:$0xff]
        %v728 = vld [vmem:[%s2 + $0x98] sm:$0xff]
        %v729 = vld [vmem:[%s2 + $0xa0] sm:$0xff]
        %v730 = vld [vmem:[%s2 + $0xa8] sm:$0xff]
        %v731 = vld [vmem:[%s2 + $0xb0] sm:$0xff]
        %v732 = vld [vmem:[%s2 + $0xb8] sm:$0xff]
        %v733 = vld [vmem:[%s2 + $0xc0] sm:$0xff]
        %v734 = vld [vmem:[%s2 + $0xc8] sm:$0xff]
        %v735 = vld [vmem:[%s2 + $0xd0] sm:$0xff]
        %v736 = vld [vmem:[%s2 + $0xd8] sm:$0xff]
        %v737 = vld [vmem:[%s2 + $0xe0] sm:$0xff]
        %v738 = vld [vmem:[%s2 + $0xe8] sm:$0xff]
        %v739 = vld [vmem:[%s2 + $0xf0] sm:$0xff]
        %v740 = vld [vmem:[%s2 + $0xf8] sm:$0xff]
        %742 = vset.pattern.permute.xlu0 0
        %743 = vperm.xlu0 %742, %v709
        %v744 = vpop.permute.xlu0 %743
        %747 = vset.pattern.permute.xlu0 0
        %748 = vperm.xlu0 %747, %v710
        %v749 = vpop.permute.xlu0 %748
        %752 = vset.pattern.permute.xlu0 0
        %753 = vperm.xlu0 %752, %v711
        %v754 = vpop.permute.xlu0 %753
        %757 = vset.pattern.permute.xlu0 0
        %758 = vperm.xlu0 %757, %v712
        %v759 = vpop.permute.xlu0 %758
        %762 = vset.pattern.permute.xlu0 0
        %763 = vperm.xlu0 %762, %v713
        %v764 = vpop.permute.xlu0 %763
        %767 = vset.pattern.permute.xlu0 0
        %768 = vperm.xlu0 %767, %v714
        %v769 = vpop.permute.xlu0 %768
        %772 = vset.pattern.permute.xlu0 0
        %773 = vperm.xlu0 %772, %v715
        %v774 = vpop.permute.xlu0 %773
        %777 = vset.pattern.permute.xlu0 0
        %778 = vperm.xlu0 %777, %v716
        %v779 = vpop.permute.xlu0 %778
        %782 = vset.pattern.permute.xlu0 0
        %783 = vperm.xlu0 %782, %v717
        %v784 = vpop.permute.xlu0 %783
        %787 = vset.pattern.permute.xlu0 0
        %788 = vperm.xlu0 %787, %v718
        %v789 = vpop.permute.xlu0 %788
        %792 = vset.pattern.permute.xlu0 0
        %793 = vperm.xlu0 %792, %v719
        %v794 = vpop.permute.xlu0 %793
        %797 = vset.pattern.permute.xlu0 0
        %798 = vperm.xlu0 %797, %v720
        %v799 = vpop.permute.xlu0 %798
        %802 = vset.pattern.permute.xlu0 0
        %803 = vperm.xlu0 %802, %v721
        %v804 = vpop.permute.xlu0 %803
        %807 = vset.pattern.permute.xlu0 0
        %808 = vperm.xlu0 %807, %v722
        %v809 = vpop.permute.xlu0 %808
        %812 = vset.pattern.permute.xlu0 0
        %813 = vperm.xlu0 %812, %v723
        %v814 = vpop.permute.xlu0 %813
        %817 = vset.pattern.permute.xlu0 0
        %818 = vperm.xlu0 %817, %v724
        %v819 = vpop.permute.xlu0 %818
        %822 = vset.pattern.permute.xlu0 0
        %823 = vperm.xlu0 %822, %v725
        %v824 = vpop.permute.xlu0 %823
        %827 = vset.pattern.permute.xlu0 0
        %828 = vperm.xlu0 %827, %v726
        %v829 = vpop.permute.xlu0 %828
        %832 = vset.pattern.permute.xlu0 0
        %833 = vperm.xlu0 %832, %v727
        %v834 = vpop.permute.xlu0 %833
        %837 = vset.pattern.permute.xlu0 0
        %838 = vperm.xlu0 %837, %v728
        %v839 = vpop.permute.xlu0 %838
        %842 = vset.pattern.permute.xlu0 0
        %843 = vperm.xlu0 %842, %v729
        %v844 = vpop.permute.xlu0 %843
        %847 = vset.pattern.permute.xlu0 0
        %848 = vperm.xlu0 %847, %v730
        %v849 = vpop.permute.xlu0 %848
        %852 = vset.pattern.permute.xlu0 0
        %853 = vperm.xlu0 %852, %v731
        %v854 = vpop.permute.xlu0 %853
        %857 = vset.pattern.permute.xlu0 0
        %858 = vperm.xlu0 %857, %v732
        %v859 = vpop.permute.xlu0 %858
        %862 = vset.pattern.permute.xlu0 0
        %863 = vperm.xlu0 %862, %v733
        %v864 = vpop.permute.xlu0 %863
        %867 = vset.pattern.permute.xlu0 0
        %868 = vperm.xlu0 %867, %v734
        %v869 = vpop.permute.xlu0 %868
        %872 = vset.pattern.permute.xlu0 0
        %873 = vperm.xlu0 %872, %v735
        %v874 = vpop.permute.xlu0 %873
        %877 = vset.pattern.permute.xlu0 0
        %878 = vperm.xlu0 %877, %v736
        %v879 = vpop.permute.xlu0 %878
        %882 = vset.pattern.permute.xlu0 0
        %883 = vperm.xlu0 %882, %v737
        %v884 = vpop.permute.xlu0 %883
        %887 = vset.pattern.permute.xlu0 0
        %888 = vperm.xlu0 %887, %v738
        %v889 = vpop.permute.xlu0 %888
        %892 = vset.pattern.permute.xlu0 0
        %893 = vperm.xlu0 %892, %v739
        %v894 = vpop.permute.xlu0 %893
        %897 = vset.pattern.permute.xlu0 0
        %898 = vperm.xlu0 %897, %v740
        %v899 = vpop.permute.xlu0 %898
        %v933 = vunpack.c.l.b16 %v677
        %v934 = vunpack.c.l.b16 %v678
        %v935 = vunpack.c.l.b16 %v679
        %v936 = vunpack.c.l.b16 %v680
        %v937 = vunpack.c.l.b16 %v681
        %v938 = vunpack.c.l.b16 %v682
        %v939 = vunpack.c.l.b16 %v683
        %v940 = vunpack.c.l.b16 %v684
        %v941 = vunpack.c.l.b16 %v685
        %v942 = vunpack.c.l.b16 %v686
        %v943 = vunpack.c.l.b16 %v687
        %v944 = vunpack.c.l.b16 %v688
        %v945 = vunpack.c.l.b16 %v689
        %v946 = vunpack.c.l.b16 %v690
        %v947 = vunpack.c.l.b16 %v691
        %v948 = vunpack.c.l.b16 %v692
        %v949 = vunpack.c.l.b16 %v693
        %v950 = vunpack.c.l.b16 %v694
        %v951 = vunpack.c.l.b16 %v695
        %v952 = vunpack.c.l.b16 %v696
        %v953 = vunpack.c.l.b16 %v697
        %v954 = vunpack.c.l.b16 %v698
        %v955 = vunpack.c.l.b16 %v699
        %v956 = vunpack.c.l.b16 %v700
        %v957 = vunpack.c.l.b16 %v701
        %v958 = vunpack.c.l.b16 %v702
        %v959 = vunpack.c.l.b16 %v703
        %v960 = vunpack.c.l.b16 %v704
        %v961 = vunpack.c.l.b16 %v705
        %v962 = vunpack.c.l.b16 %v706
        %v963 = vunpack.c.l.b16 %v707
        %v964 = vunpack.c.l.b16 %v708
        %v965 = vpack.c.b16 %v934, %v933
        %v966 = vpack.c.b16 %v936, %v935
        %v967 = vpack.c.b16 %v938, %v937
        %v968 = vpack.c.b16 %v940, %v939
        %v969 = vpack.c.b16 %v942, %v941
        %v970 = vpack.c.b16 %v944, %v943
        %v971 = vpack.c.b16 %v946, %v945
        %v972 = vpack.c.b16 %v948, %v947
        %v973 = vpack.c.b16 %v950, %v949
        %v974 = vpack.c.b16 %v952, %v951
        %v975 = vpack.c.b16 %v954, %v953
        %v976 = vpack.c.b16 %v956, %v955
        %v977 = vpack.c.b16 %v958, %v957
        %v978 = vpack.c.b16 %v960, %v959
        %v979 = vpack.c.b16 %v962, %v961
        %v980 = vpack.c.b16 %v964, %v963
        %v985 = vunpack.c.l.b16 %v673
        %v986 = vunpack.c.l.b16 %v674
        %v987 = vunpack.c.l.b16 %v675
        %v988 = vunpack.c.l.b16 %v676
        %v989 = vpack.c.b16 %v986, %v985
        %v990 = vpack.c.b16 %v988, %v987
        %vm993 = vcmask 261120
        %v995 = vsel %vm993, %v965, 0
        %v998 = vsel %vm993, %v966, 0
        %v1001 = vsel %vm993, %v967, 0
        %v1004 = vsel %vm993, %v968, 0
        %v1007 = vsel %vm993, %v969, 0
        %v1010 = vsel %vm993, %v970, 0
        %v1013 = vsel %vm993, %v971, 0
        %v1016 = vsel %vm993, %v972, 0
        %v1019 = vsel %vm993, %v973, 0
        %v1022 = vsel %vm993, %v974, 0
        %v1025 = vsel %vm993, %v975, 0
        %v1028 = vsel %vm993, %v976, 0
        %v1031 = vsel %vm993, %v977, 0
        %v1034 = vsel %vm993, %v978, 0
        %v1037 = vsel %vm993, %v979, 0
        %v1040 = vsel %vm993, %v980, 0
        %1042 = vmatprep.subr.bf16.mxu0 0
        %1043 = vmatpush1.bf16.msra.mxu0 %v989
        %1044 = vmatprep.subr.bf16.mxu0 0
        %1045 = vmatpush1.bf16.msra.mxu0 %v990
        %1046 = vmatprep.subr.bf16.mxu0 0
        %1047 = vmatpush1.bf16.msra.mxu0 0
        %1048 = vmatprep.subr.bf16.mxu0 0
        %1049 = vmatpush1.bf16.msra.mxu0 0
        %1050 = vmatprep.subr.bf16.mxu0 0
        %1051 = vmatpush1.bf16.msra.mxu0 0
        %1052 = vmatprep.subr.bf16.mxu0 0
        %1053 = vmatpush1.bf16.msra.mxu0 0
        %1054 = vmatprep.subr.bf16.mxu0 0
        %1055 = vmatpush1.bf16.msra.mxu0 0
        %1056 = vmatprep.subr.bf16.mxu0 0
        %1057 = vmatpush1.bf16.msra.mxu0 0
        %1058 = vmatprep.subr.bf16.mxu0 0
        %1059 = vmatpush1.bf16.msra.mxu0 0
        %1060 = vmatprep.subr.bf16.mxu0 0
        %1061 = vmatpush1.bf16.msra.mxu0 0
        %1062 = vmatprep.subr.bf16.mxu0 0
        %1063 = vmatpush1.bf16.msra.mxu0 0
        %1064 = vmatprep.subr.bf16.mxu0 0
        %1065 = vmatpush1.bf16.msra.mxu0 0
        %1066 = vmatprep.subr.bf16.mxu0 0
        %1067 = vmatpush1.bf16.msra.mxu0 0
        %1068 = vmatprep.subr.bf16.mxu0 0
        %1069 = vmatpush1.bf16.msra.mxu0 0
        %1070 = vmatprep.subr.bf16.mxu0 0
        %1071 = vmatpush1.bf16.msra.mxu0 0
        %1072 = vmatprep.subr.bf16.mxu0 0
        %1073 = vmatpush1.bf16.msra.mxu0 0
        %1074 = vmatprep.mubr.bf16.mxu0 0
        %1075 = vmatmul.mubr.bf16.gmra.mrb[0].mxu0 %v995
        %v1076 = vpop.f32.mrb[0].mxu0
        %v1077 = vadd.f32 %v744, %v1076
        %v1078 = vpop.f32.mrb[0].mxu0
        %v1079 = vpop.f32.mrb[0].mxu0
        %v1080 = vadd.f32 %v749, %v1079
        %v1081 = vpop.f32.mrb[0].mxu0
        %1082 = vmatprep.mubr.bf16.mxu0 0
        %1083 = vmatmul.mubr.bf16.gmra.mrb[0].mxu0 %v998
        %v1084 = vpop.f32.mrb[0].mxu0
        %v1085 = vadd.f32 %v754, %v1084
        %v1086 = vpop.f32.mrb[0].mxu0
        %v1087 = vpop.f32.mrb[0].mxu0
        %v1088 = vadd.f32 %v759, %v1087
        %v1089 = vpop.f32.mrb[0].mxu0
        %1090 = vmatprep.mubr.bf16.mxu0 0
        %1091 = vmatmul.mubr.bf16.gmra.mrb[0].mxu0 %v1001
        %v1092 = vpop.f32.mrb[0].mxu0
        %v1093 = vadd.f32 %v764, %v1092
        %v1094 = vpop.f32.mrb[0].mxu0
        %v1095 = vpop.f32.mrb[0].mxu0
        %v1096 = vadd.f32 %v769, %v1095
        %v1097 = vpop.f32.mrb[0].mxu0
        %1098 = vmatprep.mubr.bf16.mxu0 0
        %1099 = vmatmul.mubr.bf16.gmra.mrb[0].mxu0 %v1004
        %v1100 = vpop.f32.mrb[0].mxu0
        %v1101 = vadd.f32 %v774, %v1100
        %v1102 = vpop.f32.mrb[0].mxu0
        %v1103 = vpop.f32.mrb[0].mxu0
        %v1104 = vadd.f32 %v779, %v1103
        %v1105 = vpop.f32.mrb[0].mxu0
        %1106 = vmatprep.mubr.bf16.mxu0 0
        %1107 = vmatmul.mubr.bf16.gmra.mrb[0].mxu0 %v1007
        %v1108 = vpop.f32.mrb[0].mxu0
        %v1109 = vadd.f32 %v784, %v1108
        %v1110 = vpop.f32.mrb[0].mxu0
        %v1111 = vpop.f32.mrb[0].mxu0
        %v1112 = vadd.f32 %v789, %v1111
        %v1113 = vpop.f32.mrb[0].mxu0
        %1114 = vmatprep.mubr.bf16.mxu0 0
        %1115 = vmatmul.mubr.bf16.gmra.mrb[0].mxu0 %v1010
        %v1116 = vpop.f32.mrb[0].mxu0
        %v1117 = vadd.f32 %v794, %v1116
        %v1118 = vpop.f32.mrb[0].mxu0
        %v1119 = vpop.f32.mrb[0].mxu0
        %v1120 = vadd.f32 %v799, %v1119
        %v1121 = vpop.f32.mrb[0].mxu0
        %1122 = vmatprep.mubr.bf16.mxu0 0
        %1123 = vmatmul.mubr.bf16.gmra.mrb[0].mxu0 %v1013
        %v1124 = vpop.f32.mrb[0].mxu0
        %v1125 = vadd.f32 %v804, %v1124
        %v1126 = vpop.f32.mrb[0].mxu0
        %v1127 = vpop.f32.mrb[0].mxu0
        %v1128 = vadd.f32 %v809, %v1127
        %v1129 = vpop.f32.mrb[0].mxu0
        %1130 = vmatprep.mubr.bf16.mxu0 0
        %1131 = vmatmul.mubr.bf16.gmra.mrb[0].mxu0 %v1016
        %v1132 = vpop.f32.mrb[0].mxu0
        %v1133 = vadd.f32 %v814, %v1132
        %v1134 = vpop.f32.mrb[0].mxu0
        %v1135 = vpop.f32.mrb[0].mxu0
        %v1136 = vadd.f32 %v819, %v1135
        %v1137 = vpop.f32.mrb[0].mxu0
        %1138 = vmatprep.mubr.bf16.mxu0 0
        %1139 = vmatmul.mubr.bf16.gmra.mrb[0].mxu0 %v1019
        %v1140 = vpop.f32.mrb[0].mxu0
        %v1141 = vadd.f32 %v824, %v1140
        %v1142 = vpop.f32.mrb[0].mxu0
        %v1143 = vpop.f32.mrb[0].mxu0
        %v1144 = vadd.f32 %v829, %v1143
        %v1145 = vpop.f32.mrb[0].mxu0
        %1146 = vmatprep.mubr.bf16.mxu0 0
        %1147 = vmatmul.mubr.bf16.gmra.mrb[0].mxu0 %v1022
        %v1148 = vpop.f32.mrb[0].mxu0
        %v1149 = vadd.f32 %v834, %v1148
        %v1150 = vpop.f32.mrb[0].mxu0
        %v1151 = vpop.f32.mrb[0].mxu0
        %v1152 = vadd.f32 %v839, %v1151
        %v1153 = vpop.f32.mrb[0].mxu0
        %1154 = vmatprep.mubr.bf16.mxu0 0
        %1155 = vmatmul.mubr.bf16.gmra.mrb[0].mxu0 %v1025
        %v1156 = vpop.f32.mrb[0].mxu0
        %v1157 = vadd.f32 %v844, %v1156
        %v1158 = vpop.f32.mrb[0].mxu0
        %v1159 = vpop.f32.mrb[0].mxu0
        %v1160 = vadd.f32 %v849, %v1159
        %v1161 = vpop.f32.mrb[0].mxu0
        %1162 = vmatprep.mubr.bf16.mxu0 0
        %1163 = vmatmul.mubr.bf16.gmra.mrb[0].mxu0 %v1028
        %v1164 = vpop.f32.mrb[0].mxu0
        %v1165 = vadd.f32 %v854, %v1164
        %v1166 = vpop.f32.mrb[0].mxu0
        %v1167 = vpop.f32.mrb[0].mxu0
        %v1168 = vadd.f32 %v859, %v1167
        %v1169 = vpop.f32.mrb[0].mxu0
        %1170 = vmatprep.mubr.bf16.mxu0 0
        %1171 = vmatmul.mubr.bf16.gmra.mrb[0].mxu0 %v1031
        %v1172 = vpop.f32.mrb[0].mxu0
        %v1173 = vadd.f32 %v864, %v1172
        %v1174 = vpop.f32.mrb[0].mxu0
        %v1175 = vpop.f32.mrb[0].mxu0
        %v1176 = vadd.f32 %v869, %v1175
        %v1177 = vpop.f32.mrb[0].mxu0
        %1178 = vmatprep.mubr.bf16.mxu0 0
        %1179 = vmatmul.mubr.bf16.gmra.mrb[0].mxu0 %v1034
        %v1180 = vpop.f32.mrb[0].mxu0
        %v1181 = vadd.f32 %v874, %v1180
        %v1182 = vpop.f32.mrb[0].mxu0
        %v1183 = vpop.f32.mrb[0].mxu0
        %v1184 = vadd.f32 %v879, %v1183
        %v1185 = vpop.f32.mrb[0].mxu0
        %1186 = vmatprep.mubr.bf16.mxu0 0
        %1187 = vmatmul.mubr.bf16.gmra.mrb[0].mxu0 %v1037
        %v1188 = vpop.f32.mrb[0].mxu0
        %v1189 = vadd.f32 %v884, %v1188
        %v1190 = vpop.f32.mrb[0].mxu0
        %v1191 = vpop.f32.mrb[0].mxu0
        %v1192 = vadd.f32 %v889, %v1191
        %v1193 = vpop.f32.mrb[0].mxu0
        %1194 = vmatprep.mubr.bf16.mxu0 0
        %1195 = vmatmul.mubr.bf16.gmra.mrb[0].mxu0 %v1040
        %v1196 = vpop.f32.mrb[0].mxu0
        %v1197 = vadd.f32 %v894, %v1196
        %v1198 = vpop.f32.mrb[0].mxu0
        %v1199 = vpop.f32.mrb[0].mxu0
        %v1200 = vadd.f32 %v899, %v1199
        %v1201 = vpop.f32.mrb[0].mxu0
        %1202 = vdwg.mxu0
        %v1203 = vmax.f32 %v1077, 0.0
        %v1204 = vmax.f32 %v1080, 0.0
        %v1205 = vmax.f32 %v1085, 0.0
        %v1206 = vmax.f32 %v1088, 0.0
        %v1207 = vmax.f32 %v1093, 0.0
        %v1208 = vmax.f32 %v1096, 0.0
        %v1209 = vmax.f32 %v1101, 0.0
        %v1210 = vmax.f32 %v1104, 0.0
        %v1211 = vmax.f32 %v1109, 0.0
        %v1212 = vmax.f32 %v1112, 0.0
        %v1213 = vmax.f32 %v1117, 0.0
        %v1214 = vmax.f32 %v1120, 0.0
        %v1215 = vmax.f32 %v1125, 0.0
        %v1216 = vmax.f32 %v1128, 0.0
        %v1217 = vmax.f32 %v1133, 0.0
        %v1218 = vmax.f32 %v1136, 0.0
        %v1219 = vpack.c.bf16 %v1204, %v1203
        %v1220 = vpack.c.bf16 %v1206, %v1205
        %v1221 = vpack.c.bf16 %v1208, %v1207
        %v1222 = vpack.c.bf16 %v1210, %v1209
        %v1223 = vpack.c.bf16 %v1212, %v1211
        %v1224 = vpack.c.bf16 %v1214, %v1213
        %v1225 = vpack.c.bf16 %v1216, %v1215
        %v1226 = vpack.c.bf16 %v1218, %v1217
        %v1227 = vld [vmem:[%s3] sm:$0xf]
        %v1228 = vld [vmem:[%s3 + $0x4] sm:$0xf]
        %v1229 = vld [vmem:[%s3 + $0x8] sm:$0xf]
        %v1230 = vld [vmem:[%s3 + $0xc] sm:$0xf]
        %v1231 = vld [vmem:[%s3 + $0x10] sm:$0xf]
        %v1232 = vld [vmem:[%s3 + $0x14] sm:$0xf]
        %v1233 = vld [vmem:[%s3 + $0x18] sm:$0xf]
        %v1234 = vld [vmem:[%s3 + $0x1c] sm:$0xf]
        %v1235 = vld [vmem:[%s3 + $0x20] sm:$0xf]
        %v1236 = vld [vmem:[%s3 + $0x24] sm:$0xf]
        %v1237 = vld [vmem:[%s3 + $0x28] sm:$0xf]
        %v1238 = vld [vmem:[%s3 + $0x2c] sm:$0xf]
        %v1239 = vld [vmem:[%s3 + $0x30] sm:$0xf]
        %v1240 = vld [vmem:[%s3 + $0x34] sm:$0xf]
        %v1241 = vld [vmem:[%s3 + $0x38] sm:$0xf]
        %v1242 = vld [vmem:[%s3 + $0x3c] sm:$0xf]
        %v1243 = vld [vmem:[%s4] sm:$0xff]
        %v1244 = vld [vmem:[%s4 + $0x8] sm:$0xff]
        %v1245 = vld [vmem:[%s4 + $0x10] sm:$0xff]
        %v1246 = vld [vmem:[%s4 + $0x18] sm:$0xff]
        %v1247 = vld [vmem:[%s4 + $0x20] sm:$0xff]
        %v1248 = vld [vmem:[%s4 + $0x28] sm:$0xff]
        %v1249 = vld [vmem:[%s4 + $0x30] sm:$0xff]
        %v1250 = vld [vmem:[%s4 + $0x38] sm:$0xff]
        %v1251 = vld [vmem:[%s4 + $0x40] sm:$0xff]
        %v1252 = vld [vmem:[%s4 + $0x48] sm:$0xff]
        %v1253 = vld [vmem:[%s4 + $0x50] sm:$0xff]
        %v1254 = vld [vmem:[%s4 + $0x58] sm:$0xff]
        %v1255 = vld [vmem:[%s4 + $0x60] sm:$0xff]
        %v1256 = vld [vmem:[%s4 + $0x68] sm:$0xff]
        %v1257 = vld [vmem:[%s4 + $0x70] sm:$0xff]
        %v1258 = vld [vmem:[%s4 + $0x78] sm:$0xff]
        %1260 = vset.pattern.permute.xlu0 0
        %1261 = vperm.xlu0 %1260, %v1243
        %v1262 = vpop.permute.xlu0 %1261
        %1265 = vset.pattern.permute.xlu0 0
        %1266 = vperm.xlu0 %1265, %v1244
        %v1267 = vpop.permute.xlu0 %1266
        %1270 = vset.pattern.permute.xlu0 0
        %1271 = vperm.xlu0 %1270, %v1245
        %v1272 = vpop.permute.xlu0 %1271
        %1275 = vset.pattern.permute.xlu0 0
        %1276 = vperm.xlu0 %1275, %v1246
        %v1277 = vpop.permute.xlu0 %1276
        %1280 = vset.pattern.permute.xlu0 0
        %1281 = vperm.xlu0 %1280, %v1247
        %v1282 = vpop.permute.xlu0 %1281
        %1285 = vset.pattern.permute.xlu0 0
        %1286 = vperm.xlu0 %1285, %v1248
        %v1287 = vpop.permute.xlu0 %1286
        %1290 = vset.pattern.permute.xlu0 0
        %1291 = vperm.xlu0 %1290, %v1249
        %v1292 = vpop.permute.xlu0 %1291
        %1295 = vset.pattern.permute.xlu0 0
        %1296 = vperm.xlu0 %1295, %v1250
        %v1297 = vpop.permute.xlu0 %1296
        %1300 = vset.pattern.permute.xlu0 0
        %1301 = vperm.xlu0 %1300, %v1251
        %v1302 = vpop.permute.xlu0 %1301
        %1305 = vset.pattern.permute.xlu0 0
        %1306 = vperm.xlu0 %1305, %v1252
        %v1307 = vpop.permute.xlu0 %1306
        %1310 = vset.pattern.permute.xlu0 0
        %1311 = vperm.xlu0 %1310, %v1253
        %v1312 = vpop.permute.xlu0 %1311
        %1315 = vset.pattern.permute.xlu0 0
        %1316 = vperm.xlu0 %1315, %v1254
        %v1317 = vpop.permute.xlu0 %1316
        %1320 = vset.pattern.permute.xlu0 0
        %1321 = vperm.xlu0 %1320, %v1255
        %v1322 = vpop.permute.xlu0 %1321
        %1325 = vset.pattern.permute.xlu0 0
        %1326 = vperm.xlu0 %1325, %v1256
        %v1327 = vpop.permute.xlu0 %1326
        %1330 = vset.pattern.permute.xlu0 0
        %1331 = vperm.xlu0 %1330, %v1257
        %v1332 = vpop.permute.xlu0 %1331
        %1335 = vset.pattern.permute.xlu0 0
        %1336 = vperm.xlu0 %1335, %v1258
        %v1337 = vpop.permute.xlu0 %1336
        %v1355 = vunpack.c.l.b16 %v1227
        %v1356 = vunpack.c.l.b16 %v1228
        %v1357 = vunpack.c.l.b16 %v1229
        %v1358 = vunpack.c.l.b16 %v1230
        %v1359 = vunpack.c.l.b16 %v1231
        %v1360 = vunpack.c.l.b16 %v1232
        %v1361 = vunpack.c.l.b16 %v1233
        %v1362 = vunpack.c.l.b16 %v1234
        %v1363 = vunpack.c.l.b16 %v1235
        %v1364 = vunpack.c.l.b16 %v1236
        %v1365 = vunpack.c.l.b16 %v1237
        %v1366 = vunpack.c.l.b16 %v1238
        %v1367 = vunpack.c.l.b16 %v1239
        %v1368 = vunpack.c.l.b16 %v1240
        %v1369 = vunpack.c.l.b16 %v1241
        %v1370 = vunpack.c.l.b16 %v1242
        %v1371 = vpack.c.b16 %v1356, %v1355
        %v1372 = vpack.c.b16 %v1358, %v1357
        %v1373 = vpack.c.b16 %v1360, %v1359
        %v1374 = vpack.c.b16 %v1362, %v1361
        %v1375 = vpack.c.b16 %v1364, %v1363
        %v1376 = vpack.c.b16 %v1366, %v1365
        %v1377 = vpack.c.b16 %v1368, %v1367
        %v1378 = vpack.c.b16 %v1370, %v1369
        %1387 = vmatprep.subr.bf16.mxu0 0
        %1388 = vmatpush1.bf16.msra.mxu0 %v1219
        %1389 = vmatprep.subr.bf16.mxu0 0
        %1390 = vmatpush1.bf16.msra.mxu0 %v1220
        %1391 = vmatprep.subr.bf16.mxu0 0
        %1392 = vmatpush1.bf16.msra.mxu0 %v1221
        %1393 = vmatprep.subr.bf16.mxu0 0
        %1394 = vmatpush1.bf16.msra.mxu0 %v1222
        %1395 = vmatprep.subr.bf16.mxu0 0
        %1396 = vmatpush1.bf16.msra.mxu0 %v1223
        %1397 = vmatprep.subr.bf16.mxu0 0
        %1398 = vmatpush1.bf16.msra.mxu0 %v1224
        %1399 = vmatprep.subr.bf16.mxu0 0
        %1400 = vmatpush1.bf16.msra.mxu0 %v1225
        %1401 = vmatprep.subr.bf16.mxu0 0
        %1402 = vmatpush1.bf16.msra.mxu0 %v1226
        %1403 = vmatprep.subr.bf16.mxu0 0
        %1404 = vmatpush1.bf16.msra.mxu0 0
        %1405 = vmatprep.subr.bf16.mxu0 0
        %1406 = vmatpush1.bf16.msra.mxu0 0
        %1407 = vmatprep.subr.bf16.mxu0 0
        %1408 = vmatpush1.bf16.msra.mxu0 0
        %1409 = vmatprep.subr.bf16.mxu0 0
        %1410 = vmatpush1.bf16.msra.mxu0 0
        %1411 = vmatprep.subr.bf16.mxu0 0
        %1412 = vmatpush1.bf16.msra.mxu0 0
        %1413 = vmatprep.subr.bf16.mxu0 0
        %1414 = vmatpush1.bf16.msra.mxu0 0
        %1415 = vmatprep.subr.bf16.mxu0 0
        %1416 = vmatpush1.bf16.msra.mxu0 0
        %1417 = vmatprep.subr.bf16.mxu0 0
        %1418 = vmatpush1.bf16.msra.mxu0 0
        %1419 = vmatprep.mubr.bf16.mxu0 0
        %1420 = vmatmul.mubr.bf16.gmra.mrb[0].mxu0 %v1371
        %v1421 = vpop.f32.mrb[0].mxu0
        %v1422 = vadd.f32 %v1262, %v1421
        %v1423 = vpop.f32.mrb[0].mxu0
        %v1424 = vpop.f32.mrb[0].mxu0
        %v1425 = vadd.f32 %v1267, %v1424
        %v1426 = vpop.f32.mrb[0].mxu0
        %1427 = vmatprep.mubr.bf16.mxu0 0
        %1428 = vmatmul.mubr.bf16.gmra.mrb[0].mxu0 %v1372
        %v1429 = vpop.f32.mrb[0].mxu0
        %v1430 = vadd.f32 %v1272, %v1429
        %v1431 = vpop.f32.mrb[0].mxu0
        %v1432 = vpop.f32.mrb[0].mxu0
        %v1433 = vadd.f32 %v1277, %v1432
        %v1434 = vpop.f32.mrb[0].mxu0
        %1435 = vmatprep.mubr.bf16.mxu0 0
        %1436 = vmatmul.mubr.bf16.gmra.mrb[0].mxu0 %v1373
        %v1437 = vpop.f32.mrb[0].mxu0
        %v1438 = vadd.f32 %v1282, %v1437
        %v1439 = vpop.f32.mrb[0].mxu0
        %v1440 = vpop.f32.mrb[0].mxu0
        %v1441 = vadd.f32 %v1287, %v1440
        %v1442 = vpop.f32.mrb[0].mxu0
        %1443 = vmatprep.mubr.bf16.mxu0 0
        %1444 = vmatmul.mubr.bf16.gmra.mrb[0].mxu0 %v1374
        %v1445 = vpop.f32.mrb[0].mxu0
        %v1446 = vadd.f32 %v1292, %v1445
        %v1447 = vpop.f32.mrb[0].mxu0
        %v1448 = vpop.f32.mrb[0].mxu0
        %v1449 = vadd.f32 %v1297, %v1448
        %v1450 = vpop.f32.mrb[0].mxu0
        %1451 = vmatprep.mubr.bf16.mxu0 0
        %1452 = vmatmul.mubr.bf16.gmra.mrb[0].mxu0 %v1375
        %v1453 = vpop.f32.mrb[0].mxu0
        %v1454 = vadd.f32 %v1302, %v1453
        %v1455 = vpop.f32.mrb[0].mxu0
        %v1456 = vpop.f32.mrb[0].mxu0
        %v1457 = vadd.f32 %v1307, %v1456
        %v1458 = vpop.f32.mrb[0].mxu0
        %1459 = vmatprep.mubr.bf16.mxu0 0
        %1460 = vmatmul.mubr.bf16.gmra.mrb[0].mxu0 %v1376
        %v1461 = vpop.f32.mrb[0].mxu0
        %v1462 = vadd.f32 %v1312, %v1461
        %v1463 = vpop.f32.mrb[0].mxu0
        %v1464 = vpop.f32.mrb[0].mxu0
        %v1465 = vadd.f32 %v1317, %v1464
        %v1466 = vpop.f32.mrb[0].mxu0
        %1467 = vmatprep.mubr.bf16.mxu0 0
        %1468 = vmatmul.mubr.bf16.gmra.mrb[0].mxu0 %v1377
        %v1469 = vpop.f32.mrb[0].mxu0
        %v1470 = vadd.f32 %v1322, %v1469
        %v1471 = vpop.f32.mrb[0].mxu0
        %v1472 = vpop.f32.mrb[0].mxu0
        %v1473 = vadd.f32 %v1327, %v1472
        %v1474 = vpop.f32.mrb[0].mxu0
        %1475 = vmatprep.mubr.bf16.mxu0 0
        %1476 = vmatmul.mubr.bf16.gmra.mrb[0].mxu0 %v1378
        %v1477 = vpop.f32.mrb[0].mxu0
        %v1478 = vadd.f32 %v1332, %v1477
        %v1479 = vpop.f32.mrb[0].mxu0
        %v1480 = vpop.f32.mrb[0].mxu0
        %v1481 = vadd.f32 %v1337, %v1480
        %v1482 = vpop.f32.mrb[0].mxu0
        %1483 = vdwg.mxu0
        %v1484 = vmax.f32 %v1422, 0.0
        %v1485 = vmax.f32 %v1425, 0.0
        %v1486 = vmax.f32 %v1430, 0.0
        %v1487 = vmax.f32 %v1433, 0.0
        %v1488 = vmax.f32 %v1438, 0.0
        %v1489 = vmax.f32 %v1441, 0.0
        %v1490 = vmax.f32 %v1446, 0.0
        %v1491 = vmax.f32 %v1449, 0.0
        %v1492 = vmax.f32 %v1454, 0.0
        %v1493 = vmax.f32 %v1457, 0.0
        %v1494 = vmax.f32 %v1462, 0.0
        %v1495 = vmax.f32 %v1465, 0.0
        %v1496 = vmax.f32 %v1470, 0.0
        %v1497 = vmax.f32 %v1473, 0.0
        %v1498 = vmax.f32 %v1478, 0.0
        %v1499 = vmax.f32 %v1481, 0.0
        %v1500 = vpack.c.bf16 %v1485, %v1484
        %v1501 = vpack.c.bf16 %v1487, %v1486
        %v1502 = vpack.c.bf16 %v1489, %v1488
        %v1503 = vpack.c.bf16 %v1491, %v1490
        %v1504 = vpack.c.bf16 %v1493, %v1492
        %v1505 = vpack.c.bf16 %v1495, %v1494
        %v1506 = vpack.c.bf16 %v1497, %v1496
        %v1507 = vpack.c.bf16 %v1499, %v1498
        %v1508 = vld [vmem:[%s5] sm:$0xf]
        %v1509 = vld [vmem:[%s5 + $0x4] sm:$0xf]
        %v1510 = vld [vmem:[%s5 + $0x8] sm:$0xf]
        %v1511 = vld [vmem:[%s5 + $0xc] sm:$0xf]
        %v1512 = vld [vmem:[%s5 + $0x10] sm:$0xf]
        %v1513 = vld [vmem:[%s5 + $0x14] sm:$0xf]
        %v1514 = vld [vmem:[%s5 + $0x18] sm:$0xf]
        %v1515 = vld [vmem:[%s5 + $0x1c] sm:$0xf]
        %v1516 = vld [vmem:[%s5 + $0x20] sm:$0xf]
        %v1517 = vld [vmem:[%s5 + $0x24] sm:$0xf]
        %v1518 = vld [vmem:[%s5 + $0x28] sm:$0xf]
        %v1519 = vld [vmem:[%s5 + $0x2c] sm:$0xf]
        %v1520 = vld [vmem:[%s5 + $0x30] sm:$0xf]
        %v1521 = vld [vmem:[%s5 + $0x34] sm:$0xf]
        %v1522 = vld [vmem:[%s5 + $0x38] sm:$0xf]
        %v1523 = vld [vmem:[%s5 + $0x3c] sm:$0xf]
        %v1524 = vld [vmem:[%s6] sm:$0xff]
        %v1525 = vld [vmem:[%s6 + $0x8] sm:$0xff]
        %v1526 = vld [vmem:[%s6 + $0x10] sm:$0xff]
        %v1527 = vld [vmem:[%s6 + $0x18] sm:$0xff]
        %v1528 = vld [vmem:[%s6 + $0x20] sm:$0xff]
        %v1529 = vld [vmem:[%s6 + $0x28] sm:$0xff]
        %v1530 = vld [vmem:[%s6 + $0x30] sm:$0xff]
        %v1531 = vld [vmem:[%s6 + $0x38] sm:$0xff]
        %v1532 = vld [vmem:[%s6 + $0x40] sm:$0xff]
        %v1533 = vld [vmem:[%s6 + $0x48] sm:$0xff]
        %v1534 = vld [vmem:[%s6 + $0x50] sm:$0xff]
        %v1535 = vld [vmem:[%s6 + $0x58] sm:$0xff]
        %v1536 = vld [vmem:[%s6 + $0x60] sm:$0xff]
        %v1537 = vld [vmem:[%s6 + $0x68] sm:$0xff]
        %v1538 = vld [vmem:[%s6 + $0x70] sm:$0xff]
        %v1539 = vld [vmem:[%s6 + $0x78] sm:$0xff]
        %1541 = vset.pattern.permute.xlu0 0
        %1542 = vperm.xlu0 %1541, %v1524
        %v1543 = vpop.permute.xlu0 %1542
        %1546 = vset.pattern.permute.xlu0 0
        %1547 = vperm.xlu0 %1546, %v1525
        %v1548 = vpop.permute.xlu0 %1547
        %1551 = vset.pattern.permute.xlu0 0
        %1552 = vperm.xlu0 %1551, %v1526
        %v1553 = vpop.permute.xlu0 %1552
        %1556 = vset.pattern.permute.xlu0 0
        %1557 = vperm.xlu0 %1556, %v1527
        %v1558 = vpop.permute.xlu0 %1557
        %1561 = vset.pattern.permute.xlu0 0
        %1562 = vperm.xlu0 %1561, %v1528
        %v1563 = vpop.permute.xlu0 %1562
        %1566 = vset.pattern.permute.xlu0 0
        %1567 = vperm.xlu0 %1566, %v1529
        %v1568 = vpop.permute.xlu0 %1567
        %1571 = vset.pattern.permute.xlu0 0
        %1572 = vperm.xlu0 %1571, %v1530
        %v1573 = vpop.permute.xlu0 %1572
        %1576 = vset.pattern.permute.xlu0 0
        %1577 = vperm.xlu0 %1576, %v1531
        %v1578 = vpop.permute.xlu0 %1577
        %1581 = vset.pattern.permute.xlu0 0
        %1582 = vperm.xlu0 %1581, %v1532
        %v1583 = vpop.permute.xlu0 %1582
        %1586 = vset.pattern.permute.xlu0 0
        %1587 = vperm.xlu0 %1586, %v1533
        %v1588 = vpop.permute.xlu0 %1587
        %1591 = vset.pattern.permute.xlu0 0
        %1592 = vperm.xlu0 %1591, %v1534
        %v1593 = vpop.permute.xlu0 %1592
        %1596 = vset.pattern.permute.xlu0 0
        %1597 = vperm.xlu0 %1596, %v1535
        %v1598 = vpop.permute.xlu0 %1597
        %1601 = vset.pattern.permute.xlu0 0
        %1602 = vperm.xlu0 %1601, %v1536
        %v1603 = vpop.permute.xlu0 %1602
        %1606 = vset.pattern.permute.xlu0 0
        %1607 = vperm.xlu0 %1606, %v1537
        %v1608 = vpop.permute.xlu0 %1607
        %1611 = vset.pattern.permute.xlu0 0
        %1612 = vperm.xlu0 %1611, %v1538
        %v1613 = vpop.permute.xlu0 %1612
        %1616 = vset.pattern.permute.xlu0 0
        %1617 = vperm.xlu0 %1616, %v1539
        %v1618 = vpop.permute.xlu0 %1617
        %v1636 = vunpack.c.l.b16 %v1508
        %v1637 = vunpack.c.l.b16 %v1509
        %v1638 = vunpack.c.l.b16 %v1510
        %v1639 = vunpack.c.l.b16 %v1511
        %v1640 = vunpack.c.l.b16 %v1512
        %v1641 = vunpack.c.l.b16 %v1513
        %v1642 = vunpack.c.l.b16 %v1514
        %v1643 = vunpack.c.l.b16 %v1515
        %v1644 = vunpack.c.l.b16 %v1516
        %v1645 = vunpack.c.l.b16 %v1517
        %v1646 = vunpack.c.l.b16 %v1518
        %v1647 = vunpack.c.l.b16 %v1519
        %v1648 = vunpack.c.l.b16 %v1520
        %v1649 = vunpack.c.l.b16 %v1521
        %v1650 = vunpack.c.l.b16 %v1522
        %v1651 = vunpack.c.l.b16 %v1523
        %v1652 = vpack.c.b16 %v1637, %v1636
        %v1653 = vpack.c.b16 %v1639, %v1638
        %v1654 = vpack.c.b16 %v1641, %v1640
        %v1655 = vpack.c.b16 %v1643, %v1642
        %v1656 = vpack.c.b16 %v1645, %v1644
        %v1657 = vpack.c.b16 %v1647, %v1646
        %v1658 = vpack.c.b16 %v1649, %v1648
        %v1659 = vpack.c.b16 %v1651, %v1650
        %1668 = vmatprep.subr.bf16.mxu0 0
        %1669 = vmatpush1.bf16.msra.mxu0 %v1500
        %1670 = vmatprep.subr.bf16.mxu0 0
        %1671 = vmatpush1.bf16.msra.mxu0 %v1501
        %1672 = vmatprep.subr.bf16.mxu0 0
        %1673 = vmatpush1.bf16.msra.mxu0 %v1502
        %1674 = vmatprep.subr.bf16.mxu0 0
        %1675 = vmatpush1.bf16.msra.mxu0 %v1503
        %1676 = vmatprep.subr.bf16.mxu0 0
        %1677 = vmatpush1.bf16.msra.mxu0 %v1504
        %1678 = vmatprep.subr.bf16.mxu0 0
        %1679 = vmatpush1.bf16.msra.mxu0 %v1505
        %1680 = vmatprep.subr.bf16.mxu0 0
        %1681 = vmatpush1.bf16.msra.mxu0 %v1506
        %1682 = vmatprep.subr.bf16.mxu0 0
        %1683 = vmatpush1.bf16.msra.mxu0 %v1507
        %1684 = vmatprep.subr.bf16.mxu0 0
        %1685 = vmatpush1.bf16.msra.mxu0 0
        %1686 = vmatprep.subr.bf16.mxu0 0
        %1687 = vmatpush1.bf16.msra.mxu0 0
        %1688 = vmatprep.subr.bf16.mxu0 0
        %1689 = vmatpush1.bf16.msra.mxu0 0
        %1690 = vmatprep.subr.bf16.mxu0 0
        %1691 = vmatpush1.bf16.msra.mxu0 0
        %1692 = vmatprep.subr.bf16.mxu0 0
        %1693 = vmatpush1.bf16.msra.mxu0 0
        %1694 = vmatprep.subr.bf16.mxu0 0
        %1695 = vmatpush1.bf16.msra.mxu0 0
        %1696 = vmatprep.subr.bf16.mxu0 0
        %1697 = vmatpush1.bf16.msra.mxu0 0
        %1698 = vmatprep.subr.bf16.mxu0 0
        %1699 = vmatpush1.bf16.msra.mxu0 0
        %1700 = vmatprep.mubr.bf16.mxu0 0
        %1701 = vmatmul.mubr.bf16.gmra.mrb[0].mxu0 %v1652
        %v1702 = vpop.f32.mrb[0].mxu0
        %v1703 = vadd.f32 %v1543, %v1702
        %v1704 = vpop.f32.mrb[0].mxu0
        %v1705 = vpop.f32.mrb[0].mxu0
        %v1706 = vadd.f32 %v1548, %v1705
        %v1707 = vpop.f32.mrb[0].mxu0
        %1708 = vmatprep.mubr.bf16.mxu0 0
        %1709 = vmatmul.mubr.bf16.gmra.mrb[0].mxu0 %v1653
        %v1710 = vpop.f32.mrb[0].mxu0
        %v1711 = vadd.f32 %v1553, %v1710
        %v1712 = vpop.f32.mrb[0].mxu0
        %v1713 = vpop.f32.mrb[0].mxu0
        %v1714 = vadd.f32 %v1558, %v1713
        %v1715 = vpop.f32.mrb[0].mxu0
        %1716 = vmatprep.mubr.bf16.mxu0 0
        %1717 = vmatmul.mubr.bf16.gmra.mrb[0].mxu0 %v1654
        %v1718 = vpop.f32.mrb[0].mxu0
        %v1719 = vadd.f32 %v1563, %v1718
        %v1720 = vpop.f32.mrb[0].mxu0
        %v1721 = vpop.f32.mrb[0].mxu0
        %v1722 = vadd.f32 %v1568, %v1721
        %v1723 = vpop.f32.mrb[0].mxu0
        %1724 = vmatprep.mubr.bf16.mxu0 0
        %1725 = vmatmul.mubr.bf16.gmra.mrb[0].mxu0 %v1655
        %v1726 = vpop.f32.mrb[0].mxu0
        %v1727 = vadd.f32 %v1573, %v1726
        %v1728 = vpop.f32.mrb[0].mxu0
        %v1729 = vpop.f32.mrb[0].mxu0
        %v1730 = vadd.f32 %v1578, %v1729
        %v1731 = vpop.f32.mrb[0].mxu0
        %1732 = vmatprep.mubr.bf16.mxu0 0
        %1733 = vmatmul.mubr.bf16.gmra.mrb[0].mxu0 %v1656
        %v1734 = vpop.f32.mrb[0].mxu0
        %v1735 = vadd.f32 %v1583, %v1734
        %v1736 = vpop.f32.mrb[0].mxu0
        %v1737 = vpop.f32.mrb[0].mxu0
        %v1738 = vadd.f32 %v1588, %v1737
        %v1739 = vpop.f32.mrb[0].mxu0
        %1740 = vmatprep.mubr.bf16.mxu0 0
        %1741 = vmatmul.mubr.bf16.gmra.mrb[0].mxu0 %v1657
        %v1742 = vpop.f32.mrb[0].mxu0
        %v1743 = vadd.f32 %v1593, %v1742
        %v1744 = vpop.f32.mrb[0].mxu0
        %v1745 = vpop.f32.mrb[0].mxu0
        %v1746 = vadd.f32 %v1598, %v1745
        %v1747 = vpop.f32.mrb[0].mxu0
        %1748 = vmatprep.mubr.bf16.mxu0 0
        %1749 = vmatmul.mubr.bf16.gmra.mrb[0].mxu0 %v1658
        %v1750 = vpop.f32.mrb[0].mxu0
        %v1751 = vadd.f32 %v1603, %v1750
        %v1752 = vpop.f32.mrb[0].mxu0
        %v1753 = vpop.f32.mrb[0].mxu0
        %v1754 = vadd.f32 %v1608, %v1753
        %v1755 = vpop.f32.mrb[0].mxu0
        %1756 = vmatprep.mubr.bf16.mxu0 0
        %1757 = vmatmul.mubr.bf16.gmra.mrb[0].mxu0 %v1659
        %v1758 = vpop.f32.mrb[0].mxu0
        %v1759 = vadd.f32 %v1613, %v1758
        %v1760 = vpop.f32.mrb[0].mxu0
        %v1761 = vpop.f32.mrb[0].mxu0
        %v1762 = vadd.f32 %v1618, %v1761
        %v1763 = vpop.f32.mrb[0].mxu0
        %1764 = vdwg.mxu0
        %v1765 = vmax.f32 %v1703, 0.0
        %v1766 = vmax.f32 %v1706, 0.0
        %v1767 = vmax.f32 %v1711, 0.0
        %v1768 = vmax.f32 %v1714, 0.0
        %v1769 = vmax.f32 %v1719, 0.0
        %v1770 = vmax.f32 %v1722, 0.0
        %v1771 = vmax.f32 %v1727, 0.0
        %v1772 = vmax.f32 %v1730, 0.0
        %v1773 = vmax.f32 %v1735, 0.0
        %v1774 = vmax.f32 %v1738, 0.0
        %v1775 = vmax.f32 %v1743, 0.0
        %v1776 = vmax.f32 %v1746, 0.0
        %v1777 = vmax.f32 %v1751, 0.0
        %v1778 = vmax.f32 %v1754, 0.0
        %v1779 = vmax.f32 %v1759, 0.0
        %v1780 = vmax.f32 %v1762, 0.0
        %v1781 = vadd.f32 %v1141, %v1765
        %v1782 = vadd.f32 %v1144, %v1766
        %v1783 = vadd.f32 %v1149, %v1767
        %v1784 = vadd.f32 %v1152, %v1768
        %v1785 = vadd.f32 %v1157, %v1769
        %v1786 = vadd.f32 %v1160, %v1770
        %v1787 = vadd.f32 %v1165, %v1771
        %v1788 = vadd.f32 %v1168, %v1772
        %v1789 = vadd.f32 %v1173, %v1773
        %v1790 = vadd.f32 %v1176, %v1774
        %v1791 = vadd.f32 %v1181, %v1775
        %v1792 = vadd.f32 %v1184, %v1776
        %v1793 = vadd.f32 %v1189, %v1777
        %v1794 = vadd.f32 %v1192, %v1778
        %v1795 = vadd.f32 %v1197, %v1779
        %v1796 = vadd.f32 %v1200, %v1780
        %v1797 = vpack.c.bf16 %v1782, %v1781
        %v1798 = vpack.c.bf16 %v1784, %v1783
        %v1799 = vpack.c.bf16 %v1786, %v1785
        %v1800 = vpack.c.bf16 %v1788, %v1787
        %v1801 = vpack.c.bf16 %v1790, %v1789
        %v1802 = vpack.c.bf16 %v1792, %v1791
        %v1803 = vpack.c.bf16 %v1794, %v1793
        %v1804 = vpack.c.bf16 %v1796, %v1795
        %v1805 = vld [vmem:[%s7] sm:$0xf]
        %v1806 = vld [vmem:[%s7 + $0x4] sm:$0xf]
        %v1807 = vld [vmem:[%s7 + $0x8] sm:$0xf]
        %v1808 = vld [vmem:[%s7 + $0xc] sm:$0xf]
        %v1809 = vld [vmem:[%s7 + $0x10] sm:$0xf]
        %v1810 = vld [vmem:[%s7 + $0x14] sm:$0xf]
        %v1811 = vld [vmem:[%s7 + $0x18] sm:$0xf]
        %v1812 = vld [vmem:[%s7 + $0x1c] sm:$0xf]
        %v1813 = vld [vmem:[%s7 + $0x20] sm:$0xf]
        %v1814 = vld [vmem:[%s7 + $0x24] sm:$0xf]
        %v1815 = vld [vmem:[%s7 + $0x28] sm:$0xf]
        %v1816 = vld [vmem:[%s7 + $0x2c] sm:$0xf]
        %v1817 = vld [vmem:[%s7 + $0x30] sm:$0xf]
        %v1818 = vld [vmem:[%s7 + $0x34] sm:$0xf]
        %v1819 = vld [vmem:[%s7 + $0x38] sm:$0xf]
        %v1820 = vld [vmem:[%s7 + $0x3c] sm:$0xf]
        %v1821 = vld [vmem:[%s8] sm:$0xff]
        %v1822 = vld [vmem:[%s8 + $0x8] sm:$0xff]
        %v1823 = vld [vmem:[%s8 + $0x10] sm:$0xff]
        %v1824 = vld [vmem:[%s8 + $0x18] sm:$0xff]
        %v1825 = vld [vmem:[%s8 + $0x20] sm:$0xff]
        %v1826 = vld [vmem:[%s8 + $0x28] sm:$0xff]
        %v1827 = vld [vmem:[%s8 + $0x30] sm:$0xff]
        %v1828 = vld [vmem:[%s8 + $0x38] sm:$0xff]
        %v1829 = vld [vmem:[%s8 + $0x40] sm:$0xff]
        %v1830 = vld [vmem:[%s8 + $0x48] sm:$0xff]
        %v1831 = vld [vmem:[%s8 + $0x50] sm:$0xff]
        %v1832 = vld [vmem:[%s8 + $0x58] sm:$0xff]
        %v1833 = vld [vmem:[%s8 + $0x60] sm:$0xff]
        %v1834 = vld [vmem:[%s8 + $0x68] sm:$0xff]
        %v1835 = vld [vmem:[%s8 + $0x70] sm:$0xff]
        %v1836 = vld [vmem:[%s8 + $0x78] sm:$0xff]
        %1838 = vset.pattern.permute.xlu0 0
        %1839 = vperm.xlu0 %1838, %v1821
        %v1840 = vpop.permute.xlu0 %1839
        %1843 = vset.pattern.permute.xlu0 0
        %1844 = vperm.xlu0 %1843, %v1822
        %v1845 = vpop.permute.xlu0 %1844
        %1848 = vset.pattern.permute.xlu0 0
        %1849 = vperm.xlu0 %1848, %v1823
        %v1850 = vpop.permute.xlu0 %1849
        %1853 = vset.pattern.permute.xlu0 0
        %1854 = vperm.xlu0 %1853, %v1824
        %v1855 = vpop.permute.xlu0 %1854
        %1858 = vset.pattern.permute.xlu0 0
        %1859 = vperm.xlu0 %1858, %v1825
        %v1860 = vpop.permute.xlu0 %1859
        %1863 = vset.pattern.permute.xlu0 0
        %1864 = vperm.xlu0 %1863, %v1826
        %v1865 = vpop.permute.xlu0 %1864
        %1868 = vset.pattern.permute.xlu0 0
        %1869 = vperm.xlu0 %1868, %v1827
        %v1870 = vpop.permute.xlu0 %1869
        %1873 = vset.pattern.permute.xlu0 0
        %1874 = vperm.xlu0 %1873, %v1828
        %v1875 = vpop.permute.xlu0 %1874
        %1878 = vset.pattern.permute.xlu0 0
        %1879 = vperm.xlu0 %1878, %v1829
        %v1880 = vpop.permute.xlu0 %1879
        %1883 = vset.pattern.permute.xlu0 0
        %1884 = vperm.xlu0 %1883, %v1830
        %v1885 = vpop.permute.xlu0 %1884
        %1888 = vset.pattern.permute.xlu0 0
        %1889 = vperm.xlu0 %1888, %v1831
        %v1890 = vpop.permute.xlu0 %1889
        %1893 = vset.pattern.permute.xlu0 0
        %1894 = vperm.xlu0 %1893, %v1832
        %v1895 = vpop.permute.xlu0 %1894
        %1898 = vset.pattern.permute.xlu0 0
        %1899 = vperm.xlu0 %1898, %v1833
        %v1900 = vpop.permute.xlu0 %1899
        %1903 = vset.pattern.permute.xlu0 0
        %1904 = vperm.xlu0 %1903, %v1834
        %v1905 = vpop.permute.xlu0 %1904
        %1908 = vset.pattern.permute.xlu0 0
        %1909 = vperm.xlu0 %1908, %v1835
        %v1910 = vpop.permute.xlu0 %1909
        %1913 = vset.pattern.permute.xlu0 0
        %1914 = vperm.xlu0 %1913, %v1836
        %v1915 = vpop.permute.xlu0 %1914
        %v1933 = vunpack.c.l.b16 %v1805
        %v1934 = vunpack.c.l.b16 %v1806
        %v1935 = vunpack.c.l.b16 %v1807
        %v1936 = vunpack.c.l.b16 %v1808
        %v1937 = vunpack.c.l.b16 %v1809
        %v1938 = vunpack.c.l.b16 %v1810
        %v1939 = vunpack.c.l.b16 %v1811
        %v1940 = vunpack.c.l.b16 %v1812
        %v1941 = vunpack.c.l.b16 %v1813
        %v1942 = vunpack.c.l.b16 %v1814
        %v1943 = vunpack.c.l.b16 %v1815
        %v1944 = vunpack.c.l.b16 %v1816
        %v1945 = vunpack.c.l.b16 %v1817
        %v1946 = vunpack.c.l.b16 %v1818
        %v1947 = vunpack.c.l.b16 %v1819
        %v1948 = vunpack.c.l.b16 %v1820
        %v1949 = vpack.c.b16 %v1934, %v1933
        %v1950 = vpack.c.b16 %v1936, %v1935
        %v1951 = vpack.c.b16 %v1938, %v1937
        %v1952 = vpack.c.b16 %v1940, %v1939
        %v1953 = vpack.c.b16 %v1942, %v1941
        %v1954 = vpack.c.b16 %v1944, %v1943
        %v1955 = vpack.c.b16 %v1946, %v1945
        %v1956 = vpack.c.b16 %v1948, %v1947
        %1965 = vmatprep.subr.bf16.mxu0 0
        %1966 = vmatpush1.bf16.msra.mxu0 %v1797
        %1967 = vmatprep.subr.bf16.mxu0 0
        %1968 = vmatpush1.bf16.msra.mxu0 %v1798
        %1969 = vmatprep.subr.bf16.mxu0 0
        %1970 = vmatpush1.bf16.msra.mxu0 %v1799
        %1971 = vmatprep.subr.bf16.mxu0 0
        %1972 = vmatpush1.bf16.msra.mxu0 %v1800
        %1973 = vmatprep.subr.bf16.mxu0 0
        %1974 = vmatpush1.bf16.msra.mxu0 %v1801
        %1975 = vmatprep.subr.bf16.mxu0 0
        %1976 = vmatpush1.bf16.msra.mxu0 %v1802
        %1977 = vmatprep.subr.bf16.mxu0 0
        %1978 = vmatpush1.bf16.msra.mxu0 %v1803
        %1979 = vmatprep.subr.bf16.mxu0 0
        %1980 = vmatpush1.bf16.msra.mxu0 %v1804
        %1981 = vmatprep.subr.bf16.mxu0 0
        %1982 = vmatpush1.bf16.msra.mxu0 0
        %1983 = vmatprep.subr.bf16.mxu0 0
        %1984 = vmatpush1.bf16.msra.mxu0 0
        %1985 = vmatprep.subr.bf16.mxu0 0
        %1986 = vmatpush1.bf16.msra.mxu0 0
        %1987 = vmatprep.subr.bf16.mxu0 0
        %1988 = vmatpush1.bf16.msra.mxu0 0
        %1989 = vmatprep.subr.bf16.mxu0 0
        %1990 = vmatpush1.bf16.msra.mxu0 0
        %1991 = vmatprep.subr.bf16.mxu0 0
        %1992 = vmatpush1.bf16.msra.mxu0 0
        %1993 = vmatprep.subr.bf16.mxu0 0
        %1994 = vmatpush1.bf16.msra.mxu0 0
        %1995 = vmatprep.subr.bf16.mxu0 0
        %1996 = vmatpush1.bf16.msra.mxu0 0
        %1997 = vmatprep.mubr.bf16.mxu0 0
        %1998 = vmatmul.mubr.bf16.gmra.mrb[0].mxu0 %v1949
        %v1999 = vpop.f32.mrb[0].mxu0
        %v2000 = vadd.f32 %v1840, %v1999
        %v2001 = vpop.f32.mrb[0].mxu0
        %v2002 = vpop.f32.mrb[0].mxu0
        %v2003 = vadd.f32 %v1845, %v2002
        %v2004 = vpop.f32.mrb[0].mxu0
        %2005 = vmatprep.mubr.bf16.mxu0 0
        %2006 = vmatmul.mubr.bf16.gmra.mrb[0].mxu0 %v1950
        %v2007 = vpop.f32.mrb[0].mxu0
        %v2008 = vadd.f32 %v1850, %v2007
        %v2009 = vpop.f32.mrb[0].mxu0
        %v2010 = vpop.f32.mrb[0].mxu0
        %v2011 = vadd.f32 %v1855, %v2010
        %v2012 = vpop.f32.mrb[0].mxu0
        %2013 = vmatprep.mubr.bf16.mxu0 0
        %2014 = vmatmul.mubr.bf16.gmra.mrb[0].mxu0 %v1951
        %v2015 = vpop.f32.mrb[0].mxu0
        %v2016 = vadd.f32 %v1860, %v2015
        %v2017 = vpop.f32.mrb[0].mxu0
        %v2018 = vpop.f32.mrb[0].mxu0
        %v2019 = vadd.f32 %v1865, %v2018
        %v2020 = vpop.f32.mrb[0].mxu0
        %2021 = vmatprep.mubr.bf16.mxu0 0
        %2022 = vmatmul.mubr.bf16.gmra.mrb[0].mxu0 %v1952
        %v2023 = vpop.f32.mrb[0].mxu0
        %v2024 = vadd.f32 %v1870, %v2023
        %v2025 = vpop.f32.mrb[0].mxu0
        %v2026 = vpop.f32.mrb[0].mxu0
        %v2027 = vadd.f32 %v1875, %v2026
        %v2028 = vpop.f32.mrb[0].mxu0
        %2029 = vmatprep.mubr.bf16.mxu0 0
        %2030 = vmatmul.mubr.bf16.gmra.mrb[0].mxu0 %v1953
        %v2031 = vpop.f32.mrb[0].mxu0
        %v2032 = vadd.f32 %v1880, %v2031
        %v2033 = vpop.f32.mrb[0].mxu0
        %v2034 = vpop.f32.mrb[0].mxu0
        %v2035 = vadd.f32 %v1885, %v2034
        %v2036 = vpop.f32.mrb[0].mxu0
        %2037 = vmatprep.mubr.bf16.mxu0 0
        %2038 = vmatmul.mubr.bf16.gmra.mrb[0].mxu0 %v1954
        %v2039 = vpop.f32.mrb[0].mxu0
        %v2040 = vadd.f32 %v1890, %v2039
        %v2041 = vpop.f32.mrb[0].mxu0
        %v2042 = vpop.f32.mrb[0].mxu0
        %v2043 = vadd.f32 %v1895, %v2042
        %v2044 = vpop.f32.mrb[0].mxu0
        %2045 = vmatprep.mubr.bf16.mxu0 0
        %2046 = vmatmul.mubr.bf16.gmra.mrb[0].mxu0 %v1955
        %v2047 = vpop.f32.mrb[0].mxu0
        %v2048 = vadd.f32 %v1900, %v2047
        %v2049 = vpop.f32.mrb[0].mxu0
        %v2050 = vpop.f32.mrb[0].mxu0
        %v2051 = vadd.f32 %v1905, %v2050
        %v2052 = vpop.f32.mrb[0].mxu0
        %2053 = vmatprep.mubr.bf16.mxu0 0
        %2054 = vmatmul.mubr.bf16.gmra.mrb[0].mxu0 %v1956
        %v2055 = vpop.f32.mrb[0].mxu0
        %v2056 = vadd.f32 %v1910, %v2055
        %v2057 = vpop.f32.mrb[0].mxu0
        %v2058 = vpop.f32.mrb[0].mxu0
        %v2059 = vadd.f32 %v1915, %v2058
        %v2060 = vpop.f32.mrb[0].mxu0
        %2061 = vdwg.mxu0
        %v2062 = vmax.f32 %v2000, 0.0
        %v2063 = vmax.f32 %v2003, 0.0
        %v2064 = vmax.f32 %v2008, 0.0
        %v2065 = vmax.f32 %v2011, 0.0
        %v2066 = vmax.f32 %v2016, 0.0
        %v2067 = vmax.f32 %v2019, 0.0
        %v2068 = vmax.f32 %v2024, 0.0
        %v2069 = vmax.f32 %v2027, 0.0
        %v2070 = vmax.f32 %v2032, 0.0
        %v2071 = vmax.f32 %v2035, 0.0
        %v2072 = vmax.f32 %v2040, 0.0
        %v2073 = vmax.f32 %v2043, 0.0
        %v2074 = vmax.f32 %v2048, 0.0
        %v2075 = vmax.f32 %v2051, 0.0
        %v2076 = vmax.f32 %v2056, 0.0
        %v2077 = vmax.f32 %v2059, 0.0
        %v2078 = vpack.c.bf16 %v2063, %v2062
        %v2079 = vpack.c.bf16 %v2065, %v2064
        %v2080 = vpack.c.bf16 %v2067, %v2066
        %v2081 = vpack.c.bf16 %v2069, %v2068
        %v2082 = vpack.c.bf16 %v2071, %v2070
        %v2083 = vpack.c.bf16 %v2073, %v2072
        %v2084 = vpack.c.bf16 %v2075, %v2074
        %v2085 = vpack.c.bf16 %v2077, %v2076
        %v2086 = vld [vmem:[%s9] sm:$0xf]
        %v2087 = vld [vmem:[%s9 + $0x4] sm:$0xf]
        %v2088 = vld [vmem:[%s9 + $0x8] sm:$0xf]
        %v2089 = vld [vmem:[%s9 + $0xc] sm:$0xf]
        %v2090 = vld [vmem:[%s9 + $0x10] sm:$0xf]
        %v2091 = vld [vmem:[%s9 + $0x14] sm:$0xf]
        %v2092 = vld [vmem:[%s9 + $0x18] sm:$0xf]
        %v2093 = vld [vmem:[%s9 + $0x1c] sm:$0xf]
        %v2094 = vld [vmem:[%s9 + $0x20] sm:$0xf]
        %v2095 = vld [vmem:[%s9 + $0x24] sm:$0xf]
        %v2096 = vld [vmem:[%s9 + $0x28] sm:$0xf]
        %v2097 = vld [vmem:[%s9 + $0x2c] sm:$0xf]
        %v2098 = vld [vmem:[%s9 + $0x30] sm:$0xf]
        %v2099 = vld [vmem:[%s9 + $0x34] sm:$0xf]
        %v2100 = vld [vmem:[%s9 + $0x38] sm:$0xf]
        %v2101 = vld [vmem:[%s9 + $0x3c] sm:$0xf]
        %v2102 = vld [vmem:[%s10] sm:$0xff]
        %v2103 = vld [vmem:[%s10 + $0x8] sm:$0xff]
        %v2104 = vld [vmem:[%s10 + $0x10] sm:$0xff]
        %v2105 = vld [vmem:[%s10 + $0x18] sm:$0xff]
        %v2106 = vld [vmem:[%s10 + $0x20] sm:$0xff]
        %v2107 = vld [vmem:[%s10 + $0x28] sm:$0xff]
        %v2108 = vld [vmem:[%s10 + $0x30] sm:$0xff]
        %v2109 = vld [vmem:[%s10 + $0x38] sm:$0xff]
        %v2110 = vld [vmem:[%s10 + $0x40] sm:$0xff]
        %v2111 = vld [vmem:[%s10 + $0x48] sm:$0xff]
        %v2112 = vld [vmem:[%s10 + $0x50] sm:$0xff]
        %v2113 = vld [vmem:[%s10 + $0x58] sm:$0xff]
        %v2114 = vld [vmem:[%s10 + $0x60] sm:$0xff]
        %v2115 = vld [vmem:[%s10 + $0x68] sm:$0xff]
        %v2116 = vld [vmem:[%s10 + $0x70] sm:$0xff]
        %v2117 = vld [vmem:[%s10 + $0x78] sm:$0xff]
        %2119 = vset.pattern.permute.xlu0 0
        %2120 = vperm.xlu0 %2119, %v2102
        %v2121 = vpop.permute.xlu0 %2120
        %2124 = vset.pattern.permute.xlu0 0
        %2125 = vperm.xlu0 %2124, %v2103
        %v2126 = vpop.permute.xlu0 %2125
        %2129 = vset.pattern.permute.xlu0 0
        %2130 = vperm.xlu0 %2129, %v2104
        %v2131 = vpop.permute.xlu0 %2130
        %2134 = vset.pattern.permute.xlu0 0
        %2135 = vperm.xlu0 %2134, %v2105
        %v2136 = vpop.permute.xlu0 %2135
        %2139 = vset.pattern.permute.xlu0 0
        %2140 = vperm.xlu0 %2139, %v2106
        %v2141 = vpop.permute.xlu0 %2140
        %2144 = vset.pattern.permute.xlu0 0
        %2145 = vperm.xlu0 %2144, %v2107
        %v2146 = vpop.permute.xlu0 %2145
        %2149 = vset.pattern.permute.xlu0 0
        %2150 = vperm.xlu0 %2149, %v2108
        %v2151 = vpop.permute.xlu0 %2150
        %2154 = vset.pattern.permute.xlu0 0
        %2155 = vperm.xlu0 %2154, %v2109
        %v2156 = vpop.permute.xlu0 %2155
        %2159 = vset.pattern.permute.xlu0 0
        %2160 = vperm.xlu0 %2159, %v2110
        %v2161 = vpop.permute.xlu0 %2160
        %2164 = vset.pattern.permute.xlu0 0
        %2165 = vperm.xlu0 %2164, %v2111
        %v2166 = vpop.permute.xlu0 %2165
        %2169 = vset.pattern.permute.xlu0 0
        %2170 = vperm.xlu0 %2169, %v2112
        %v2171 = vpop.permute.xlu0 %2170
        %2174 = vset.pattern.permute.xlu0 0
        %2175 = vperm.xlu0 %2174, %v2113
        %v2176 = vpop.permute.xlu0 %2175
        %2179 = vset.pattern.permute.xlu0 0
        %2180 = vperm.xlu0 %2179, %v2114
        %v2181 = vpop.permute.xlu0 %2180
        %2184 = vset.pattern.permute.xlu0 0
        %2185 = vperm.xlu0 %2184, %v2115
        %v2186 = vpop.permute.xlu0 %2185
        %2189 = vset.pattern.permute.xlu0 0
        %2190 = vperm.xlu0 %2189, %v2116
        %v2191 = vpop.permute.xlu0 %2190
        %2194 = vset.pattern.permute.xlu0 0
        %2195 = vperm.xlu0 %2194, %v2117
        %v2196 = vpop.permute.xlu0 %2195
        %v2214 = vunpack.c.l.b16 %v2086
        %v2215 = vunpack.c.l.b16 %v2087
        %v2216 = vunpack.c.l.b16 %v2088
        %v2217 = vunpack.c.l.b16 %v2089
        %v2218 = vunpack.c.l.b16 %v2090
        %v2219 = vunpack.c.l.b16 %v2091
        %v2220 = vunpack.c.l.b16 %v2092
        %v2221 = vunpack.c.l.b16 %v2093
        %v2222 = vunpack.c.l.b16 %v2094
        %v2223 = vunpack.c.l.b16 %v2095
        %v2224 = vunpack.c.l.b16 %v2096
        %v2225 = vunpack.c.l.b16 %v2097
        %v2226 = vunpack.c.l.b16 %v2098
        %v2227 = vunpack.c.l.b16 %v2099
        %v2228 = vunpack.c.l.b16 %v2100
        %v2229 = vunpack.c.l.b16 %v2101
        %v2230 = vpack.c.b16 %v2215, %v2214
        %v2231 = vpack.c.b16 %v2217, %v2216
        %v2232 = vpack.c.b16 %v2219, %v2218
        %v2233 = vpack.c.b16 %v2221, %v2220
        %v2234 = vpack.c.b16 %v2223, %v2222
        %v2235 = vpack.c.b16 %v2225, %v2224
        %v2236 = vpack.c.b16 %v2227, %v2226
        %v2237 = vpack.c.b16 %v2229, %v2228
        %2246 = vmatprep.subr.bf16.mxu0 0
        %2247 = vmatpush1.bf16.msra.mxu0 %v2078
        %2248 = vmatprep.subr.bf16.mxu0 0
        %2249 = vmatpush1.bf16.msra.mxu0 %v2079
        %2250 = vmatprep.subr.bf16.mxu0 0
        %2251 = vmatpush1.bf16.msra.mxu0 %v2080
        %2252 = vmatprep.subr.bf16.mxu0 0
        %2253 = vmatpush1.bf16.msra.mxu0 %v2081
        %2254 = vmatprep.subr.bf16.mxu0 0
        %2255 = vmatpush1.bf16.msra.mxu0 %v2082
        %2256 = vmatprep.subr.bf16.mxu0 0
        %2257 = vmatpush1.bf16.msra.mxu0 %v2083
        %2258 = vmatprep.subr.bf16.mxu0 0
        %2259 = vmatpush1.bf16.msra.mxu0 %v2084
        %2260 = vmatprep.subr.bf16.mxu0 0
        %2261 = vmatpush1.bf16.msra.mxu0 %v2085
        %2262 = vmatprep.subr.bf16.mxu0 0
        %2263 = vmatpush1.bf16.msra.mxu0 0
        %2264 = vmatprep.subr.bf16.mxu0 0
        %2265 = vmatpush1.bf16.msra.mxu0 0
        %2266 = vmatprep.subr.bf16.mxu0 0
        %2267 = vmatpush1.bf16.msra.mxu0 0
        %2268 = vmatprep.subr.bf16.mxu0 0
        %2269 = vmatpush1.bf16.msra.mxu0 0
        %2270 = vmatprep.subr.bf16.mxu0 0
        %2271 = vmatpush1.bf16.msra.mxu0 0
        %2272 = vmatprep.subr.bf16.mxu0 0
        %2273 = vmatpush1.bf16.msra.mxu0 0
        %2274 = vmatprep.subr.bf16.mxu0 0
        %2275 = vmatpush1.bf16.msra.mxu0 0
        %2276 = vmatprep.subr.bf16.mxu0 0
        %2277 = vmatpush1.bf16.msra.mxu0 0
        %2278 = vmatprep.mubr.bf16.mxu0 0
        %2279 = vmatmul.mubr.bf16.gmra.mrb[0].mxu0 %v2230
        %v2280 = vpop.f32.mrb[0].mxu0
        %v2281 = vadd.f32 %v2121, %v2280
        %v2282 = vpop.f32.mrb[0].mxu0
        %v2283 = vpop.f32.mrb[0].mxu0
        %v2284 = vadd.f32 %v2126, %v2283
        %v2285 = vpop.f32.mrb[0].mxu0
        %2286 = vmatprep.mubr.bf16.mxu0 0
        %2287 = vmatmul.mubr.bf16.gmra.mrb[0].mxu0 %v2231
        %v2288 = vpop.f32.mrb[0].mxu0
        %v2289 = vadd.f32 %v2131, %v2288
        %v2290 = vpop.f32.mrb[0].mxu0
        %v2291 = vpop.f32.mrb[0].mxu0
        %v2292 = vadd.f32 %v2136, %v2291
        %v2293 = vpop.f32.mrb[0].mxu0
        %2294 = vmatprep.mubr.bf16.mxu0 0
        %2295 = vmatmul.mubr.bf16.gmra.mrb[0].mxu0 %v2232
        %v2296 = vpop.f32.mrb[0].mxu0
        %v2297 = vadd.f32 %v2141, %v2296
        %v2298 = vpop.f32.mrb[0].mxu0
        %v2299 = vpop.f32.mrb[0].mxu0
        %v2300 = vadd.f32 %v2146, %v2299
        %v2301 = vpop.f32.mrb[0].mxu0
        %2302 = vmatprep.mubr.bf16.mxu0 0
        %2303 = vmatmul.mubr.bf16.gmra.mrb[0].mxu0 %v2233
        %v2304 = vpop.f32.mrb[0].mxu0
        %v2305 = vadd.f32 %v2151, %v2304
        %v2306 = vpop.f32.mrb[0].mxu0
        %v2307 = vpop.f32.mrb[0].mxu0
        %v2308 = vadd.f32 %v2156, %v2307
        %v2309 = vpop.f32.mrb[0].mxu0
        %2310 = vmatprep.mubr.bf16.mxu0 0
        %2311 = vmatmul.mubr.bf16.gmra.mrb[0].mxu0 %v2234
        %v2312 = vpop.f32.mrb[0].mxu0
        %v2313 = vadd.f32 %v2161, %v2312
        %v2314 = vpop.f32.mrb[0].mxu0
        %v2315 = vpop.f32.mrb[0].mxu0
        %v2316 = vadd.f32 %v2166, %v2315
        %v2317 = vpop.f32.mrb[0].mxu0
        %2318 = vmatprep.mubr.bf16.mxu0 0
        %2319 = vmatmul.mubr.bf16.gmra.mrb[0].mxu0 %v2235
        %v2320 = vpop.f32.mrb[0].mxu0
        %v2321 = vadd.f32 %v2171, %v2320
        %v2322 = vpop.f32.mrb[0].mxu0
        %v2323 = vpop.f32.mrb[0].mxu0
        %v2324 = vadd.f32 %v2176, %v2323
        %v2325 = vpop.f32.mrb[0].mxu0
        %2326 = vmatprep.mubr.bf16.mxu0 0
        %2327 = vmatmul.mubr.bf16.gmra.mrb[0].mxu0 %v2236
        %v2328 = vpop.f32.mrb[0].mxu0
        %v2329 = vadd.f32 %v2181, %v2328
        %v2330 = vpop.f32.mrb[0].mxu0
        %v2331 = vpop.f32.mrb[0].mxu0
        %v2332 = vadd.f32 %v2186, %v2331
        %v2333 = vpop.f32.mrb[0].mxu0
        %2334 = vmatprep.mubr.bf16.mxu0 0
        %2335 = vmatmul.mubr.bf16.gmra.mrb[0].mxu0 %v2237
        %v2336 = vpop.f32.mrb[0].mxu0
        %v2337 = vadd.f32 %v2191, %v2336
        %v2338 = vpop.f32.mrb[0].mxu0
        %v2339 = vpop.f32.mrb[0].mxu0
        %v2340 = vadd.f32 %v2196, %v2339
        %v2341 = vpop.f32.mrb[0].mxu0
        %2342 = vdwg.mxu0
        %v2343 = vmax.f32 %v2281, 0.0
        %v2344 = vmax.f32 %v2284, 0.0
        %v2345 = vmax.f32 %v2289, 0.0
        %v2346 = vmax.f32 %v2292, 0.0
        %v2347 = vmax.f32 %v2297, 0.0
        %v2348 = vmax.f32 %v2300, 0.0
        %v2349 = vmax.f32 %v2305, 0.0
        %v2350 = vmax.f32 %v2308, 0.0
        %v2351 = vmax.f32 %v2313, 0.0
        %v2352 = vmax.f32 %v2316, 0.0
        %v2353 = vmax.f32 %v2321, 0.0
        %v2354 = vmax.f32 %v2324, 0.0
        %v2355 = vmax.f32 %v2329, 0.0
        %v2356 = vmax.f32 %v2332, 0.0
        %v2357 = vmax.f32 %v2337, 0.0
        %v2358 = vmax.f32 %v2340, 0.0
        %v2359 = vpack.c.bf16 %v2344, %v2343
        %v2360 = vpack.c.bf16 %v2346, %v2345
        %v2361 = vpack.c.bf16 %v2348, %v2347
        %v2362 = vpack.c.bf16 %v2350, %v2349
        %v2363 = vpack.c.bf16 %v2352, %v2351
        %v2364 = vpack.c.bf16 %v2354, %v2353
        %v2365 = vpack.c.bf16 %v2356, %v2355
        %v2366 = vpack.c.bf16 %v2358, %v2357
        %v2367 = vld [vmem:[%s11] sm:$0xf]
        %v2368 = vld [vmem:[%s11 + $0x4] sm:$0xf]
        %v2369 = vld [vmem:[%s11 + $0x8] sm:$0xf]
        %v2370 = vld [vmem:[%s11 + $0xc] sm:$0xf]
        %v2371 = vld [vmem:[%s11 + $0x10] sm:$0xf]
        %v2372 = vld [vmem:[%s11 + $0x14] sm:$0xf]
        %v2373 = vld [vmem:[%s11 + $0x18] sm:$0xf]
        %v2374 = vld [vmem:[%s11 + $0x1c] sm:$0xf]
        %v2375 = vld [vmem:[%s11 + $0x20] sm:$0xf]
        %v2376 = vld [vmem:[%s11 + $0x24] sm:$0xf]
        %v2377 = vld [vmem:[%s11 + $0x28] sm:$0xf]
        %v2378 = vld [vmem:[%s11 + $0x2c] sm:$0xf]
        %v2379 = vld [vmem:[%s11 + $0x30] sm:$0xf]
        %v2380 = vld [vmem:[%s11 + $0x34] sm:$0xf]
        %v2381 = vld [vmem:[%s11 + $0x38] sm:$0xf]
        %v2382 = vld [vmem:[%s11 + $0x3c] sm:$0xf]
        %v2383 = vld [vmem:[%s12] sm:$0xff]
        %v2384 = vld [vmem:[%s12 + $0x8] sm:$0xff]
        %v2385 = vld [vmem:[%s12 + $0x10] sm:$0xff]
        %v2386 = vld [vmem:[%s12 + $0x18] sm:$0xff]
        %v2387 = vld [vmem:[%s12 + $0x20] sm:$0xff]
        %v2388 = vld [vmem:[%s12 + $0x28] sm:$0xff]
        %v2389 = vld [vmem:[%s12 + $0x30] sm:$0xff]
        %v2390 = vld [vmem:[%s12 + $0x38] sm:$0xff]
        %v2391 = vld [vmem:[%s12 + $0x40] sm:$0xff]
        %v2392 = vld [vmem:[%s12 + $0x48] sm:$0xff]
        %v2393 = vld [vmem:[%s12 + $0x50] sm:$0xff]
        %v2394 = vld [vmem:[%s12 + $0x58] sm:$0xff]
        %v2395 = vld [vmem:[%s12 + $0x60] sm:$0xff]
        %v2396 = vld [vmem:[%s12 + $0x68] sm:$0xff]
        %v2397 = vld [vmem:[%s12 + $0x70] sm:$0xff]
        %v2398 = vld [vmem:[%s12 + $0x78] sm:$0xff]
        %2400 = vset.pattern.permute.xlu0 0
        %2401 = vperm.xlu0 %2400, %v2383
        %v2402 = vpop.permute.xlu0 %2401
        %2405 = vset.pattern.permute.xlu0 0
        %2406 = vperm.xlu0 %2405, %v2384
        %v2407 = vpop.permute.xlu0 %2406
        %2410 = vset.pattern.permute.xlu0 0
        %2411 = vperm.xlu0 %2410, %v2385
        %v2412 = vpop.permute.xlu0 %2411
        %2415 = vset.pattern.permute.xlu0 0
        %2416 = vperm.xlu0 %2415, %v2386
        %v2417 = vpop.permute.xlu0 %2416
        %2420 = vset.pattern.permute.xlu0 0
        %2421 = vperm.xlu0 %2420, %v2387
        %v2422 = vpop.permute.xlu0 %2421
        %2425 = vset.pattern.permute.xlu0 0
        %2426 = vperm.xlu0 %2425, %v2388
        %v2427 = vpop.permute.xlu0 %2426
        %2430 = vset.pattern.permute.xlu0 0
        %2431 = vperm.xlu0 %2430, %v2389
        %v2432 = vpop.permute.xlu0 %2431
        %2435 = vset.pattern.permute.xlu0 0
        %2436 = vperm.xlu0 %2435, %v2390
        %v2437 = vpop.permute.xlu0 %2436
        %2440 = vset.pattern.permute.xlu0 0
        %2441 = vperm.xlu0 %2440, %v2391
        %v2442 = vpop.permute.xlu0 %2441
        %2445 = vset.pattern.permute.xlu0 0
        %2446 = vperm.xlu0 %2445, %v2392
        %v2447 = vpop.permute.xlu0 %2446
        %2450 = vset.pattern.permute.xlu0 0
        %2451 = vperm.xlu0 %2450, %v2393
        %v2452 = vpop.permute.xlu0 %2451
        %2455 = vset.pattern.permute.xlu0 0
        %2456 = vperm.xlu0 %2455, %v2394
        %v2457 = vpop.permute.xlu0 %2456
        %2460 = vset.pattern.permute.xlu0 0
        %2461 = vperm.xlu0 %2460, %v2395
        %v2462 = vpop.permute.xlu0 %2461
        %2465 = vset.pattern.permute.xlu0 0
        %2466 = vperm.xlu0 %2465, %v2396
        %v2467 = vpop.permute.xlu0 %2466
        %2470 = vset.pattern.permute.xlu0 0
        %2471 = vperm.xlu0 %2470, %v2397
        %v2472 = vpop.permute.xlu0 %2471
        %2475 = vset.pattern.permute.xlu0 0
        %2476 = vperm.xlu0 %2475, %v2398
        %v2477 = vpop.permute.xlu0 %2476
        %v2495 = vunpack.c.l.b16 %v2367
        %v2496 = vunpack.c.l.b16 %v2368
        %v2497 = vunpack.c.l.b16 %v2369
        %v2498 = vunpack.c.l.b16 %v2370
        %v2499 = vunpack.c.l.b16 %v2371
        %v2500 = vunpack.c.l.b16 %v2372
        %v2501 = vunpack.c.l.b16 %v2373
        %v2502 = vunpack.c.l.b16 %v2374
        %v2503 = vunpack.c.l.b16 %v2375
        %v2504 = vunpack.c.l.b16 %v2376
        %v2505 = vunpack.c.l.b16 %v2377
        %v2506 = vunpack.c.l.b16 %v2378
        %v2507 = vunpack.c.l.b16 %v2379
        %v2508 = vunpack.c.l.b16 %v2380
        %v2509 = vunpack.c.l.b16 %v2381
        %v2510 = vunpack.c.l.b16 %v2382
        %v2511 = vpack.c.b16 %v2496, %v2495
        %v2512 = vpack.c.b16 %v2498, %v2497
        %v2513 = vpack.c.b16 %v2500, %v2499
        %v2514 = vpack.c.b16 %v2502, %v2501
        %v2515 = vpack.c.b16 %v2504, %v2503
        %v2516 = vpack.c.b16 %v2506, %v2505
        %v2517 = vpack.c.b16 %v2508, %v2507
        %v2518 = vpack.c.b16 %v2510, %v2509
        %2527 = vmatprep.subr.bf16.mxu0 0
        %2528 = vmatpush1.bf16.msra.mxu0 %v2359
        %2529 = vmatprep.subr.bf16.mxu0 0
        %2530 = vmatpush1.bf16.msra.mxu0 %v2360
        %2531 = vmatprep.subr.bf16.mxu0 0
        %2532 = vmatpush1.bf16.msra.mxu0 %v2361
        %2533 = vmatprep.subr.bf16.mxu0 0
        %2534 = vmatpush1.bf16.msra.mxu0 %v2362
        %2535 = vmatprep.subr.bf16.mxu0 0
        %2536 = vmatpush1.bf16.msra.mxu0 %v2363
        %2537 = vmatprep.subr.bf16.mxu0 0
        %2538 = vmatpush1.bf16.msra.mxu0 %v2364
        %2539 = vmatprep.subr.bf16.mxu0 0
        %2540 = vmatpush1.bf16.msra.mxu0 %v2365
        %2541 = vmatprep.subr.bf16.mxu0 0
        %2542 = vmatpush1.bf16.msra.mxu0 %v2366
        %2543 = vmatprep.subr.bf16.mxu0 0
        %2544 = vmatpush1.bf16.msra.mxu0 0
        %2545 = vmatprep.subr.bf16.mxu0 0
        %2546 = vmatpush1.bf16.msra.mxu0 0
        %2547 = vmatprep.subr.bf16.mxu0 0
        %2548 = vmatpush1.bf16.msra.mxu0 0
        %2549 = vmatprep.subr.bf16.mxu0 0
        %2550 = vmatpush1.bf16.msra.mxu0 0
        %2551 = vmatprep.subr.bf16.mxu0 0
        %2552 = vmatpush1.bf16.msra.mxu0 0
        %2553 = vmatprep.subr.bf16.mxu0 0
        %2554 = vmatpush1.bf16.msra.mxu0 0
        %2555 = vmatprep.subr.bf16.mxu0 0
        %2556 = vmatpush1.bf16.msra.mxu0 0
        %2557 = vmatprep.subr.bf16.mxu0 0
        %2558 = vmatpush1.bf16.msra.mxu0 0
        %2559 = vmatprep.mubr.bf16.mxu0 0
        %2560 = vmatmul.mubr.bf16.gmra.mrb[0].mxu0 %v2511
        %v2561 = vpop.f32.mrb[0].mxu0
        %v2562 = vadd.f32 %v2402, %v2561
        %v2563 = vpop.f32.mrb[0].mxu0
        %v2564 = vpop.f32.mrb[0].mxu0
        %v2565 = vadd.f32 %v2407, %v2564
        %v2566 = vpop.f32.mrb[0].mxu0
        %2567 = vmatprep.mubr.bf16.mxu0 0
        %2568 = vmatmul.mubr.bf16.gmra.mrb[0].mxu0 %v2512
        %v2569 = vpop.f32.mrb[0].mxu0
        %v2570 = vadd.f32 %v2412, %v2569
        %v2571 = vpop.f32.mrb[0].mxu0
        %v2572 = vpop.f32.mrb[0].mxu0
        %v2573 = vadd.f32 %v2417, %v2572
        %v2574 = vpop.f32.mrb[0].mxu0
        %2575 = vmatprep.mubr.bf16.mxu0 0
        %2576 = vmatmul.mubr.bf16.gmra.mrb[0].mxu0 %v2513
        %v2577 = vpop.f32.mrb[0].mxu0
        %v2578 = vadd.f32 %v2422, %v2577
        %v2579 = vpop.f32.mrb[0].mxu0
        %v2580 = vpop.f32.mrb[0].mxu0
        %v2581 = vadd.f32 %v2427, %v2580
        %v2582 = vpop.f32.mrb[0].mxu0
        %2583 = vmatprep.mubr.bf16.mxu0 0
        %2584 = vmatmul.mubr.bf16.gmra.mrb[0].mxu0 %v2514
        %v2585 = vpop.f32.mrb[0].mxu0
        %v2586 = vadd.f32 %v2432, %v2585
        %v2587 = vpop.f32.mrb[0].mxu0
        %v2588 = vpop.f32.mrb[0].mxu0
        %v2589 = vadd.f32 %v2437, %v2588
        %v2590 = vpop.f32.mrb[0].mxu0
        %2591 = vmatprep.mubr.bf16.mxu0 0
        %2592 = vmatmul.mubr.bf16.gmra.mrb[0].mxu0 %v2515
        %v2593 = vpop.f32.mrb[0].mxu0
        %v2594 = vadd.f32 %v2442, %v2593
        %v2595 = vpop.f32.mrb[0].mxu0
        %v2596 = vpop.f32.mrb[0].mxu0
        %v2597 = vadd.f32 %v2447, %v2596
        %v2598 = vpop.f32.mrb[0].mxu0
        %2599 = vmatprep.mubr.bf16.mxu0 0
        %2600 = vmatmul.mubr.bf16.gmra.mrb[0].mxu0 %v2516
        %v2601 = vpop.f32.mrb[0].mxu0
        %v2602 = vadd.f32 %v2452, %v2601
        %v2603 = vpop.f32.mrb[0].mxu0
        %v2604 = vpop.f32.mrb[0].mxu0
        %v2605 = vadd.f32 %v2457, %v2604
        %v2606 = vpop.f32.mrb[0].mxu0
        %2607 = vmatprep.mubr.bf16.mxu0 0
        %2608 = vmatmul.mubr.bf16.gmra.mrb[0].mxu0 %v2517
        %v2609 = vpop.f32.mrb[0].mxu0
        %v2610 = vadd.f32 %v2462, %v2609
        %v2611 = vpop.f32.mrb[0].mxu0
        %v2612 = vpop.f32.mrb[0].mxu0
        %v2613 = vadd.f32 %v2467, %v2612
        %v2614 = vpop.f32.mrb[0].mxu0
        %2615 = vmatprep.mubr.bf16.mxu0 0
        %2616 = vmatmul.mubr.bf16.gmra.mrb[0].mxu0 %v2518
        %v2617 = vpop.f32.mrb[0].mxu0
        %v2618 = vadd.f32 %v2472, %v2617
        %v2619 = vpop.f32.mrb[0].mxu0
        %v2620 = vpop.f32.mrb[0].mxu0
        %v2621 = vadd.f32 %v2477, %v2620
        %v2622 = vpop.f32.mrb[0].mxu0
        %2623 = vdwg.mxu0
        %v2624 = vmax.f32 %v2562, 0.0
        %v2625 = vmax.f32 %v2565, 0.0
        %v2626 = vmax.f32 %v2570, 0.0
        %v2627 = vmax.f32 %v2573, 0.0
        %v2628 = vmax.f32 %v2578, 0.0
        %v2629 = vmax.f32 %v2581, 0.0
        %v2630 = vmax.f32 %v2586, 0.0
        %v2631 = vmax.f32 %v2589, 0.0
        %v2632 = vmax.f32 %v2594, 0.0
        %v2633 = vmax.f32 %v2597, 0.0
        %v2634 = vmax.f32 %v2602, 0.0
        %v2635 = vmax.f32 %v2605, 0.0
        %v2636 = vmax.f32 %v2610, 0.0
        %v2637 = vmax.f32 %v2613, 0.0
        %v2638 = vmax.f32 %v2618, 0.0
        %v2639 = vmax.f32 %v2621, 0.0
        %v2640 = vadd.f32 %v1781, %v2624
        %v2641 = vadd.f32 %v1782, %v2625
        %v2642 = vadd.f32 %v1783, %v2626
        %v2643 = vadd.f32 %v1784, %v2627
        %v2644 = vadd.f32 %v1785, %v2628
        %v2645 = vadd.f32 %v1786, %v2629
        %v2646 = vadd.f32 %v1787, %v2630
        %v2647 = vadd.f32 %v1788, %v2631
        %v2648 = vadd.f32 %v1789, %v2632
        %v2649 = vadd.f32 %v1790, %v2633
        %v2650 = vadd.f32 %v1791, %v2634
        %v2651 = vadd.f32 %v1792, %v2635
        %v2652 = vadd.f32 %v1793, %v2636
        %v2653 = vadd.f32 %v1794, %v2637
        %v2654 = vadd.f32 %v1795, %v2638
        %v2655 = vadd.f32 %v1796, %v2639
        %v2656 = vpack.c.bf16 %v2641, %v2640
        %v2657 = vpack.c.bf16 %v2643, %v2642
        %v2658 = vpack.c.bf16 %v2645, %v2644
        %v2659 = vpack.c.bf16 %v2647, %v2646
        %v2660 = vpack.c.bf16 %v2649, %v2648
        %v2661 = vpack.c.bf16 %v2651, %v2650
        %v2662 = vpack.c.bf16 %v2653, %v2652
        %v2663 = vpack.c.bf16 %v2655, %v2654
        %v2664 = vld [vmem:[%s13] sm:$0xf]
        %v2665 = vld [vmem:[%s13 + $0x4] sm:$0xf]
        %v2666 = vld [vmem:[%s13 + $0x8] sm:$0xf]
        %v2667 = vld [vmem:[%s13 + $0xc] sm:$0xf]
        %v2668 = vld [vmem:[%s13 + $0x10] sm:$0xf]
        %v2669 = vld [vmem:[%s13 + $0x14] sm:$0xf]
        %v2670 = vld [vmem:[%s13 + $0x18] sm:$0xf]
        %v2671 = vld [vmem:[%s13 + $0x1c] sm:$0xf]
        %v2672 = vld [vmem:[%s13 + $0x20] sm:$0xf]
        %v2673 = vld [vmem:[%s13 + $0x24] sm:$0xf]
        %v2674 = vld [vmem:[%s13 + $0x28] sm:$0xf]
        %v2675 = vld [vmem:[%s13 + $0x2c] sm:$0xf]
        %v2676 = vld [vmem:[%s13 + $0x30] sm:$0xf]
        %v2677 = vld [vmem:[%s13 + $0x34] sm:$0xf]
        %v2678 = vld [vmem:[%s13 + $0x38] sm:$0xf]
        %v2679 = vld [vmem:[%s13 + $0x3c] sm:$0xf]
        %v2680 = vld [vmem:[%s14] sm:$0xff]
        %v2681 = vld [vmem:[%s14 + $0x8] sm:$0xff]
        %v2682 = vld [vmem:[%s14 + $0x10] sm:$0xff]
        %v2683 = vld [vmem:[%s14 + $0x18] sm:$0xff]
        %v2684 = vld [vmem:[%s14 + $0x20] sm:$0xff]
        %v2685 = vld [vmem:[%s14 + $0x28] sm:$0xff]
        %v2686 = vld [vmem:[%s14 + $0x30] sm:$0xff]
        %v2687 = vld [vmem:[%s14 + $0x38] sm:$0xff]
        %v2688 = vld [vmem:[%s14 + $0x40] sm:$0xff]
        %v2689 = vld [vmem:[%s14 + $0x48] sm:$0xff]
        %v2690 = vld [vmem:[%s14 + $0x50] sm:$0xff]
        %v2691 = vld [vmem:[%s14 + $0x58] sm:$0xff]
        %v2692 = vld [vmem:[%s14 + $0x60] sm:$0xff]
        %v2693 = vld [vmem:[%s14 + $0x68] sm:$0xff]
        %v2694 = vld [vmem:[%s14 + $0x70] sm:$0xff]
        %v2695 = vld [vmem:[%s14 + $0x78] sm:$0xff]
        %2697 = vset.pattern.permute.xlu0 0
        %2698 = vperm.xlu0 %2697, %v2680
        %v2699 = vpop.permute.xlu0 %2698
        %2702 = vset.pattern.permute.xlu0 0
        %2703 = vperm.xlu0 %2702, %v2681
        %v2704 = vpop.permute.xlu0 %2703
        %2707 = vset.pattern.permute.xlu0 0
        %2708 = vperm.xlu0 %2707, %v2682
        %v2709 = vpop.permute.xlu0 %2708
        %2712 = vset.pattern.permute.xlu0 0
        %2713 = vperm.xlu0 %2712, %v2683
        %v2714 = vpop.permute.xlu0 %2713
        %2717 = vset.pattern.permute.xlu0 0
        %2718 = vperm.xlu0 %2717, %v2684
        %v2719 = vpop.permute.xlu0 %2718
        %2722 = vset.pattern.permute.xlu0 0
        %2723 = vperm.xlu0 %2722, %v2685
        %v2724 = vpop.permute.xlu0 %2723
        %2727 = vset.pattern.permute.xlu0 0
        %2728 = vperm.xlu0 %2727, %v2686
        %v2729 = vpop.permute.xlu0 %2728
        %2732 = vset.pattern.permute.xlu0 0
        %2733 = vperm.xlu0 %2732, %v2687
        %v2734 = vpop.permute.xlu0 %2733
        %2737 = vset.pattern.permute.xlu0 0
        %2738 = vperm.xlu0 %2737, %v2688
        %v2739 = vpop.permute.xlu0 %2738
        %2742 = vset.pattern.permute.xlu0 0
        %2743 = vperm.xlu0 %2742, %v2689
        %v2744 = vpop.permute.xlu0 %2743
        %2747 = vset.pattern.permute.xlu0 0
        %2748 = vperm.xlu0 %2747, %v2690
        %v2749 = vpop.permute.xlu0 %2748
        %2752 = vset.pattern.permute.xlu0 0
        %2753 = vperm.xlu0 %2752, %v2691
        %v2754 = vpop.permute.xlu0 %2753
        %2757 = vset.pattern.permute.xlu0 0
        %2758 = vperm.xlu0 %2757, %v2692
        %v2759 = vpop.permute.xlu0 %2758
        %2762 = vset.pattern.permute.xlu0 0
        %2763 = vperm.xlu0 %2762, %v2693
        %v2764 = vpop.permute.xlu0 %2763
        %2767 = vset.pattern.permute.xlu0 0
        %2768 = vperm.xlu0 %2767, %v2694
        %v2769 = vpop.permute.xlu0 %2768
        %2772 = vset.pattern.permute.xlu0 0
        %2773 = vperm.xlu0 %2772, %v2695
        %v2774 = vpop.permute.xlu0 %2773
        %v2792 = vunpack.c.l.b16 %v2664
        %v2793 = vunpack.c.l.b16 %v2665
        %v2794 = vunpack.c.l.b16 %v2666
        %v2795 = vunpack.c.l.b16 %v2667
        %v2796 = vunpack.c.l.b16 %v2668
        %v2797 = vunpack.c.l.b16 %v2669
        %v2798 = vunpack.c.l.b16 %v2670
        %v2799 = vunpack.c.l.b16 %v2671
        %v2800 = vunpack.c.l.b16 %v2672
        %v2801 = vunpack.c.l.b16 %v2673
        %v2802 = vunpack.c.l.b16 %v2674
        %v2803 = vunpack.c.l.b16 %v2675
        %v2804 = vunpack.c.l.b16 %v2676
        %v2805 = vunpack.c.l.b16 %v2677
        %v2806 = vunpack.c.l.b16 %v2678
        %v2807 = vunpack.c.l.b16 %v2679
        %v2808 = vpack.c.b16 %v2793, %v2792
        %v2809 = vpack.c.b16 %v2795, %v2794
        %v2810 = vpack.c.b16 %v2797, %v2796
        %v2811 = vpack.c.b16 %v2799, %v2798
        %v2812 = vpack.c.b16 %v2801, %v2800
        %v2813 = vpack.c.b16 %v2803, %v2802
        %v2814 = vpack.c.b16 %v2805, %v2804
        %v2815 = vpack.c.b16 %v2807, %v2806
        %2824 = vmatprep.subr.bf16.mxu0 0
        %2825 = vmatpush1.bf16.msra.mxu0 %v2656
        %2826 = vmatprep.subr.bf16.mxu0 0
        %2827 = vmatpush1.bf16.msra.mxu0 %v2657
        %2828 = vmatprep.subr.bf16.mxu0 0
        %2829 = vmatpush1.bf16.msra.mxu0 %v2658
        %2830 = vmatprep.subr.bf16.mxu0 0
        %2831 = vmatpush1.bf16.msra.mxu0 %v2659
        %2832 = vmatprep.subr.bf16.mxu0 0
        %2833 = vmatpush1.bf16.msra.mxu0 %v2660
        %2834 = vmatprep.subr.bf16.mxu0 0
        %2835 = vmatpush1.bf16.msra.mxu0 %v2661
        %2836 = vmatprep.subr.bf16.mxu0 0
        %2837 = vmatpush1.bf16.msra.mxu0 %v2662
        %2838 = vmatprep.subr.bf16.mxu0 0
        %2839 = vmatpush1.bf16.msra.mxu0 %v2663
        %2840 = vmatprep.subr.bf16.mxu0 0
        %2841 = vmatpush1.bf16.msra.mxu0 0
        %2842 = vmatprep.subr.bf16.mxu0 0
        %2843 = vmatpush1.bf16.msra.mxu0 0
        %2844 = vmatprep.subr.bf16.mxu0 0
        %2845 = vmatpush1.bf16.msra.mxu0 0
        %2846 = vmatprep.subr.bf16.mxu0 0
        %2847 = vmatpush1.bf16.msra.mxu0 0
        %2848 = vmatprep.subr.bf16.mxu0 0
        %2849 = vmatpush1.bf16.msra.mxu0 0
        %2850 = vmatprep.subr.bf16.mxu0 0
        %2851 = vmatpush1.bf16.msra.mxu0 0
        %2852 = vmatprep.subr.bf16.mxu0 0
        %2853 = vmatpush1.bf16.msra.mxu0 0
        %2854 = vmatprep.subr.bf16.mxu0 0
        %2855 = vmatpush1.bf16.msra.mxu0 0
        %2856 = vmatprep.mubr.bf16.mxu0 0
        %2857 = vmatmul.mubr.bf16.gmra.mrb[0].mxu0 %v2808
        %v2858 = vpop.f32.mrb[0].mxu0
        %v2859 = vadd.f32 %v2699, %v2858
        %v2860 = vpop.f32.mrb[0].mxu0
        %v2861 = vpop.f32.mrb[0].mxu0
        %v2862 = vadd.f32 %v2704, %v2861
        %v2863 = vpop.f32.mrb[0].mxu0
        %2864 = vmatprep.mubr.bf16.mxu0 0
        %2865 = vmatmul.mubr.bf16.gmra.mrb[0].mxu0 %v2809
        %v2866 = vpop.f32.mrb[0].mxu0
        %v2867 = vadd.f32 %v2709, %v2866
        %v2868 = vpop.f32.mrb[0].mxu0
        %v2869 = vpop.f32.mrb[0].mxu0
        %v2870 = vadd.f32 %v2714, %v2869
        %v2871 = vpop.f32.mrb[0].mxu0
        %2872 = vmatprep.mubr.bf16.mxu0 0
        %2873 = vmatmul.mubr.bf16.gmra.mrb[0].mxu0 %v2810
        %v2874 = vpop.f32.mrb[0].mxu0
        %v2875 = vadd.f32 %v2719, %v2874
        %v2876 = vpop.f32.mrb[0].mxu0
        %v2877 = vpop.f32.mrb[0].mxu0
        %v2878 = vadd.f32 %v2724, %v2877
        %v2879 = vpop.f32.mrb[0].mxu0
        %2880 = vmatprep.mubr.bf16.mxu0 0
        %2881 = vmatmul.mubr.bf16.gmra.mrb[0].mxu0 %v2811
        %v2882 = vpop.f32.mrb[0].mxu0
        %v2883 = vadd.f32 %v2729, %v2882
        %v2884 = vpop.f32.mrb[0].mxu0
        %v2885 = vpop.f32.mrb[0].mxu0
        %v2886 = vadd.f32 %v2734, %v2885
        %v2887 = vpop.f32.mrb[0].mxu0
        %2888 = vmatprep.mubr.bf16.mxu0 0
        %2889 = vmatmul.mubr.bf16.gmra.mrb[0].mxu0 %v2812
        %v2890 = vpop.f32.mrb[0].mxu0
        %v2891 = vadd.f32 %v2739, %v2890
        %v2892 = vpop.f32.mrb[0].mxu0
        %v2893 = vpop.f32.mrb[0].mxu0
        %v2894 = vadd.f32 %v2744, %v2893
        %v2895 = vpop.f32.mrb[0].mxu0
        %2896 = vmatprep.mubr.bf16.mxu0 0
        %2897 = vmatmul.mubr.bf16.gmra.mrb[0].mxu0 %v2813
        %v2898 = vpop.f32.mrb[0].mxu0
        %v2899 = vadd.f32 %v2749, %v2898
        %v2900 = vpop.f32.mrb[0].mxu0
        %v2901 = vpop.f32.mrb[0].mxu0
        %v2902 = vadd.f32 %v2754, %v2901
        %v2903 = vpop.f32.mrb[0].mxu0
        %2904 = vmatprep.mubr.bf16.mxu0 0
        %2905 = vmatmul.mubr.bf16.gmra.mrb[0].mxu0 %v2814
        %v2906 = vpop.f32.mrb[0].mxu0
        %v2907 = vadd.f32 %v2759, %v2906
        %v2908 = vpop.f32.mrb[0].mxu0
        %v2909 = vpop.f32.mrb[0].mxu0
        %v2910 = vadd.f32 %v2764, %v2909
        %v2911 = vpop.f32.mrb[0].mxu0
        %2912 = vmatprep.mubr.bf16.mxu0 0
        %2913 = vmatmul.mubr.bf16.gmra.mrb[0].mxu0 %v2815
        %v2914 = vpop.f32.mrb[0].mxu0
        %v2915 = vadd.f32 %v2769, %v2914
        %v2916 = vpop.f32.mrb[0].mxu0
        %v2917 = vpop.f32.mrb[0].mxu0
        %v2918 = vadd.f32 %v2774, %v2917
        %v2919 = vpop.f32.mrb[0].mxu0
        %2920 = vdwg.mxu0
        %v2921 = vmax.f32 %v2859, 0.0
        %v2922 = vmax.f32 %v2862, 0.0
        %v2923 = vmax.f32 %v2867, 0.0
        %v2924 = vmax.f32 %v2870, 0.0
        %v2925 = vmax.f32 %v2875, 0.0
        %v2926 = vmax.f32 %v2878, 0.0
        %v2927 = vmax.f32 %v2883, 0.0
        %v2928 = vmax.f32 %v2886, 0.0
        %v2929 = vmax.f32 %v2891, 0.0
        %v2930 = vmax.f32 %v2894, 0.0
        %v2931 = vmax.f32 %v2899, 0.0
        %v2932 = vmax.f32 %v2902, 0.0
        %v2933 = vmax.f32 %v2907, 0.0
        %v2934 = vmax.f32 %v2910, 0.0
        %v2935 = vmax.f32 %v2915, 0.0
        %v2936 = vmax.f32 %v2918, 0.0
        %v2937 = vpack.c.bf16 %v2922, %v2921
        %v2938 = vpack.c.bf16 %v2924, %v2923
        %v2939 = vpack.c.bf16 %v2926, %v2925
        %v2940 = vpack.c.bf16 %v2928, %v2927
        %v2941 = vpack.c.bf16 %v2930, %v2929
        %v2942 = vpack.c.bf16 %v2932, %v2931
        %v2943 = vpack.c.bf16 %v2934, %v2933
        %v2944 = vpack.c.bf16 %v2936, %v2935
        %v2945 = vld [vmem:[%s15] sm:$0xf]
        %v2946 = vld [vmem:[%s15 + $0x4] sm:$0xf]
        %v2947 = vld [vmem:[%s15 + $0x8] sm:$0xf]
        %v2948 = vld [vmem:[%s15 + $0xc] sm:$0xf]
        %v2949 = vld [vmem:[%s15 + $0x10] sm:$0xf]
        %v2950 = vld [vmem:[%s15 + $0x14] sm:$0xf]
        %v2951 = vld [vmem:[%s15 + $0x18] sm:$0xf]
        %v2952 = vld [vmem:[%s15 + $0x1c] sm:$0xf]
        %v2953 = vld [vmem:[%s15 + $0x20] sm:$0xf]
        %v2954 = vld [vmem:[%s15 + $0x24] sm:$0xf]
        %v2955 = vld [vmem:[%s15 + $0x28] sm:$0xf]
        %v2956 = vld [vmem:[%s15 + $0x2c] sm:$0xf]
        %v2957 = vld [vmem:[%s15 + $0x30] sm:$0xf]
        %v2958 = vld [vmem:[%s15 + $0x34] sm:$0xf]
        %v2959 = vld [vmem:[%s15 + $0x38] sm:$0xf]
        %v2960 = vld [vmem:[%s15 + $0x3c] sm:$0xf]
        %v2961 = vld [vmem:[%s16] sm:$0xff]
        %v2962 = vld [vmem:[%s16 + $0x8] sm:$0xff]
        %v2963 = vld [vmem:[%s16 + $0x10] sm:$0xff]
        %v2964 = vld [vmem:[%s16 + $0x18] sm:$0xff]
        %v2965 = vld [vmem:[%s16 + $0x20] sm:$0xff]
        %v2966 = vld [vmem:[%s16 + $0x28] sm:$0xff]
        %v2967 = vld [vmem:[%s16 + $0x30] sm:$0xff]
        %v2968 = vld [vmem:[%s16 + $0x38] sm:$0xff]
        %v2969 = vld [vmem:[%s16 + $0x40] sm:$0xff]
        %v2970 = vld [vmem:[%s16 + $0x48] sm:$0xff]
        %v2971 = vld [vmem:[%s16 + $0x50] sm:$0xff]
        %v2972 = vld [vmem:[%s16 + $0x58] sm:$0xff]
        %v2973 = vld [vmem:[%s16 + $0x60] sm:$0xff]
        %v2974 = vld [vmem:[%s16 + $0x68] sm:$0xff]
        %v2975 = vld [vmem:[%s16 + $0x70] sm:$0xff]
        %v2976 = vld [vmem:[%s16 + $0x78] sm:$0xff]
        %2978 = vset.pattern.permute.xlu0 0
        %2979 = vperm.xlu0 %2978, %v2961
        %v2980 = vpop.permute.xlu0 %2979
        %2983 = vset.pattern.permute.xlu0 0
        %2984 = vperm.xlu0 %2983, %v2962
        %v2985 = vpop.permute.xlu0 %2984
        %2988 = vset.pattern.permute.xlu0 0
        %2989 = vperm.xlu0 %2988, %v2963
        %v2990 = vpop.permute.xlu0 %2989
        %2993 = vset.pattern.permute.xlu0 0
        %2994 = vperm.xlu0 %2993, %v2964
        %v2995 = vpop.permute.xlu0 %2994
        %2998 = vset.pattern.permute.xlu0 0
        %2999 = vperm.xlu0 %2998, %v2965
        %v3000 = vpop.permute.xlu0 %2999
        %3003 = vset.pattern.permute.xlu0 0
        %3004 = vperm.xlu0 %3003, %v2966
        %v3005 = vpop.permute.xlu0 %3004
        %3008 = vset.pattern.permute.xlu0 0
        %3009 = vperm.xlu0 %3008, %v2967
        %v3010 = vpop.permute.xlu0 %3009
        %3013 = vset.pattern.permute.xlu0 0
        %3014 = vperm.xlu0 %3013, %v2968
        %v3015 = vpop.permute.xlu0 %3014
        %3018 = vset.pattern.permute.xlu0 0
        %3019 = vperm.xlu0 %3018, %v2969
        %v3020 = vpop.permute.xlu0 %3019
        %3023 = vset.pattern.permute.xlu0 0
        %3024 = vperm.xlu0 %3023, %v2970
        %v3025 = vpop.permute.xlu0 %3024
        %3028 = vset.pattern.permute.xlu0 0
        %3029 = vperm.xlu0 %3028, %v2971
        %v3030 = vpop.permute.xlu0 %3029
        %3033 = vset.pattern.permute.xlu0 0
        %3034 = vperm.xlu0 %3033, %v2972
        %v3035 = vpop.permute.xlu0 %3034
        %3038 = vset.pattern.permute.xlu0 0
        %3039 = vperm.xlu0 %3038, %v2973
        %v3040 = vpop.permute.xlu0 %3039
        %3043 = vset.pattern.permute.xlu0 0
        %3044 = vperm.xlu0 %3043, %v2974
        %v3045 = vpop.permute.xlu0 %3044
        %3048 = vset.pattern.permute.xlu0 0
        %3049 = vperm.xlu0 %3048, %v2975
        %v3050 = vpop.permute.xlu0 %3049
        %3053 = vset.pattern.permute.xlu0 0
        %3054 = vperm.xlu0 %3053, %v2976
        %v3055 = vpop.permute.xlu0 %3054
        %v3073 = vunpack.c.l.b16 %v2945
        %v3074 = vunpack.c.l.b16 %v2946
        %v3075 = vunpack.c.l.b16 %v2947
        %v3076 = vunpack.c.l.b16 %v2948
        %v3077 = vunpack.c.l.b16 %v2949
        %v3078 = vunpack.c.l.b16 %v2950
        %v3079 = vunpack.c.l.b16 %v2951
        %v3080 = vunpack.c.l.b16 %v2952
        %v3081 = vunpack.c.l.b16 %v2953
        %v3082 = vunpack.c.l.b16 %v2954
        %v3083 = vunpack.c.l.b16 %v2955
        %v3084 = vunpack.c.l.b16 %v2956
        %v3085 = vunpack.c.l.b16 %v2957
        %v3086 = vunpack.c.l.b16 %v2958
        %v3087 = vunpack.c.l.b16 %v2959
        %v3088 = vunpack.c.l.b16 %v2960
        %v3089 = vpack.c.b16 %v3074, %v3073
        %v3090 = vpack.c.b16 %v3076, %v3075
        %v3091 = vpack.c.b16 %v3078, %v3077
        %v3092 = vpack.c.b16 %v3080, %v3079
        %v3093 = vpack.c.b16 %v3082, %v3081
        %v3094 = vpack.c.b16 %v3084, %v3083
        %v3095 = vpack.c.b16 %v3086, %v3085
        %v3096 = vpack.c.b16 %v3088, %v3087
        %3105 = vmatprep.subr.bf16.mxu0 0
        %3106 = vmatpush1.bf16.msra.mxu0 %v2937
        %3107 = vmatprep.subr.bf16.mxu0 0
        %3108 = vmatpush1.bf16.msra.mxu0 %v2938
        %3109 = vmatprep.subr.bf16.mxu0 0
        %3110 = vmatpush1.bf16.msra.mxu0 %v2939
        %3111 = vmatprep.subr.bf16.mxu0 0
        %3112 = vmatpush1.bf16.msra.mxu0 %v2940
        %3113 = vmatprep.subr.bf16.mxu0 0
        %3114 = vmatpush1.bf16.msra.mxu0 %v2941
        %3115 = vmatprep.subr.bf16.mxu0 0
        %3116 = vmatpush1.bf16.msra.mxu0 %v2942
        %3117 = vmatprep.subr.bf16.mxu0 0
        %3118 = vmatpush1.bf16.msra.mxu0 %v2943
        %3119 = vmatprep.subr.bf16.mxu0 0
        %3120 = vmatpush1.bf16.msra.mxu0 %v2944
        %3121 = vmatprep.subr.bf16.mxu0 0
        %3122 = vmatpush1.bf16.msra.mxu0 0
        %3123 = vmatprep.subr.bf16.mxu0 0
        %3124 = vmatpush1.bf16.msra.mxu0 0
        %3125 = vmatprep.subr.bf16.mxu0 0
        %3126 = vmatpush1.bf16.msra.mxu0 0
        %3127 = vmatprep.subr.bf16.mxu0 0
        %3128 = vmatpush1.bf16.msra.mxu0 0
        %3129 = vmatprep.subr.bf16.mxu0 0
        %3130 = vmatpush1.bf16.msra.mxu0 0
        %3131 = vmatprep.subr.bf16.mxu0 0
        %3132 = vmatpush1.bf16.msra.mxu0 0
        %3133 = vmatprep.subr.bf16.mxu0 0
        %3134 = vmatpush1.bf16.msra.mxu0 0
        %3135 = vmatprep.subr.bf16.mxu0 0
        %3136 = vmatpush1.bf16.msra.mxu0 0
        %3137 = vmatprep.mubr.bf16.mxu0 0
        %3138 = vmatmul.mubr.bf16.gmra.mrb[0].mxu0 %v3089
        %v3139 = vpop.f32.mrb[0].mxu0
        %v3140 = vadd.f32 %v2980, %v3139
        %v3141 = vpop.f32.mrb[0].mxu0
        %v3142 = vpop.f32.mrb[0].mxu0
        %v3143 = vadd.f32 %v2985, %v3142
        %v3144 = vpop.f32.mrb[0].mxu0
        %3145 = vmatprep.mubr.bf16.mxu0 0
        %3146 = vmatmul.mubr.bf16.gmra.mrb[0].mxu0 %v3090
        %v3147 = vpop.f32.mrb[0].mxu0
        %v3148 = vadd.f32 %v2990, %v3147
        %v3149 = vpop.f32.mrb[0].mxu0
        %v3150 = vpop.f32.mrb[0].mxu0
        %v3151 = vadd.f32 %v2995, %v3150
        %v3152 = vpop.f32.mrb[0].mxu0
        %3153 = vmatprep.mubr.bf16.mxu0 0
        %3154 = vmatmul.mubr.bf16.gmra.mrb[0].mxu0 %v3091
        %v3155 = vpop.f32.mrb[0].mxu0
        %v3156 = vadd.f32 %v3000, %v3155
        %v3157 = vpop.f32.mrb[0].mxu0
        %v3158 = vpop.f32.mrb[0].mxu0
        %v3159 = vadd.f32 %v3005, %v3158
        %v3160 = vpop.f32.mrb[0].mxu0
        %3161 = vmatprep.mubr.bf16.mxu0 0
        %3162 = vmatmul.mubr.bf16.gmra.mrb[0].mxu0 %v3092
        %v3163 = vpop.f32.mrb[0].mxu0
        %v3164 = vadd.f32 %v3010, %v3163
        %v3165 = vpop.f32.mrb[0].mxu0
        %v3166 = vpop.f32.mrb[0].mxu0
        %v3167 = vadd.f32 %v3015, %v3166
        %v3168 = vpop.f32.mrb[0].mxu0
        %3169 = vmatprep.mubr.bf16.mxu0 0
        %3170 = vmatmul.mubr.bf16.gmra.mrb[0].mxu0 %v3093
        %v3171 = vpop.f32.mrb[0].mxu0
        %v3172 = vadd.f32 %v3020, %v3171
        %v3173 = vpop.f32.mrb[0].mxu0
        %v3174 = vpop.f32.mrb[0].mxu0
        %v3175 = vadd.f32 %v3025, %v3174
        %v3176 = vpop.f32.mrb[0].mxu0
        %3177 = vmatprep.mubr.bf16.mxu0 0
        %3178 = vmatmul.mubr.bf16.gmra.mrb[0].mxu0 %v3094
        %v3179 = vpop.f32.mrb[0].mxu0
        %v3180 = vadd.f32 %v3030, %v3179
        %v3181 = vpop.f32.mrb[0].mxu0
        %v3182 = vpop.f32.mrb[0].mxu0
        %v3183 = vadd.f32 %v3035, %v3182
        %v3184 = vpop.f32.mrb[0].mxu0
        %3185 = vmatprep.mubr.bf16.mxu0 0
        %3186 = vmatmul.mubr.bf16.gmra.mrb[0].mxu0 %v3095
        %v3187 = vpop.f32.mrb[0].mxu0
        %v3188 = vadd.f32 %v3040, %v3187
        %v3189 = vpop.f32.mrb[0].mxu0
        %v3190 = vpop.f32.mrb[0].mxu0
        %v3191 = vadd.f32 %v3045, %v3190
        %v3192 = vpop.f32.mrb[0].mxu0
        %3193 = vmatprep.mubr.bf16.mxu0 0
        %3194 = vmatmul.mubr.bf16.gmra.mrb[0].mxu0 %v3096
        %v3195 = vpop.f32.mrb[0].mxu0
        %v3196 = vadd.f32 %v3050, %v3195
        %v3197 = vpop.f32.mrb[0].mxu0
        %v3198 = vpop.f32.mrb[0].mxu0
        %v3199 = vadd.f32 %v3055, %v3198
        %v3200 = vpop.f32.mrb[0].mxu0
        %3201 = vdwg.mxu0
        %v3202 = vmax.f32 %v3140, 0.0
        %v3203 = vmax.f32 %v3143, 0.0
        %v3204 = vmax.f32 %v3148, 0.0
        %v3205 = vmax.f32 %v3151, 0.0
        %v3206 = vmax.f32 %v3156, 0.0
        %v3207 = vmax.f32 %v3159, 0.0
        %v3208 = vmax.f32 %v3164, 0.0
        %v3209 = vmax.f32 %v3167, 0.0
        %v3210 = vmax.f32 %v3172, 0.0
        %v3211 = vmax.f32 %v3175, 0.0
        %v3212 = vmax.f32 %v3180, 0.0
        %v3213 = vmax.f32 %v3183, 0.0
        %v3214 = vmax.f32 %v3188, 0.0
        %v3215 = vmax.f32 %v3191, 0.0
        %v3216 = vmax.f32 %v3196, 0.0
        %v3217 = vmax.f32 %v3199, 0.0
        %v3218 = vpack.c.bf16 %v3203, %v3202
        %v3219 = vpack.c.bf16 %v3205, %v3204
        %v3220 = vpack.c.bf16 %v3207, %v3206
        %v3221 = vpack.c.bf16 %v3209, %v3208
        %v3222 = vpack.c.bf16 %v3211, %v3210
        %v3223 = vpack.c.bf16 %v3213, %v3212
        %v3224 = vpack.c.bf16 %v3215, %v3214
        %v3225 = vpack.c.bf16 %v3217, %v3216
        %v3226 = vld [vmem:[%s17] sm:$0xf]
        %v3227 = vld [vmem:[%s17 + $0x4] sm:$0xf]
        %v3228 = vld [vmem:[%s17 + $0x8] sm:$0xf]
        %v3229 = vld [vmem:[%s17 + $0xc] sm:$0xf]
        %v3230 = vld [vmem:[%s17 + $0x10] sm:$0xf]
        %v3231 = vld [vmem:[%s17 + $0x14] sm:$0xf]
        %v3232 = vld [vmem:[%s17 + $0x18] sm:$0xf]
        %v3233 = vld [vmem:[%s17 + $0x1c] sm:$0xf]
        %v3234 = vld [vmem:[%s17 + $0x20] sm:$0xf]
        %v3235 = vld [vmem:[%s17 + $0x24] sm:$0xf]
        %v3236 = vld [vmem:[%s17 + $0x28] sm:$0xf]
        %v3237 = vld [vmem:[%s17 + $0x2c] sm:$0xf]
        %v3238 = vld [vmem:[%s17 + $0x30] sm:$0xf]
        %v3239 = vld [vmem:[%s17 + $0x34] sm:$0xf]
        %v3240 = vld [vmem:[%s17 + $0x38] sm:$0xf]
        %v3241 = vld [vmem:[%s17 + $0x3c] sm:$0xf]
        %v3242 = vld [vmem:[%s18] sm:$0xff]
        %v3243 = vld [vmem:[%s18 + $0x8] sm:$0xff]
        %v3244 = vld [vmem:[%s18 + $0x10] sm:$0xff]
        %v3245 = vld [vmem:[%s18 + $0x18] sm:$0xff]
        %v3246 = vld [vmem:[%s18 + $0x20] sm:$0xff]
        %v3247 = vld [vmem:[%s18 + $0x28] sm:$0xff]
        %v3248 = vld [vmem:[%s18 + $0x30] sm:$0xff]
        %v3249 = vld [vmem:[%s18 + $0x38] sm:$0xff]
        %v3250 = vld [vmem:[%s18 + $0x40] sm:$0xff]
        %v3251 = vld [vmem:[%s18 + $0x48] sm:$0xff]
        %v3252 = vld [vmem:[%s18 + $0x50] sm:$0xff]
        %v3253 = vld [vmem:[%s18 + $0x58] sm:$0xff]
        %v3254 = vld [vmem:[%s18 + $0x60] sm:$0xff]
        %v3255 = vld [vmem:[%s18 + $0x68] sm:$0xff]
        %v3256 = vld [vmem:[%s18 + $0x70] sm:$0xff]
        %v3257 = vld [vmem:[%s18 + $0x78] sm:$0xff]
        %3259 = vset.pattern.permute.xlu0 0
        %3260 = vperm.xlu0 %3259, %v3242
        %v3261 = vpop.permute.xlu0 %3260
        %3264 = vset.pattern.permute.xlu0 0
        %3265 = vperm.xlu0 %3264, %v3243
        %v3266 = vpop.permute.xlu0 %3265
        %3269 = vset.pattern.permute.xlu0 0
        %3270 = vperm.xlu0 %3269, %v3244
        %v3271 = vpop.permute.xlu0 %3270
        %3274 = vset.pattern.permute.xlu0 0
        %3275 = vperm.xlu0 %3274, %v3245
        %v3276 = vpop.permute.xlu0 %3275
        %3279 = vset.pattern.permute.xlu0 0
        %3280 = vperm.xlu0 %3279, %v3246
        %v3281 = vpop.permute.xlu0 %3280
        %3284 = vset.pattern.permute.xlu0 0
        %3285 = vperm.xlu0 %3284, %v3247
        %v3286 = vpop.permute.xlu0 %3285
        %3289 = vset.pattern.permute.xlu0 0
        %3290 = vperm.xlu0 %3289, %v3248
        %v3291 = vpop.permute.xlu0 %3290
        %3294 = vset.pattern.permute.xlu0 0
        %3295 = vperm.xlu0 %3294, %v3249
        %v3296 = vpop.permute.xlu0 %3295
        %3299 = vset.pattern.permute.xlu0 0
        %3300 = vperm.xlu0 %3299, %v3250
        %v3301 = vpop.permute.xlu0 %3300
        %3304 = vset.pattern.permute.xlu0 0
        %3305 = vperm.xlu0 %3304, %v3251
        %v3306 = vpop.permute.xlu0 %3305
        %3309 = vset.pattern.permute.xlu0 0
        %3310 = vperm.xlu0 %3309, %v3252
        %v3311 = vpop.permute.xlu0 %3310
        %3314 = vset.pattern.permute.xlu0 0
        %3315 = vperm.xlu0 %3314, %v3253
        %v3316 = vpop.permute.xlu0 %3315
        %3319 = vset.pattern.permute.xlu0 0
        %3320 = vperm.xlu0 %3319, %v3254
        %v3321 = vpop.permute.xlu0 %3320
        %3324 = vset.pattern.permute.xlu0 0
        %3325 = vperm.xlu0 %3324, %v3255
        %v3326 = vpop.permute.xlu0 %3325
        %3329 = vset.pattern.permute.xlu0 0
        %3330 = vperm.xlu0 %3329, %v3256
        %v3331 = vpop.permute.xlu0 %3330
        %3334 = vset.pattern.permute.xlu0 0
        %3335 = vperm.xlu0 %3334, %v3257
        %v3336 = vpop.permute.xlu0 %3335
        %v3354 = vunpack.c.l.b16 %v3226
        %v3355 = vunpack.c.l.b16 %v3227
        %v3356 = vunpack.c.l.b16 %v3228
        %v3357 = vunpack.c.l.b16 %v3229
        %v3358 = vunpack.c.l.b16 %v3230
        %v3359 = vunpack.c.l.b16 %v3231
        %v3360 = vunpack.c.l.b16 %v3232
        %v3361 = vunpack.c.l.b16 %v3233
        %v3362 = vunpack.c.l.b16 %v3234
        %v3363 = vunpack.c.l.b16 %v3235
        %v3364 = vunpack.c.l.b16 %v3236
        %v3365 = vunpack.c.l.b16 %v3237
        %v3366 = vunpack.c.l.b16 %v3238
        %v3367 = vunpack.c.l.b16 %v3239
        %v3368 = vunpack.c.l.b16 %v3240
        %v3369 = vunpack.c.l.b16 %v3241
        %v3370 = vpack.c.b16 %v3355, %v3354
        %v3371 = vpack.c.b16 %v3357, %v3356
        %v3372 = vpack.c.b16 %v3359, %v3358
        %v3373 = vpack.c.b16 %v3361, %v3360
        %v3374 = vpack.c.b16 %v3363, %v3362
        %v3375 = vpack.c.b16 %v3365, %v3364
        %v3376 = vpack.c.b16 %v3367, %v3366
        %v3377 = vpack.c.b16 %v3369, %v3368
        %3386 = vmatprep.subr.bf16.mxu0 0
        %3387 = vmatpush1.bf16.msra.mxu0 %v3218
        %3388 = vmatprep.subr.bf16.mxu0 0
        %3389 = vmatpush1.bf16.msra.mxu0 %v3219
        %3390 = vmatprep.subr.bf16.mxu0 0
        %3391 = vmatpush1.bf16.msra.mxu0 %v3220
        %3392 = vmatprep.subr.bf16.mxu0 0
        %3393 = vmatpush1.bf16.msra.mxu0 %v3221
        %3394 = vmatprep.subr.bf16.mxu0 0
        %3395 = vmatpush1.bf16.msra.mxu0 %v3222
        %3396 = vmatprep.subr.bf16.mxu0 0
        %3397 = vmatpush1.bf16.msra.mxu0 %v3223
        %3398 = vmatprep.subr.bf16.mxu0 0
        %3399 = vmatpush1.bf16.msra.mxu0 %v3224
        %3400 = vmatprep.subr.bf16.mxu0 0
        %3401 = vmatpush1.bf16.msra.mxu0 %v3225
        %3402 = vmatprep.subr.bf16.mxu0 0
        %3403 = vmatpush1.bf16.msra.mxu0 0
        %3404 = vmatprep.subr.bf16.mxu0 0
        %3405 = vmatpush1.bf16.msra.mxu0 0
        %3406 = vmatprep.subr.bf16.mxu0 0
        %3407 = vmatpush1.bf16.msra.mxu0 0
        %3408 = vmatprep.subr.bf16.mxu0 0
        %3409 = vmatpush1.bf16.msra.mxu0 0
        %3410 = vmatprep.subr.bf16.mxu0 0
        %3411 = vmatpush1.bf16.msra.mxu0 0
        %3412 = vmatprep.subr.bf16.mxu0 0
        %3413 = vmatpush1.bf16.msra.mxu0 0
        %3414 = vmatprep.subr.bf16.mxu0 0
        %3415 = vmatpush1.bf16.msra.mxu0 0
        %3416 = vmatprep.subr.bf16.mxu0 0
        %3417 = vmatpush1.bf16.msra.mxu0 0
        %3418 = vmatprep.mubr.bf16.mxu0 0
        %3419 = vmatmul.mubr.bf16.gmra.mrb[0].mxu0 %v3370
        %v3420 = vpop.f32.mrb[0].mxu0
        %v3421 = vadd.f32 %v3261, %v3420
        %v3422 = vpop.f32.mrb[0].mxu0
        %v3423 = vpop.f32.mrb[0].mxu0
        %v3424 = vadd.f32 %v3266, %v3423
        %v3425 = vpop.f32.mrb[0].mxu0
        %3426 = vmatprep.mubr.bf16.mxu0 0
        %3427 = vmatmul.mubr.bf16.gmra.mrb[0].mxu0 %v3371
        %v3428 = vpop.f32.mrb[0].mxu0
        %v3429 = vadd.f32 %v3271, %v3428
        %v3430 = vpop.f32.mrb[0].mxu0
        %v3431 = vpop.f32.mrb[0].mxu0
        %v3432 = vadd.f32 %v3276, %v3431
        %v3433 = vpop.f32.mrb[0].mxu0
        %3434 = vmatprep.mubr.bf16.mxu0 0
        %3435 = vmatmul.mubr.bf16.gmra.mrb[0].mxu0 %v3372
        %v3436 = vpop.f32.mrb[0].mxu0
        %v3437 = vadd.f32 %v3281, %v3436
        %v3438 = vpop.f32.mrb[0].mxu0
        %v3439 = vpop.f32.mrb[0].mxu0
        %v3440 = vadd.f32 %v3286, %v3439
        %v3441 = vpop.f32.mrb[0].mxu0
        %3442 = vmatprep.mubr.bf16.mxu0 0
        %3443 = vmatmul.mubr.bf16.gmra.mrb[0].mxu0 %v3373
        %v3444 = vpop.f32.mrb[0].mxu0
        %v3445 = vadd.f32 %v3291, %v3444
        %v3446 = vpop.f32.mrb[0].mxu0
        %v3447 = vpop.f32.mrb[0].mxu0
        %v3448 = vadd.f32 %v3296, %v3447
        %v3449 = vpop.f32.mrb[0].mxu0
        %3450 = vmatprep.mubr.bf16.mxu0 0
        %3451 = vmatmul.mubr.bf16.gmra.mrb[0].mxu0 %v3374
        %v3452 = vpop.f32.mrb[0].mxu0
        %v3453 = vadd.f32 %v3301, %v3452
        %v3454 = vpop.f32.mrb[0].mxu0
        %v3455 = vpop.f32.mrb[0].mxu0
        %v3456 = vadd.f32 %v3306, %v3455
        %v3457 = vpop.f32.mrb[0].mxu0
        %3458 = vmatprep.mubr.bf16.mxu0 0
        %3459 = vmatmul.mubr.bf16.gmra.mrb[0].mxu0 %v3375
        %v3460 = vpop.f32.mrb[0].mxu0
        %v3461 = vadd.f32 %v3311, %v3460
        %v3462 = vpop.f32.mrb[0].mxu0
        %v3463 = vpop.f32.mrb[0].mxu0
        %v3464 = vadd.f32 %v3316, %v3463
        %v3465 = vpop.f32.mrb[0].mxu0
        %3466 = vmatprep.mubr.bf16.mxu0 0
        %3467 = vmatmul.mubr.bf16.gmra.mrb[0].mxu0 %v3376
        %v3468 = vpop.f32.mrb[0].mxu0
        %v3469 = vadd.f32 %v3321, %v3468
        %v3470 = vpop.f32.mrb[0].mxu0
        %v3471 = vpop.f32.mrb[0].mxu0
        %v3472 = vadd.f32 %v3326, %v3471
        %v3473 = vpop.f32.mrb[0].mxu0
        %3474 = vmatprep.mubr.bf16.mxu0 0
        %3475 = vmatmul.mubr.bf16.gmra.mrb[0].mxu0 %v3377
        %v3476 = vpop.f32.mrb[0].mxu0
        %v3477 = vadd.f32 %v3331, %v3476
        %v3478 = vpop.f32.mrb[0].mxu0
        %v3479 = vpop.f32.mrb[0].mxu0
        %v3480 = vadd.f32 %v3336, %v3479
        %v3481 = vpop.f32.mrb[0].mxu0
        %3482 = vdwg.mxu0
        %3483 = vst [vmem:[%s671] sm:$0xff] %v3421
        %3484 = vst [vmem:[%s671 + $0x8] sm:$0xff] %v3424
        %3485 = vst [vmem:[%s671 + $0x10] sm:$0xff] %v3429
        %3486 = vst [vmem:[%s671 + $0x18] sm:$0xff] %v3432
        %3487 = vst [vmem:[%s671 + $0x20] sm:$0xff] %v3437
        %3488 = vst [vmem:[%s671 + $0x28] sm:$0xff] %v3440
        %3489 = vst [vmem:[%s671 + $0x30] sm:$0xff] %v3445
        %3490 = vst [vmem:[%s671 + $0x38] sm:$0xff] %v3448
        %3491 = vst [vmem:[%s671 + $0x40] sm:$0xff] %v3453
        %3492 = vst [vmem:[%s671 + $0x48] sm:$0xff] %v3456
        %3493 = vst [vmem:[%s671 + $0x50] sm:$0xff] %v3461
        %3494 = vst [vmem:[%s671 + $0x58] sm:$0xff] %v3464
        %3495 = vst [vmem:[%s671 + $0x60] sm:$0xff] %v3469
        %3496 = vst [vmem:[%s671 + $0x68] sm:$0xff] %v3472
        %3497 = vst [vmem:[%s671 + $0x70] sm:$0xff] %v3477
        %3498 = vst [vmem:[%s671 + $0x78] sm:$0xff] %v3480
        %s3499 = sand.u32 %s461, 1
        %s3500 = scalar_lea.sflag [#allocation4], %s3499
        %s3501 = sand.u32 %s461, 1
        %s3502 = smul.addr %s3501, 128
        %s3503 = scalar_lea.vmem [#allocation3], %s3502
        // Predicated region
        $region138: #{tpu_custom_call.1} parent=132 // pred_check
          %p3504 = pneg %p471
        $region139: #{tpu_custom_call.1} parent=132 // pred_check_branch
          %3506 = sbr.rel (%p3504) target = $region141
        $region140: #{tpu_custom_call.1} parent=132 // pred_region
          %s3508 = ssub.s32 2048, 2048
          %3509 = vsyncadd %s3500, %s3508
          %s3510 = smul.addr %s37, 32
          %s3511 = sadd.s32 %s38, %s3510
          %s3512 = smul.addr %s3511, 128
          %s3513 = scalar_lea.hbm %s19, %s3512
          %s3514 = sshll.u32 %s3503, 4
          %s3515 = int_to_ptr.vmem [resolvable:$true] %s3514
          %3520 = dma.vmem_to_hbm [thread:$0]  %s3515, 2048, %s3513, %s3500, 128, 256, 8
        $region141: #{tpu_custom_call.1} parent=132 // pred_fallthru
          _
      $region133: #{tpu_custom_call.1} parent=5 // pred_fallthru
        _
      %p3521 = scmp.le.s32.totalorder 2, %s28
      // Predicated region
      $region142: #{tpu_custom_call.1} parent=5 // pred_check
        %p3522 = pneg %p3521
      $region143: #{tpu_custom_call.1} parent=5 // pred_check_branch
        %3524 = sbr.rel (%p3522) target = $region145
      $region144: #{tpu_custom_call.1} parent=5 // pred_region
        %s3525 = ssub.s32 %s28, 2
        // Predicated region
        $region146: #{tpu_custom_call.1} parent=144 // pred_check
          %p3526 = pneg %p477
        $region147: #{tpu_custom_call.1} parent=144 // pred_check_branch
          %3528 = sbr.rel (%p3526) target = $region149
        $region148: #{tpu_custom_call.1} parent=144 // pred_region
          %s3529 = sand.u32 %s462, 1
          %s3530 = scalar_lea.sflag [#allocation4], %s3529
          %s3531 = sand.u32 %s462, 1
          %s3532 = smul.addr %s3531, 128
          %s3533 = scalar_lea.vmem [#allocation3], %s3532
          %3534 = dma.done %s3530, 2048
        $region149: #{tpu_custom_call.1} parent=144 // pred_fallthru
          _
      $region145: #{tpu_custom_call.1} parent=5 // pred_fallthru
        _
    $region6: #{tpu_custom_call.1} parent=1 // loop_footer
      %s32 = sadd.s32 1, %s28
    $region7: #{tpu_custom_call.1} parent=1 // loop_footer_branch
      %27 = sbr.rel target = $region3
    $region8: #{tpu_custom_call.1} parent=1 // loop_exit
      _
    %3535 = vsyncpa [#allocation4], 1
    %s3536 = scalar_lea.sflag [#allocation4], 1
    %3537 = vsyncpa %s3536, 1

</llo_original>
